<compile_context>
chip_gen: v7x
topology: tpu7x:2x2x1
jax: 0.10.0
libtpu: 0.0.40
codegen_flags: <defaults>
</compile_context>

<pallas_src>
import numpy as np
import jax
import jax.numpy as jnp
from jax.experimental import pallas as pl
from jax.experimental.pallas import tpu as pltpu

# ---- model hyper-parameters (small, consistent with the module __init__) ----
NUM_FIELDS      = 8          # len(feature_dims)
EMBED_DIM       = 16
ATTEN_EMBED_DIM = 64
NUM_HEADS       = 2
NUM_LAYERS      = 3
OUTPUT_DIM      = 1          # final-FC reduce path below assumes OUTPUT_DIM == 1
HEAD_DIM        = ATTEN_EMBED_DIM // NUM_HEADS
BATCH           = 2


def autoint_kernel(x_ref, w_front_ref, b_front_ref, w_in_ref, b_in_ref,
                   w_out_ref, b_out_ref, w_fc_ref, b_fc_ref, o_ref):
    # x_ref       : (B*F, E)                (batch folded into the sublane axis)
    # w_front_ref : (E, 2A)   b_front_ref : (1, 2A)   [atten_embedding | V_res_embedding]
    # w_in_ref    : (L, A, 3A) b_in_ref   : (L, 1, 3A)  (fused q/k/v, q pre-scaled)
    # w_out_ref   : (L, A, A)  b_out_ref  : (L, 1, A)
    # w_fc_ref    : (F, A)    b_fc_ref    : (1, 1)
    B, F = BATCH, NUM_FIELDS
    BF = B * F
    A, H, Dh = ATTEN_EMBED_DIM, NUM_HEADS, HEAD_DIM

    x2d = x_ref[...]                                     # (BF, E)

    # fused atten_embedding + V_res_embedding: one matmul, 128-lane-wide output
    front = (jnp.dot(x2d, w_front_ref[...], preferred_element_type=jnp.float32)
             + b_front_ref[...])                         # (BF, 2A) = (16, 128)
    cross2d = front[:, :A]                               # (BF, A)  attention input
    vres    = front[:, A:]                               # (BF, A)  residual branch

    # stacked multi-head self-attention over the field axis (per sample)
    for l in range(NUM_LAYERS):
        # fused q/k/v projection: one matmul with N = 3A = 192
        # (1/sqrt(Dh) already folded into the q columns host-side)
        qkv = (jnp.dot(cross2d, w_in_ref[l], preferred_element_type=jnp.float32)
               + b_in_ref[l])                            # (BF, 3A)
        qkv3 = qkv.reshape(B, F, 3 * A)                  # split batch back out

        heads = []
        for h in range(H):
            q_h = qkv3[:, :, h * Dh:(h + 1) * Dh]                # (B, F, Dh)
            k_h = qkv3[:, :, A + h * Dh:A + (h + 1) * Dh]        # (B, F, Dh)
            v_h = qkv3[:, :, 2 * A + h * Dh:2 * A + (h + 1) * Dh]

            # batched scores, contraction on the head dim (no in-kernel transpose)
            s = jnp.einsum('bqd,bkd->bqk', q_h, k_h,
                           preferred_element_type=jnp.float32)   # (B, F, F)
            s = s - jnp.max(s, axis=-1, keepdims=True)
            p = jnp.exp(s)
            # exact reciprocal: approx=True would move to the EUP slot but can
            # drift past the 1e-4 check against the reference
            p = p * pl.reciprocal(jnp.sum(p, axis=-1, keepdims=True), approx=False)
            heads.append(jnp.einsum('bqk,bkd->bqd', p, v_h,
                                    preferred_element_type=jnp.float32))  # (B, F, Dh)

        attn2d = jnp.concatenate(heads, axis=-1).reshape(BF, A)           # (BF, A)
        cross2d = (jnp.dot(attn2d, w_out_ref[l], preferred_element_type=jnp.float32)
                   + b_out_ref[l])                                        # (BF, A)

    # residual add + ReLU
    act = jnp.maximum(cross2d + vres, 0.0)               # (BF, A)

    # final Linear(F*A -> 1) as VPU multiply + reduction (OUTPUT_DIM == 1)
    act3 = act.reshape(B, F, A)                          # (B, F, A)
    prod = act3 * w_fc_ref[...]                          # broadcast (F, A) over batch
    t = jnp.sum(prod, axis=2)                            # lane reduce    -> (B, F)
    out = jnp.sum(t, axis=1, keepdims=True)              # sublane reduce -> (B, 1)
    o_ref[...] = (out + b_fc_ref[...]).astype(o_ref.dtype)


def autoint_forward(x, params):
    assert OUTPUT_DIM == 1  # VPU-reduce path of the final FC assumes a scalar output
    B, F, E = x.shape
    A = ATTEN_EMBED_DIM
    scale = 1.0 / float(np.sqrt(HEAD_DIM))

    # one-time host-side (XLA) layout prep:
    #   fold batch, transpose weights, fuse atten/residual projections,
    #   fold the attention scale into the q-columns, reshape the final FC
    #   weight into an (F, A) slab
    x2d     = x.reshape(B * F, E)
    w_front = jnp.concatenate([params['w_att'].T, params['w_res'].T], axis=1)   # (E, 2A)
    b_front = jnp.concatenate([params['b_att'], params['b_res']], axis=1)       # (1, 2A)

    col_scale = jnp.concatenate(
        [jnp.full((1, A), scale, jnp.float32), jnp.ones((1, 2 * A), jnp.float32)],
        axis=1)                                                                 # (1, 3A)
    w_in_t  = jnp.transpose(params['w_in'], (0, 2, 1)) * col_scale              # (L, A, 3A)
    b_in_s  = params['b_in'] * col_scale                                        # (L, 1, 3A)
    w_out_t = jnp.transpose(params['w_out'], (0, 2, 1))                         # (L, A, A)
    w_fc_2d = params['w_fc'].reshape(F, A)                                      # (F, A)

    args = (x2d,
            w_front, b_front,
            w_in_t, b_in_s,
            w_out_t, params['b_out'],
            w_fc_2d, params['b_fc'])

    vmem = pl.BlockSpec(memory_space=pltpu.MemorySpace.VMEM)
    return pl.pallas_call(
        autoint_kernel,
        out_shape=jax.ShapeDtypeStruct((B, OUTPUT_DIM), jnp.float32),
        in_specs=[vmem] * len(args),
        out_specs=vmem,
    )(*args)


# ------------------------- parameter initialization --------------------------
def init_params(key):
    def linear(k, out_d, in_d):
        bound = 1.0 / np.sqrt(in_d)
        kw, kb = jax.random.split(k)
        w = jax.random.uniform(kw, (out_d, in_d), jnp.float32, -bound, bound)
        b = jax.random.uniform(kb, (1, out_d), jnp.float32, -bound, bound)
        return w, b

    keys = jax.random.split(key, 3 + 2 * NUM_LAYERS)
    A = ATTEN_EMBED_DIM
    w_att, b_att = linear(keys[0], A, EMBED_DIM)
    w_res, b_res = linear(keys[1], A, EMBED_DIM)
    w_fc,  b_fc  = linear(keys[2], OUTPUT_DIM, NUM_FIELDS * A)

    w_in_l, b_in_l, w_out_l, b_out_l = [], [], [], []
    for l in range(NUM_LAYERS):
        w_in, b_in = linear(keys[3 + 2 * l], 3 * A, A)
        w_out, b_out = linear(keys[4 + 2 * l], A, A)
        w_in_l.append(w_in); b_in_l.append(b_in)
        w_out_l.append(w_out); b_out_l.append(b_out)

    return dict(
        w_att=w_att, b_att=b_att,
        w_in=jnp.stack(w_in_l), b_in=jnp.stack(b_in_l),          # (L, 3A, A), (L, 1, 3A)
        w_out=jnp.stack(w_out_l), b_out=jnp.stack(b_out_l),      # (L, A, A),  (L, 1, A)
        w_res=w_res, b_res=b_res,
        w_fc=w_fc, b_fc=b_fc,
    )


# --------------------------- pure-JAX reference ------------------------------
def autoint_ref(x, p):
    B, F, E = x.shape
    A, H, Dh = ATTEN_EMBED_DIM, NUM_HEADS, HEAD_DIM
    scale = 1.0 / np.sqrt(Dh)
    cross = jnp.einsum('bfe,ae->bfa', x, p['w_att']) + p['b_att']
    for l in range(NUM_LAYERS):
        w_in, b_in = p['w_in'][l], p['b_in'][l]
        q = jnp.einsum('bfa,ca->bfc', cross, w_in[:A]) + b_in[:, :A]
        k = jnp.einsum('bfa,ca->bfc', cross, w_in[A:2 * A]) + b_in[:, A:2 * A]
        v = jnp.einsum('bfa,ca->bfc', cross, w_in[2 * A:]) + b_in[:, 2 * A:]
        qh = q.reshape(B, F, H, Dh).transpose(0, 2, 1, 3)
        kh = k.reshape(B, F, H, Dh).transpose(0, 2, 1, 3)
        vh = v.reshape(B, F, H, Dh).transpose(0, 2, 1, 3)
        s = jnp.einsum('bhqd,bhkd->bhqk', qh, kh) * scale
        pw = jax.nn.softmax(s, axis=-1)
        o = jnp.einsum('bhqk,bhkd->bhqd', pw, vh).transpose(0, 2, 1, 3).reshape(B, F, A)
        cross = jnp.einsum('bfa,ca->bfc', o, p['w_out'][l]) + p['b_out'][l]
    vres = jnp.einsum('bfe,ae->bfa', x, p['w_res']) + p['b_res']
    cross = jax.nn.relu(cross + vres).reshape(B, F * A)
    return cross @ p['w_fc'].T + p['b_fc']


if __name__ == "__main__":
    key = jax.random.PRNGKey(0)
    k_x, k_p = jax.random.split(key)
    x = jax.random.normal(k_x, (BATCH, NUM_FIELDS, EMBED_DIM), jnp.float32)
    params = init_params(k_p)

    out = autoint_forward(x, params)
    out = jax.block_until_ready(out)

    ref = jax.block_until_ready(autoint_ref(x, params))
    assert out.shape == (BATCH, OUTPUT_DIM)
    np.testing.assert_allclose(np.asarray(out), np.asarray(ref), rtol=1e-4, atol=1e-4)
    print("KERNEL_OK")
</pallas_src>

<mosaic_0001>
module attributes {stable_mosaic.version = 11 : i64} {
  func.func @autoint_kernel(%arg0: memref<16x16xf32, #tpu.memory_space<vmem>>, %arg1: memref<16x128xf32, #tpu.memory_space<vmem>>, %arg2: memref<1x128xf32, #tpu.memory_space<vmem>>, %arg3: memref<3x64x192xf32, #tpu.memory_space<vmem>>, %arg4: memref<3x1x192xf32, #tpu.memory_space<vmem>>, %arg5: memref<3x64x64xf32, #tpu.memory_space<vmem>>, %arg6: memref<3x1x64xf32, #tpu.memory_space<vmem>>, %arg7: memref<8x64xf32, #tpu.memory_space<vmem>>, %arg8: memref<1x1xf32, #tpu.memory_space<vmem>>, %arg9: memref<2x1xf32, #tpu.memory_space<vmem>>) attributes {dimension_semantics = [], scalar_prefetch = 0 : i64, scratch_operands = 0 : i64, tpu.core_type = #tpu.core_type<tc>} {
    %c0 = arith.constant 0 : index
    %c0_0 = arith.constant 0 : index
    %0 = vector.load %arg0[%c0, %c0_0] : memref<16x16xf32, #tpu.memory_space<vmem>>, vector<16x16xf32>
    %c0_1 = arith.constant 0 : index
    %c0_2 = arith.constant 0 : index
    %1 = vector.load %arg1[%c0_1, %c0_2] : memref<16x128xf32, #tpu.memory_space<vmem>>, vector<16x128xf32>
    %cst = arith.constant dense<0.000000e+00> : vector<16x128xf32>
    %2 = tpu.matmul %0, %1, %cst {dimension_numbers = #tpu.dot_dimension_numbers<[1], [0], [0], [1], [0, 0, 1, 1], [], []>} : vector<16x16xf32>, vector<16x128xf32>, vector<16x128xf32> -> vector<16x128xf32>
    %c0_3 = arith.constant 0 : index
    %c0_4 = arith.constant 0 : index
    %3 = vector.load %arg2[%c0_3, %c0_4] : memref<1x128xf32, #tpu.memory_space<vmem>>, vector<1x128xf32>
    %4 = vector.broadcast %3 : vector<1x128xf32> to vector<16x128xf32>
    %5 = arith.addf %2, %4 : vector<16x128xf32>
    %6 = vector.extract_strided_slice %5 {offsets = [0, 0], sizes = [16, 64], strides = [1, 1]} : vector<16x128xf32> to vector<16x64xf32>
    %7 = vector.extract_strided_slice %5 {offsets = [0, 64], sizes = [16, 64], strides = [1, 1]} : vector<16x128xf32> to vector<16x64xf32>
    %c0_5 = arith.constant 0 : index
    %c0_6 = arith.constant 0 : index
    %c0_7 = arith.constant 0 : index
    %8 = vector.load %arg3[%c0_5, %c0_6, %c0_7] : memref<3x64x192xf32, #tpu.memory_space<vmem>>, vector<1x64x192xf32>
    %9 = vector.shape_cast %8 : vector<1x64x192xf32> to vector<64x192xf32>
    %cst_8 = arith.constant dense<0.000000e+00> : vector<16x192xf32>
    %10 = tpu.matmul %6, %9, %cst_8 {dimension_numbers = #tpu.dot_dimension_numbers<[1], [0], [0], [1], [0, 0, 1, 1], [], []>} : vector<16x64xf32>, vector<64x192xf32>, vector<16x192xf32> -> vector<16x192xf32>
    %c0_9 = arith.constant 0 : index
    %c0_10 = arith.constant 0 : index
    %c0_11 = arith.constant 0 : index
    %11 = vector.load %arg4[%c0_9, %c0_10, %c0_11] : memref<3x1x192xf32, #tpu.memory_space<vmem>>, vector<1x1x192xf32>
    %12 = vector.shape_cast %11 : vector<1x1x192xf32> to vector<1x192xf32>
    %13 = vector.broadcast %12 : vector<1x192xf32> to vector<16x192xf32>
    %14 = arith.addf %10, %13 : vector<16x192xf32>
    %15 = vector.shape_cast %14 : vector<16x192xf32> to vector<2x8x192xf32>
    %16 = vector.extract_strided_slice %15 {offsets = [0, 0, 0], sizes = [2, 8, 32], strides = [1, 1, 1]} : vector<2x8x192xf32> to vector<2x8x32xf32>
    %17 = vector.extract_strided_slice %15 {offsets = [0, 0, 64], sizes = [2, 8, 32], strides = [1, 1, 1]} : vector<2x8x192xf32> to vector<2x8x32xf32>
    %18 = vector.extract_strided_slice %15 {offsets = [0, 0, 128], sizes = [2, 8, 32], strides = [1, 1, 1]} : vector<2x8x192xf32> to vector<2x8x32xf32>
    "tpu.trace_start"() <{level = 10 : i32, message = "bqd,bkd->bqk"}> : () -> ()
    %cst_12 = arith.constant dense<0.000000e+00> : vector<2x8x8xf32>
    %19 = tpu.matmul %16, %17, %cst_12 {dimension_numbers = #tpu.dot_dimension_numbers<[2], [2], [1], [1], [0, 0, 0, 1, 1, 1], [0], [0]>} : vector<2x8x32xf32>, vector<2x8x32xf32>, vector<2x8x8xf32> -> vector<2x8x8xf32>
    "tpu.trace_stop"() : () -> ()
    %cst_13 = arith.constant dense<0xFF800000> : vector<2x8xf32>
    %20 = vector.multi_reduction <maximumf>, %19, %cst_13 [2] : vector<2x8x8xf32> to vector<2x8xf32>
    %21 = vector.shape_cast %20 : vector<2x8xf32> to vector<2x8x1xf32>
    %22 = vector.broadcast %21 : vector<2x8x1xf32> to vector<2x8x8xf32>
    %23 = arith.subf %19, %22 : vector<2x8x8xf32>
    %24 = math.exp %23 : vector<2x8x8xf32>
    %cst_14 = arith.constant dense<0.000000e+00> : vector<2x8xf32>
    %25 = vector.multi_reduction <add>, %24, %cst_14 [2] : vector<2x8x8xf32> to vector<2x8xf32>
    %26 = vector.shape_cast %25 : vector<2x8xf32> to vector<2x8x1xf32>
    %27 = tpu.reciprocal %26 : vector<2x8x1xf32> -> vector<2x8x1xf32>
    %28 = vector.broadcast %27 : vector<2x8x1xf32> to vector<2x8x8xf32>
    %29 = arith.mulf %24, %28 : vector<2x8x8xf32>
    "tpu.trace_start"() <{level = 10 : i32, message = "bqk,bkd->bqd"}> : () -> ()
    %cst_15 = arith.constant dense<0.000000e+00> : vector<2x8x32xf32>
    %30 = tpu.matmul %29, %18, %cst_15 {dimension_numbers = #tpu.dot_dimension_numbers<[2], [1], [1], [2], [0, 0, 0, 1, 1, 2], [0], [0]>} : vector<2x8x8xf32>, vector<2x8x32xf32>, vector<2x8x32xf32> -> vector<2x8x32xf32>
    "tpu.trace_stop"() : () -> ()
    %31 = vector.extract_strided_slice %15 {offsets = [0, 0, 32], sizes = [2, 8, 32], strides = [1, 1, 1]} : vector<2x8x192xf32> to vector<2x8x32xf32>
    %32 = vector.extract_strided_slice %15 {offsets = [0, 0, 96], sizes = [2, 8, 32], strides = [1, 1, 1]} : vector<2x8x192xf32> to vector<2x8x32xf32>
    %33 = vector.extract_strided_slice %15 {offsets = [0, 0, 160], sizes = [2, 8, 32], strides = [1, 1, 1]} : vector<2x8x192xf32> to vector<2x8x32xf32>
    "tpu.trace_start"() <{level = 10 : i32, message = "bqd,bkd->bqk"}> : () -> ()
    %cst_16 = arith.constant dense<0.000000e+00> : vector<2x8x8xf32>
    %34 = tpu.matmul %31, %32, %cst_16 {dimension_numbers = #tpu.dot_dimension_numbers<[2], [2], [1], [1], [0, 0, 0, 1, 1, 1], [0], [0]>} : vector<2x8x32xf32>, vector<2x8x32xf32>, vector<2x8x8xf32> -> vector<2x8x8xf32>
    "tpu.trace_stop"() : () -> ()
    %cst_17 = arith.constant dense<0xFF800000> : vector<2x8xf32>
    %35 = vector.multi_reduction <maximumf>, %34, %cst_17 [2] : vector<2x8x8xf32> to vector<2x8xf32>
    %36 = vector.shape_cast %35 : vector<2x8xf32> to vector<2x8x1xf32>
    %37 = vector.broadcast %36 : vector<2x8x1xf32> to vector<2x8x8xf32>
    %38 = arith.subf %34, %37 : vector<2x8x8xf32>
    %39 = math.exp %38 : vector<2x8x8xf32>
    %cst_18 = arith.constant dense<0.000000e+00> : vector<2x8xf32>
    %40 = vector.multi_reduction <add>, %39, %cst_18 [2] : vector<2x8x8xf32> to vector<2x8xf32>
    %41 = vector.shape_cast %40 : vector<2x8xf32> to vector<2x8x1xf32>
    %42 = tpu.reciprocal %41 : vector<2x8x1xf32> -> vector<2x8x1xf32>
    %43 = vector.broadcast %42 : vector<2x8x1xf32> to vector<2x8x8xf32>
    %44 = arith.mulf %39, %43 : vector<2x8x8xf32>
    "tpu.trace_start"() <{level = 10 : i32, message = "bqk,bkd->bqd"}> : () -> ()
    %cst_19 = arith.constant dense<0.000000e+00> : vector<2x8x32xf32>
    %45 = tpu.matmul %44, %33, %cst_19 {dimension_numbers = #tpu.dot_dimension_numbers<[2], [1], [1], [2], [0, 0, 0, 1, 1, 2], [0], [0]>} : vector<2x8x8xf32>, vector<2x8x32xf32>, vector<2x8x32xf32> -> vector<2x8x32xf32>
    "tpu.trace_stop"() : () -> ()
    %46 = tpu.concatenate %30, %45 in 2 : vector<2x8x32xf32>, vector<2x8x32xf32> -> vector<2x8x64xf32>
    %47 = vector.shape_cast %46 : vector<2x8x64xf32> to vector<16x64xf32>
    %c0_20 = arith.constant 0 : index
    %c0_21 = arith.constant 0 : index
    %c0_22 = arith.constant 0 : index
    %48 = vector.load %arg5[%c0_20, %c0_21, %c0_22] : memref<3x64x64xf32, #tpu.memory_space<vmem>>, vector<1x64x64xf32>
    %49 = vector.shape_cast %48 : vector<1x64x64xf32> to vector<64x64xf32>
    %cst_23 = arith.constant dense<0.000000e+00> : vector<16x64xf32>
    %50 = tpu.matmul %47, %49, %cst_23 {dimension_numbers = #tpu.dot_dimension_numbers<[1], [0], [0], [1], [0, 0, 1, 1], [], []>} : vector<16x64xf32>, vector<64x64xf32>, vector<16x64xf32> -> vector<16x64xf32>
    %c0_24 = arith.constant 0 : index
    %c0_25 = arith.constant 0 : index
    %c0_26 = arith.constant 0 : index
    %51 = vector.load %arg6[%c0_24, %c0_25, %c0_26] : memref<3x1x64xf32, #tpu.memory_space<vmem>>, vector<1x1x64xf32>
    %52 = vector.shape_cast %51 : vector<1x1x64xf32> to vector<1x64xf32>
    %53 = vector.broadcast %52 : vector<1x64xf32> to vector<16x64xf32>
    %54 = arith.addf %50, %53 : vector<16x64xf32>
    %c1 = arith.constant 1 : index
    %c0_27 = arith.constant 0 : index
    %c0_28 = arith.constant 0 : index
    %55 = vector.load %arg3[%c1, %c0_27, %c0_28] : memref<3x64x192xf32, #tpu.memory_space<vmem>>, vector<1x64x192xf32>
    %56 = vector.shape_cast %55 : vector<1x64x192xf32> to vector<64x192xf32>
    %cst_29 = arith.constant dense<0.000000e+00> : vector<16x192xf32>
    %57 = tpu.matmul %54, %56, %cst_29 {dimension_numbers = #tpu.dot_dimension_numbers<[1], [0], [0], [1], [0, 0, 1, 1], [], []>} : vector<16x64xf32>, vector<64x192xf32>, vector<16x192xf32> -> vector<16x192xf32>
    %c1_30 = arith.constant 1 : index
    %c0_31 = arith.constant 0 : index
    %c0_32 = arith.constant 0 : index
    %58 = vector.load %arg4[%c1_30, %c0_31, %c0_32] : memref<3x1x192xf32, #tpu.memory_space<vmem>>, vector<1x1x192xf32>
    %59 = vector.shape_cast %58 : vector<1x1x192xf32> to vector<1x192xf32>
    %60 = vector.broadcast %59 : vector<1x192xf32> to vector<16x192xf32>
    %61 = arith.addf %57, %60 : vector<16x192xf32>
    %62 = vector.shape_cast %61 : vector<16x192xf32> to vector<2x8x192xf32>
    %63 = vector.extract_strided_slice %62 {offsets = [0, 0, 0], sizes = [2, 8, 32], strides = [1, 1, 1]} : vector<2x8x192xf32> to vector<2x8x32xf32>
    %64 = vector.extract_strided_slice %62 {offsets = [0, 0, 64], sizes = [2, 8, 32], strides = [1, 1, 1]} : vector<2x8x192xf32> to vector<2x8x32xf32>
    %65 = vector.extract_strided_slice %62 {offsets = [0, 0, 128], sizes = [2, 8, 32], strides = [1, 1, 1]} : vector<2x8x192xf32> to vector<2x8x32xf32>
    "tpu.trace_start"() <{level = 10 : i32, message = "bqd,bkd->bqk"}> : () -> ()
    %cst_33 = arith.constant dense<0.000000e+00> : vector<2x8x8xf32>
    %66 = tpu.matmul %63, %64, %cst_33 {dimension_numbers = #tpu.dot_dimension_numbers<[2], [2], [1], [1], [0, 0, 0, 1, 1, 1], [0], [0]>} : vector<2x8x32xf32>, vector<2x8x32xf32>, vector<2x8x8xf32> -> vector<2x8x8xf32>
    "tpu.trace_stop"() : () -> ()
    %cst_34 = arith.constant dense<0xFF800000> : vector<2x8xf32>
    %67 = vector.multi_reduction <maximumf>, %66, %cst_34 [2] : vector<2x8x8xf32> to vector<2x8xf32>
    %68 = vector.shape_cast %67 : vector<2x8xf32> to vector<2x8x1xf32>
    %69 = vector.broadcast %68 : vector<2x8x1xf32> to vector<2x8x8xf32>
    %70 = arith.subf %66, %69 : vector<2x8x8xf32>
    %71 = math.exp %70 : vector<2x8x8xf32>
    %cst_35 = arith.constant dense<0.000000e+00> : vector<2x8xf32>
    %72 = vector.multi_reduction <add>, %71, %cst_35 [2] : vector<2x8x8xf32> to vector<2x8xf32>
    %73 = vector.shape_cast %72 : vector<2x8xf32> to vector<2x8x1xf32>
    %74 = tpu.reciprocal %73 : vector<2x8x1xf32> -> vector<2x8x1xf32>
    %75 = vector.broadcast %74 : vector<2x8x1xf32> to vector<2x8x8xf32>
    %76 = arith.mulf %71, %75 : vector<2x8x8xf32>
    "tpu.trace_start"() <{level = 10 : i32, message = "bqk,bkd->bqd"}> : () -> ()
    %cst_36 = arith.constant dense<0.000000e+00> : vector<2x8x32xf32>
    %77 = tpu.matmul %76, %65, %cst_36 {dimension_numbers = #tpu.dot_dimension_numbers<[2], [1], [1], [2], [0, 0, 0, 1, 1, 2], [0], [0]>} : vector<2x8x8xf32>, vector<2x8x32xf32>, vector<2x8x32xf32> -> vector<2x8x32xf32>
    "tpu.trace_stop"() : () -> ()
    %78 = vector.extract_strided_slice %62 {offsets = [0, 0, 32], sizes = [2, 8, 32], strides = [1, 1, 1]} : vector<2x8x192xf32> to vector<2x8x32xf32>
    %79 = vector.extract_strided_slice %62 {offsets = [0, 0, 96], sizes = [2, 8, 32], strides = [1, 1, 1]} : vector<2x8x192xf32> to vector<2x8x32xf32>
    %80 = vector.extract_strided_slice %62 {offsets = [0, 0, 160], sizes = [2, 8, 32], strides = [1, 1, 1]} : vector<2x8x192xf32> to vector<2x8x32xf32>
    "tpu.trace_start"() <{level = 10 : i32, message = "bqd,bkd->bqk"}> : () -> ()
    %cst_37 = arith.constant dense<0.000000e+00> : vector<2x8x8xf32>
    %81 = tpu.matmul %78, %79, %cst_37 {dimension_numbers = #tpu.dot_dimension_numbers<[2], [2], [1], [1], [0, 0, 0, 1, 1, 1], [0], [0]>} : vector<2x8x32xf32>, vector<2x8x32xf32>, vector<2x8x8xf32> -> vector<2x8x8xf32>
    "tpu.trace_stop"() : () -> ()
    %cst_38 = arith.constant dense<0xFF800000> : vector<2x8xf32>
    %82 = vector.multi_reduction <maximumf>, %81, %cst_38 [2] : vector<2x8x8xf32> to vector<2x8xf32>
    %83 = vector.shape_cast %82 : vector<2x8xf32> to vector<2x8x1xf32>
    %84 = vector.broadcast %83 : vector<2x8x1xf32> to vector<2x8x8xf32>
    %85 = arith.subf %81, %84 : vector<2x8x8xf32>
    %86 = math.exp %85 : vector<2x8x8xf32>
    %cst_39 = arith.constant dense<0.000000e+00> : vector<2x8xf32>
    %87 = vector.multi_reduction <add>, %86, %cst_39 [2] : vector<2x8x8xf32> to vector<2x8xf32>
    %88 = vector.shape_cast %87 : vector<2x8xf32> to vector<2x8x1xf32>
    %89 = tpu.reciprocal %88 : vector<2x8x1xf32> -> vector<2x8x1xf32>
    %90 = vector.broadcast %89 : vector<2x8x1xf32> to vector<2x8x8xf32>
    %91 = arith.mulf %86, %90 : vector<2x8x8xf32>
    "tpu.trace_start"() <{level = 10 : i32, message = "bqk,bkd->bqd"}> : () -> ()
    %cst_40 = arith.constant dense<0.000000e+00> : vector<2x8x32xf32>
    %92 = tpu.matmul %91, %80, %cst_40 {dimension_numbers = #tpu.dot_dimension_numbers<[2], [1], [1], [2], [0, 0, 0, 1, 1, 2], [0], [0]>} : vector<2x8x8xf32>, vector<2x8x32xf32>, vector<2x8x32xf32> -> vector<2x8x32xf32>
    "tpu.trace_stop"() : () -> ()
    %93 = tpu.concatenate %77, %92 in 2 : vector<2x8x32xf32>, vector<2x8x32xf32> -> vector<2x8x64xf32>
    %94 = vector.shape_cast %93 : vector<2x8x64xf32> to vector<16x64xf32>
    %c1_41 = arith.constant 1 : index
    %c0_42 = arith.constant 0 : index
    %c0_43 = arith.constant 0 : index
    %95 = vector.load %arg5[%c1_41, %c0_42, %c0_43] : memref<3x64x64xf32, #tpu.memory_space<vmem>>, vector<1x64x64xf32>
    %96 = vector.shape_cast %95 : vector<1x64x64xf32> to vector<64x64xf32>
    %cst_44 = arith.constant dense<0.000000e+00> : vector<16x64xf32>
    %97 = tpu.matmul %94, %96, %cst_44 {dimension_numbers = #tpu.dot_dimension_numbers<[1], [0], [0], [1], [0, 0, 1, 1], [], []>} : vector<16x64xf32>, vector<64x64xf32>, vector<16x64xf32> -> vector<16x64xf32>
    %c1_45 = arith.constant 1 : index
    %c0_46 = arith.constant 0 : index
    %c0_47 = arith.constant 0 : index
    %98 = vector.load %arg6[%c1_45, %c0_46, %c0_47] : memref<3x1x64xf32, #tpu.memory_space<vmem>>, vector<1x1x64xf32>
    %99 = vector.shape_cast %98 : vector<1x1x64xf32> to vector<1x64xf32>
    %100 = vector.broadcast %99 : vector<1x64xf32> to vector<16x64xf32>
    %101 = arith.addf %97, %100 : vector<16x64xf32>
    %c2 = arith.constant 2 : index
    %c0_48 = arith.constant 0 : index
    %c0_49 = arith.constant 0 : index
    %102 = vector.load %arg3[%c2, %c0_48, %c0_49] : memref<3x64x192xf32, #tpu.memory_space<vmem>>, vector<1x64x192xf32>
    %103 = vector.shape_cast %102 : vector<1x64x192xf32> to vector<64x192xf32>
    %cst_50 = arith.constant dense<0.000000e+00> : vector<16x192xf32>
    %104 = tpu.matmul %101, %103, %cst_50 {dimension_numbers = #tpu.dot_dimension_numbers<[1], [0], [0], [1], [0, 0, 1, 1], [], []>} : vector<16x64xf32>, vector<64x192xf32>, vector<16x192xf32> -> vector<16x192xf32>
    %c2_51 = arith.constant 2 : index
    %c0_52 = arith.constant 0 : index
    %c0_53 = arith.constant 0 : index
    %105 = vector.load %arg4[%c2_51, %c0_52, %c0_53] : memref<3x1x192xf32, #tpu.memory_space<vmem>>, vector<1x1x192xf32>
    %106 = vector.shape_cast %105 : vector<1x1x192xf32> to vector<1x192xf32>
    %107 = vector.broadcast %106 : vector<1x192xf32> to vector<16x192xf32>
    %108 = arith.addf %104, %107 : vector<16x192xf32>
    %109 = vector.shape_cast %108 : vector<16x192xf32> to vector<2x8x192xf32>
    %110 = vector.extract_strided_slice %109 {offsets = [0, 0, 0], sizes = [2, 8, 32], strides = [1, 1, 1]} : vector<2x8x192xf32> to vector<2x8x32xf32>
    %111 = vector.extract_strided_slice %109 {offsets = [0, 0, 64], sizes = [2, 8, 32], strides = [1, 1, 1]} : vector<2x8x192xf32> to vector<2x8x32xf32>
    %112 = vector.extract_strided_slice %109 {offsets = [0, 0, 128], sizes = [2, 8, 32], strides = [1, 1, 1]} : vector<2x8x192xf32> to vector<2x8x32xf32>
    "tpu.trace_start"() <{level = 10 : i32, message = "bqd,bkd->bqk"}> : () -> ()
    %cst_54 = arith.constant dense<0.000000e+00> : vector<2x8x8xf32>
    %113 = tpu.matmul %110, %111, %cst_54 {dimension_numbers = #tpu.dot_dimension_numbers<[2], [2], [1], [1], [0, 0, 0, 1, 1, 1], [0], [0]>} : vector<2x8x32xf32>, vector<2x8x32xf32>, vector<2x8x8xf32> -> vector<2x8x8xf32>
    "tpu.trace_stop"() : () -> ()
    %cst_55 = arith.constant dense<0xFF800000> : vector<2x8xf32>
    %114 = vector.multi_reduction <maximumf>, %113, %cst_55 [2] : vector<2x8x8xf32> to vector<2x8xf32>
    %115 = vector.shape_cast %114 : vector<2x8xf32> to vector<2x8x1xf32>
    %116 = vector.broadcast %115 : vector<2x8x1xf32> to vector<2x8x8xf32>
    %117 = arith.subf %113, %116 : vector<2x8x8xf32>
    %118 = math.exp %117 : vector<2x8x8xf32>
    %cst_56 = arith.constant dense<0.000000e+00> : vector<2x8xf32>
    %119 = vector.multi_reduction <add>, %118, %cst_56 [2] : vector<2x8x8xf32> to vector<2x8xf32>
    %120 = vector.shape_cast %119 : vector<2x8xf32> to vector<2x8x1xf32>
    %121 = tpu.reciprocal %120 : vector<2x8x1xf32> -> vector<2x8x1xf32>
    %122 = vector.broadcast %121 : vector<2x8x1xf32> to vector<2x8x8xf32>
    %123 = arith.mulf %118, %122 : vector<2x8x8xf32>
    "tpu.trace_start"() <{level = 10 : i32, message = "bqk,bkd->bqd"}> : () -> ()
    %cst_57 = arith.constant dense<0.000000e+00> : vector<2x8x32xf32>
    %124 = tpu.matmul %123, %112, %cst_57 {dimension_numbers = #tpu.dot_dimension_numbers<[2], [1], [1], [2], [0, 0, 0, 1, 1, 2], [0], [0]>} : vector<2x8x8xf32>, vector<2x8x32xf32>, vector<2x8x32xf32> -> vector<2x8x32xf32>
    "tpu.trace_stop"() : () -> ()
    %125 = vector.extract_strided_slice %109 {offsets = [0, 0, 32], sizes = [2, 8, 32], strides = [1, 1, 1]} : vector<2x8x192xf32> to vector<2x8x32xf32>
    %126 = vector.extract_strided_slice %109 {offsets = [0, 0, 96], sizes = [2, 8, 32], strides = [1, 1, 1]} : vector<2x8x192xf32> to vector<2x8x32xf32>
    %127 = vector.extract_strided_slice %109 {offsets = [0, 0, 160], sizes = [2, 8, 32], strides = [1, 1, 1]} : vector<2x8x192xf32> to vector<2x8x32xf32>
    "tpu.trace_start"() <{level = 10 : i32, message = "bqd,bkd->bqk"}> : () -> ()
    %cst_58 = arith.constant dense<0.000000e+00> : vector<2x8x8xf32>
    %128 = tpu.matmul %125, %126, %cst_58 {dimension_numbers = #tpu.dot_dimension_numbers<[2], [2], [1], [1], [0, 0, 0, 1, 1, 1], [0], [0]>} : vector<2x8x32xf32>, vector<2x8x32xf32>, vector<2x8x8xf32> -> vector<2x8x8xf32>
    "tpu.trace_stop"() : () -> ()
    %cst_59 = arith.constant dense<0xFF800000> : vector<2x8xf32>
    %129 = vector.multi_reduction <maximumf>, %128, %cst_59 [2] : vector<2x8x8xf32> to vector<2x8xf32>
    %130 = vector.shape_cast %129 : vector<2x8xf32> to vector<2x8x1xf32>
    %131 = vector.broadcast %130 : vector<2x8x1xf32> to vector<2x8x8xf32>
    %132 = arith.subf %128, %131 : vector<2x8x8xf32>
    %133 = math.exp %132 : vector<2x8x8xf32>
    %cst_60 = arith.constant dense<0.000000e+00> : vector<2x8xf32>
    %134 = vector.multi_reduction <add>, %133, %cst_60 [2] : vector<2x8x8xf32> to vector<2x8xf32>
    %135 = vector.shape_cast %134 : vector<2x8xf32> to vector<2x8x1xf32>
    %136 = tpu.reciprocal %135 : vector<2x8x1xf32> -> vector<2x8x1xf32>
    %137 = vector.broadcast %136 : vector<2x8x1xf32> to vector<2x8x8xf32>
    %138 = arith.mulf %133, %137 : vector<2x8x8xf32>
    "tpu.trace_start"() <{level = 10 : i32, message = "bqk,bkd->bqd"}> : () -> ()
    %cst_61 = arith.constant dense<0.000000e+00> : vector<2x8x32xf32>
    %139 = tpu.matmul %138, %127, %cst_61 {dimension_numbers = #tpu.dot_dimension_numbers<[2], [1], [1], [2], [0, 0, 0, 1, 1, 2], [0], [0]>} : vector<2x8x8xf32>, vector<2x8x32xf32>, vector<2x8x32xf32> -> vector<2x8x32xf32>
    "tpu.trace_stop"() : () -> ()
    %140 = tpu.concatenate %124, %139 in 2 : vector<2x8x32xf32>, vector<2x8x32xf32> -> vector<2x8x64xf32>
    %141 = vector.shape_cast %140 : vector<2x8x64xf32> to vector<16x64xf32>
    %c2_62 = arith.constant 2 : index
    %c0_63 = arith.constant 0 : index
    %c0_64 = arith.constant 0 : index
    %142 = vector.load %arg5[%c2_62, %c0_63, %c0_64] : memref<3x64x64xf32, #tpu.memory_space<vmem>>, vector<1x64x64xf32>
    %143 = vector.shape_cast %142 : vector<1x64x64xf32> to vector<64x64xf32>
    %cst_65 = arith.constant dense<0.000000e+00> : vector<16x64xf32>
    %144 = tpu.matmul %141, %143, %cst_65 {dimension_numbers = #tpu.dot_dimension_numbers<[1], [0], [0], [1], [0, 0, 1, 1], [], []>} : vector<16x64xf32>, vector<64x64xf32>, vector<16x64xf32> -> vector<16x64xf32>
    %c2_66 = arith.constant 2 : index
    %c0_67 = arith.constant 0 : index
    %c0_68 = arith.constant 0 : index
    %145 = vector.load %arg6[%c2_66, %c0_67, %c0_68] : memref<3x1x64xf32, #tpu.memory_space<vmem>>, vector<1x1x64xf32>
    %146 = vector.shape_cast %145 : vector<1x1x64xf32> to vector<1x64xf32>
    %147 = vector.broadcast %146 : vector<1x64xf32> to vector<16x64xf32>
    %148 = arith.addf %144, %147 : vector<16x64xf32>
    %149 = arith.addf %148, %7 : vector<16x64xf32>
    %cst_69 = arith.constant 0.000000e+00 : f32
    %150 = vector.broadcast %cst_69 : f32 to vector<16x64xf32>
    %151 = arith.maximumf %149, %150 : vector<16x64xf32>
    %152 = vector.shape_cast %151 : vector<16x64xf32> to vector<2x8x64xf32>
    %c0_70 = arith.constant 0 : index
    %c0_71 = arith.constant 0 : index
    %153 = vector.load %arg7[%c0_70, %c0_71] : memref<8x64xf32, #tpu.memory_space<vmem>>, vector<8x64xf32>
    %154 = vector.shape_cast %153 : vector<8x64xf32> to vector<1x8x64xf32>
    %155 = vector.broadcast %154 : vector<1x8x64xf32> to vector<2x8x64xf32>
    %156 = arith.mulf %152, %155 : vector<2x8x64xf32>
    %cst_72 = arith.constant dense<0.000000e+00> : vector<2x8xf32>
    %157 = vector.multi_reduction <add>, %156, %cst_72 [2] : vector<2x8x64xf32> to vector<2x8xf32>
    %cst_73 = arith.constant dense<0.000000e+00> : vector<2xf32>
    %158 = vector.multi_reduction <add>, %157, %cst_73 [1] : vector<2x8xf32> to vector<2xf32>
    %159 = vector.shape_cast %158 : vector<2xf32> to vector<2x1xf32>
    %c0_74 = arith.constant 0 : index
    %c0_75 = arith.constant 0 : index
    %160 = vector.load %arg8[%c0_74, %c0_75] : memref<1x1xf32, #tpu.memory_space<vmem>>, vector<1x1xf32>
    %161 = vector.broadcast %160 : vector<1x1xf32> to vector<2x1xf32>
    %162 = arith.addf %159, %161 : vector<2x1xf32>
    %c0_76 = arith.constant 0 : index
    %c0_77 = arith.constant 0 : index
    %163 = vector.load %arg9[%c0_76, %c0_77] : memref<2x1xf32, #tpu.memory_space<vmem>>, vector<2x1xf32>
    tpu.vector_store %arg9[%c0_76, %c0_77], %162 {strides = array<i32>} : memref<2x1xf32, #tpu.memory_space<vmem>>, vector<2x1xf32>,
    return
  }
}

</mosaic_0001>

<llo_original>
// kernel: tpu_custom_call.1
$region0: #{tpu_custom_call.1}
  #allocation0 [shape = 'u32[]', space=smem, size = 0x4, offset = 0x4, fixed_abs, tag = 'smem constant byte address 0x4 - core index']
  #allocation1 [shape = 'u32[144,128]{1,0:T(1,128)}', space=vmem, size = 0x12000, scoped, tag = 'internal scratch']
  #allocation2 [shape = 'f32[1,1]{1,0:T(1,128)S(1)}', space=vmem, size = 0x200, scoped, tag = 'scoped memory for tpu_custom_call.1']
  %s0 = inlined_call_operand.hbm [shape: f32[16,16], index: 0, kind: input, shape index: {}]
  %s1 = inlined_call_operand.hbm [shape: f32[16,128], index: 1, kind: input, shape index: {}]
  %s2 = inlined_call_operand.vmem [shape: f32[1,128], index: 2, kind: input, shape index: {}]
  %s3 = inlined_call_operand.hbm [shape: f32[3,64,192], index: 3, kind: input, shape index: {}]
  %s4 = inlined_call_operand.vmem [shape: f32[3,1,192], index: 4, kind: input, shape index: {}]
  %s5 = inlined_call_operand.hbm [shape: f32[3,64,64], index: 5, kind: input, shape index: {}]
  %s6 = inlined_call_operand.vmem [shape: f32[3,1,64], index: 6, kind: input, shape index: {}]
  %s7 = inlined_call_operand.vmem [shape: f32[8,64], index: 7, kind: input, shape index: {}]
  %s8 = inlined_call_operand.<no memory space> [shape: f32[1,1], index: 8, kind: input, shape index: {}]
  %s9 = inlined_call_operand.vmem [shape: f32[2,1], index: 9, kind: output, shape index: {}]
  %s10 = sld [smem:[#allocation0]]
  $region62: #{tpu_custom_call.1} parent=0
    _
  %s12 = ssub.s32 1, %s10
  %s13 = scalar_select 0, %s12, %s10
  %v14 = vstv %s8
  %15 = vst [vmem:[#allocation2] sm:$0x1] %v14
  $region1: #{tpu_custom_call.1} parent=0
    #allocation3 [shape = 'u8[8192]{0}', space=vmem, size = 0x2000, scoped, tag = 'input window, operand 0, single buffered']
    #allocation4 [shape = 's32[1]{0}', space=sflag, size = 0x4, scoped, tag = 'scoped memory for tpu_custom_call.1']
    #allocation5 [shape = 'u8[8192]{0}', space=vmem, size = 0x2000, scoped, tag = 'input window, operand 1, single buffered']
    #allocation6 [shape = 's32[1]{0}', space=sflag, size = 0x4, scoped, tag = 'scoped memory for tpu_custom_call.1']
    #allocation7 [shape = 'u8[196608]{0}', space=vmem, size = 0x30000, scoped, tag = 'input window, operand 3, single buffered']
    #allocation8 [shape = 'u8[98304]{0}', space=vmem, size = 0x18000, scoped, tag = 'input window, operand 5, single buffered']
    #allocation9 [shape = 's32[1]{0}', space=sflag, size = 0x4, scoped, tag = 'scoped memory for tpu_custom_call.1']
    %16 = vsyncpa [#allocation4], 0
    %17 = vsyncpa [#allocation6], 0
    %18 = vsyncpa [#allocation9], 0
    // Predicated region
    $region2: #{tpu_custom_call.1} parent=1 // pred_check
      _
    $region3: #{tpu_custom_call.1} parent=1 // pred_check_branch
      %20 = sbr.rel (0) target = $region5
    $region4: #{tpu_custom_call.1} parent=1 // pred_region
      %s22 = ssub.s32 256, 256
      %23 = vsyncadd [#allocation4], %s22
      %s24 = sshll.u32 [#allocation3], 4
      %s25 = int_to_ptr.vmem [resolvable:$true] %s24
      %30 = dma.hbm_to_vmem [thread:$0]  %s0, 256, %s25, [#allocation4], 128, 128, 8
    $region5: #{tpu_custom_call.1} parent=1 // pred_fallthru
      _
    // Predicated region
    $region6: #{tpu_custom_call.1} parent=1 // pred_check
      _
    $region7: #{tpu_custom_call.1} parent=1 // pred_check_branch
      %32 = sbr.rel (0) target = $region9
    $region8: #{tpu_custom_call.1} parent=1 // pred_region
      %s34 = ssub.s32 256, 256
      %35 = vsyncadd [#allocation6], %s34
      %s36 = sshll.u32 [#allocation5], 4
      %s37 = int_to_ptr.vmem [resolvable:$true] %s36
      %42 = dma.hbm_to_vmem [thread:$0]  %s1, 256, %s37, [#allocation6], 128, 128, 8
    $region9: #{tpu_custom_call.1} parent=1 // pred_fallthru
      _
    // Predicated region
    $region10: #{tpu_custom_call.1} parent=1 // pred_check
      _
    $region11: #{tpu_custom_call.1} parent=1 // pred_check_branch
      %44 = sbr.rel (0) target = $region13
    $region12: #{tpu_custom_call.1} parent=1 // pred_region
      _
    $region13: #{tpu_custom_call.1} parent=1 // pred_fallthru
      _
    // Predicated region
    $region14: #{tpu_custom_call.1} parent=1 // pred_check
      _
    $region15: #{tpu_custom_call.1} parent=1 // pred_check_branch
      %46 = sbr.rel (0) target = $region17
    $region16: #{tpu_custom_call.1} parent=1 // pred_region
      %s48 = ssub.s32 6144, 6144
      %49 = vsyncadd [#allocation6], %s48
      %s50 = sshll.u32 [#allocation7], 4
      %s51 = int_to_ptr.vmem [resolvable:$true] %s50
      %56 = dma.hbm_to_vmem [thread:$0]  %s3, 6144, %s51, [#allocation6], 256, 256, 16
    $region17: #{tpu_custom_call.1} parent=1 // pred_fallthru
      _
    // Predicated region
    $region18: #{tpu_custom_call.1} parent=1 // pred_check
      _
    $region19: #{tpu_custom_call.1} parent=1 // pred_check_branch
      %58 = sbr.rel (0) target = $region21
    $region20: #{tpu_custom_call.1} parent=1 // pred_region
      _
    $region21: #{tpu_custom_call.1} parent=1 // pred_fallthru
      _
    // Predicated region
    $region22: #{tpu_custom_call.1} parent=1 // pred_check
      _
    $region23: #{tpu_custom_call.1} parent=1 // pred_check_branch
      %60 = sbr.rel (0) target = $region25
    $region24: #{tpu_custom_call.1} parent=1 // pred_region
      %s62 = ssub.s32 3072, 3072
      %63 = vsyncadd [#allocation9], %s62
      %s64 = sshll.u32 [#allocation8], 4
      %s65 = int_to_ptr.vmem [resolvable:$true] %s64
      %70 = dma.hbm_to_vmem [thread:$0]  %s5, 3072, %s65, [#allocation9], 128, 128, 8
    $region25: #{tpu_custom_call.1} parent=1 // pred_fallthru
      _
    // Predicated region
    $region26: #{tpu_custom_call.1} parent=1 // pred_check
      _
    $region27: #{tpu_custom_call.1} parent=1 // pred_check_branch
      %72 = sbr.rel (0) target = $region29
    $region28: #{tpu_custom_call.1} parent=1 // pred_region
      _
    $region29: #{tpu_custom_call.1} parent=1 // pred_fallthru
      _
    // Predicated region
    $region30: #{tpu_custom_call.1} parent=1 // pred_check
      _
    $region31: #{tpu_custom_call.1} parent=1 // pred_check_branch
      %74 = sbr.rel (0) target = $region33
    $region32: #{tpu_custom_call.1} parent=1 // pred_region
      _
    $region33: #{tpu_custom_call.1} parent=1 // pred_fallthru
      _
    // Predicated region
    $region34: #{tpu_custom_call.1} parent=1 // pred_check
      _
    $region35: #{tpu_custom_call.1} parent=1 // pred_check_branch
      %76 = sbr.rel (0) target = $region37
    $region36: #{tpu_custom_call.1} parent=1 // pred_region
      _
    $region37: #{tpu_custom_call.1} parent=1 // pred_fallthru
      _
    // Predicated region
    $region38: #{tpu_custom_call.1} parent=1 // pred_check
      _
    $region39: #{tpu_custom_call.1} parent=1 // pred_check_branch
      %78 = sbr.rel (0) target = $region41
    $region40: #{tpu_custom_call.1} parent=1 // pred_region
      %79 = dma.done [#allocation4], 256
    $region41: #{tpu_custom_call.1} parent=1 // pred_fallthru
      _
    // Predicated region
    $region42: #{tpu_custom_call.1} parent=1 // pred_check
      _
    $region43: #{tpu_custom_call.1} parent=1 // pred_check_branch
      %81 = sbr.rel (0) target = $region45
    $region44: #{tpu_custom_call.1} parent=1 // pred_region
      %82 = dma.done [#allocation6], 256
    $region45: #{tpu_custom_call.1} parent=1 // pred_fallthru
      _
    // Predicated region
    $region46: #{tpu_custom_call.1} parent=1 // pred_check
      _
    $region47: #{tpu_custom_call.1} parent=1 // pred_check_branch
      %84 = sbr.rel (0) target = $region49
    $region48: #{tpu_custom_call.1} parent=1 // pred_region
      %85 = dma.done [#allocation6], 6144
    $region49: #{tpu_custom_call.1} parent=1 // pred_fallthru
      _
    // Predicated region
    $region50: #{tpu_custom_call.1} parent=1 // pred_check
      _
    $region51: #{tpu_custom_call.1} parent=1 // pred_check_branch
      %87 = sbr.rel (0) target = $region53
    $region52: #{tpu_custom_call.1} parent=1 // pred_region
      %88 = dma.done [#allocation9], 3072
    $region53: #{tpu_custom_call.1} parent=1 // pred_fallthru
      _
    %v89 = vld [vmem:[#allocation3] sm:$0xff]
    %v90 = vld [vmem:[#allocation3 + $0x8] sm:$0xff]
    %v91 = vld [vmem:[#allocation5] sm:$0xff]
    %v92 = vld [vmem:[#allocation5 + $0x8] sm:$0xff]
    %v93 = vld [vmem:[%s2] sm:$0x1]
    %v95 = vlaneseq
    %v96 = vshrl.u32 %v95, 7
    %v97 = vsub.s32 0, %v96
    %v98 = vrot.slane %v93, %v97
    %vm100 = vcmask 130048
    %v102 = vsel %vm100, %v89, 0
    %v105 = vsel %vm100, %v90, 0
    %107 = vmatprep.subr.mxu0 0.0
    %108 = vmatpush1.msra.mxu0 %v91
    %109 = vmatprep.subr.mxu0 0.0
    %110 = vmatpush1.msra.mxu0 %v92
    %111 = vmatprep.subr.mxu0 0.0
    %112 = vmatpush1.msra.mxu0 0.0
    %113 = vmatprep.subr.mxu0 0.0
    %114 = vmatpush1.msra.mxu0 0.0
    %115 = vmatprep.subr.mxu0 0.0
    %116 = vmatpush1.msra.mxu0 0.0
    %117 = vmatprep.subr.mxu0 0.0
    %118 = vmatpush1.msra.mxu0 0.0
    %119 = vmatprep.subr.mxu0 0.0
    %120 = vmatpush1.msra.mxu0 0.0
    %121 = vmatprep.subr.mxu0 0.0
    %122 = vmatpush1.msra.mxu0 0.0
    %123 = vmatprep.subr.mxu0 0.0
    %124 = vmatpush1.msra.mxu0 0.0
    %125 = vmatprep.subr.mxu0 0.0
    %126 = vmatpush1.msra.mxu0 0.0
    %127 = vmatprep.subr.mxu0 0.0
    %128 = vmatpush1.msra.mxu0 0.0
    %129 = vmatprep.subr.mxu0 0.0
    %130 = vmatpush1.msra.mxu0 0.0
    %131 = vmatprep.subr.mxu0 0.0
    %132 = vmatpush1.msra.mxu0 0.0
    %133 = vmatprep.subr.mxu0 0.0
    %134 = vmatpush1.msra.mxu0 0.0
    %135 = vmatprep.subr.mxu0 0.0
    %136 = vmatpush1.msra.mxu0 0.0
    %137 = vmatprep.subr.mxu0 0.0
    %138 = vmatpush1.msra.mxu0 0.0
    %139 = vmatprep.subr.mxu0 0.0
    %140 = vmatpush1.msra.mxu0 0.0
    %141 = vmatprep.subr.mxu0 0.0
    %142 = vmatpush1.msra.mxu0 0.0
    %143 = vmatprep.subr.mxu0 0.0
    %144 = vmatpush1.msra.mxu0 0.0
    %145 = vmatprep.subr.mxu0 0.0
    %146 = vmatpush1.msra.mxu0 0.0
    %147 = vmatprep.subr.mxu0 0.0
    %148 = vmatpush1.msra.mxu0 0.0
    %149 = vmatprep.subr.mxu0 0.0
    %150 = vmatpush1.msra.mxu0 0.0
    %151 = vmatprep.subr.mxu0 0.0
    %152 = vmatpush1.msra.mxu0 0.0
    %153 = vmatprep.subr.mxu0 0.0
    %154 = vmatpush1.msra.mxu0 0.0
    %155 = vmatprep.subr.mxu0 0.0
    %156 = vmatpush1.msra.mxu0 0.0
    %157 = vmatprep.subr.mxu0 0.0
    %158 = vmatpush1.msra.mxu0 0.0
    %159 = vmatprep.subr.mxu0 0.0
    %160 = vmatpush1.msra.mxu0 0.0
    %161 = vmatprep.subr.mxu0 0.0
    %162 = vmatpush1.msra.mxu0 0.0
    %163 = vmatprep.subr.mxu0 0.0
    %164 = vmatpush1.msra.mxu0 0.0
    %165 = vmatprep.subr.mxu0 0.0
    %166 = vmatpush1.msra.mxu0 0.0
    %167 = vmatprep.subr.mxu0 0.0
    %168 = vmatpush1.msra.mxu0 0.0
    %169 = vmatprep.subr.mxu0 0.0
    %170 = vmatpush1.msra.mxu0 0.0
    %171 = vmatprep.mubr.f32.mxu0 0.0
    %172 = vmatmul.mubr.f32.gmra.mrb[0].mxu0 %v102
    %v173 = vpop.f32.mrb[0].mxu0
    %v174 = vadd.f32 %v98, %v173
    %v175 = vpop.f32.mrb[0].mxu0
    %176 = vmatprep.mubr.f32.mxu0 0.0
    %177 = vmatmul.mubr.f32.gmra.mrb[0].mxu0 %v105
    %v178 = vpop.f32.mrb[0].mxu0
    %v179 = vadd.f32 %v98, %v178
    %v180 = vpop.f32.mrb[0].mxu0
    %181 = vdwg.mxu0
    %v182 = vld [vmem:[#allocation7] sm:$0xff]
    %v183 = vld [vmem:[#allocation7 + $0x8] sm:$0xff]
    %v184 = vld [vmem:[#allocation7 + $0x10] sm:$0xff]
    %v185 = vld [vmem:[#allocation7 + $0x18] sm:$0xff]
    %v186 = vld [vmem:[#allocation7 + $0x20] sm:$0xff]
    %v187 = vld [vmem:[#allocation7 + $0x28] sm:$0xff]
    %v188 = vld [vmem:[#allocation7 + $0x30] sm:$0xff]
    %v189 = vld [vmem:[#allocation7 + $0x38] sm:$0xff]
    %v190 = vld [vmem:[#allocation7 + $0x40] sm:$0xff]
    %v191 = vld [vmem:[#allocation7 + $0x48] sm:$0xff]
    %v192 = vld [vmem:[#allocation7 + $0x50] sm:$0xff]
    %v193 = vld [vmem:[#allocation7 + $0x58] sm:$0xff]
    %v194 = vld [vmem:[#allocation7 + $0x60] sm:$0xff]
    %v195 = vld [vmem:[#allocation7 + $0x68] sm:$0xff]
    %v196 = vld [vmem:[#allocation7 + $0x70] sm:$0xff]
    %v197 = vld [vmem:[#allocation7 + $0x78] sm:$0xff]
    %v198 = vld [vmem:[%s4] sm:$0x3]
    %v200 = vlaneseq
    %v201 = vshrl.u32 %v200, 7
    %v202 = vsub.s32 0, %v201
    %v203 = vrot.slane %v198, %v202
    %v204 = vlaneseq
    %v205 = vshrl.u32 %v204, 7
    %v206 = vsub.s32 1, %v205
    %v207 = vrot.slane %v198, %v206
    %vm210 = vcmask 523264
    %v212 = vsel %vm210, %v174, 0
    %v215 = vsel %vm210, %v179, 0
    %217 = vmatprep.subr.mxu0 %v183
    %218 = vmatpush1.msra.mxu0 %v182
    %219 = vmatprep.subr.mxu0 %v185
    %220 = vmatpush1.msra.mxu0 %v184
    %221 = vmatprep.subr.mxu0 %v187
    %222 = vmatpush1.msra.mxu0 %v186
    %223 = vmatprep.subr.mxu0 %v189
    %224 = vmatpush1.msra.mxu0 %v188
    %225 = vmatprep.subr.mxu0 %v191
    %226 = vmatpush1.msra.mxu0 %v190
    %227 = vmatprep.subr.mxu0 %v193
    %228 = vmatpush1.msra.mxu0 %v192
    %229 = vmatprep.subr.mxu0 %v195
    %230 = vmatpush1.msra.mxu0 %v194
    %231 = vmatprep.subr.mxu0 %v197
    %232 = vmatpush1.msra.mxu0 %v196
    %233 = vmatprep.subr.mxu0 0.0
    %234 = vmatpush1.msra.mxu0 0.0
    %235 = vmatprep.subr.mxu0 0.0
    %236 = vmatpush1.msra.mxu0 0.0
    %237 = vmatprep.subr.mxu0 0.0
    %238 = vmatpush1.msra.mxu0 0.0
    %239 = vmatprep.subr.mxu0 0.0
    %240 = vmatpush1.msra.mxu0 0.0
    %241 = vmatprep.subr.mxu0 0.0
    %242 = vmatpush1.msra.mxu0 0.0
    %243 = vmatprep.subr.mxu0 0.0
    %244 = vmatpush1.msra.mxu0 0.0
    %245 = vmatprep.subr.mxu0 0.0
    %246 = vmatpush1.msra.mxu0 0.0
    %247 = vmatprep.subr.mxu0 0.0
    %248 = vmatpush1.msra.mxu0 0.0
    %249 = vmatprep.subr.mxu0 0.0
    %250 = vmatpush1.msra.mxu0 0.0
    %251 = vmatprep.subr.mxu0 0.0
    %252 = vmatpush1.msra.mxu0 0.0
    %253 = vmatprep.subr.mxu0 0.0
    %254 = vmatpush1.msra.mxu0 0.0
    %255 = vmatprep.subr.mxu0 0.0
    %256 = vmatpush1.msra.mxu0 0.0
    %257 = vmatprep.subr.mxu0 0.0
    %258 = vmatpush1.msra.mxu0 0.0
    %259 = vmatprep.subr.mxu0 0.0
    %260 = vmatpush1.msra.mxu0 0.0
    %261 = vmatprep.subr.mxu0 0.0
    %262 = vmatpush1.msra.mxu0 0.0
    %263 = vmatprep.subr.mxu0 0.0
    %264 = vmatpush1.msra.mxu0 0.0
    %265 = vmatprep.subr.mxu0 0.0
    %266 = vmatpush1.msra.mxu0 0.0
    %267 = vmatprep.subr.mxu0 0.0
    %268 = vmatpush1.msra.mxu0 0.0
    %269 = vmatprep.subr.mxu0 0.0
    %270 = vmatpush1.msra.mxu0 0.0
    %271 = vmatprep.subr.mxu0 0.0
    %272 = vmatpush1.msra.mxu0 0.0
    %273 = vmatprep.subr.mxu0 0.0
    %274 = vmatpush1.msra.mxu0 0.0
    %275 = vmatprep.subr.mxu0 0.0
    %276 = vmatpush1.msra.mxu0 0.0
    %277 = vmatprep.subr.mxu0 0.0
    %278 = vmatpush1.msra.mxu0 0.0
    %279 = vmatprep.subr.mxu0 0.0
    %280 = vmatpush1.msra.mxu0 0.0
    %281 = vmatprep.mubr.f32.mxu0 0.0
    %282 = vmatmul.mubr.f32.gmra.mrb[0].mxu0 %v212
    %v283 = vpop.f32.mrb[0].mxu0
    %v284 = vadd.f32 %v203, %v283
    %v285 = vpop.f32.mrb[0].mxu0
    %v286 = vadd.f32 %v207, %v285
    %287 = vmatprep.mubr.f32.mxu0 0.0
    %288 = vmatmul.mubr.f32.gmra.mrb[0].mxu0 %v215
    %v289 = vpop.f32.mrb[0].mxu0
    %v290 = vadd.f32 %v203, %v289
    %v291 = vpop.f32.mrb[0].mxu0
    %v292 = vadd.f32 %v207, %v291
    %293 = vdwg.mxu0
    %295 = vrot.lane.b32.xlu0 %v284, 64
    %v296 = vpop.permute.xlu0 %295
    %vm297 = vcmask 261120
    %v298 = vsel %vm297, %v284, 0
    %v300 = vsel %vm297, %v296, 0
    %302 = vmatprep.subr.mxu0 0.0
    %303 = vmatpush1.xpose.msra.mxu0 %v300
    %304 = vmatprep.subr.mxu0 0.0
    %305 = vmatpush1.xpose.msra.mxu0 0.0
    %306 = vmatprep.subr.mxu0 0.0
    %307 = vmatpush1.xpose.msra.mxu0 0.0
    %308 = vmatprep.subr.mxu0 0.0
    %309 = vmatpush1.xpose.msra.mxu0 0.0
    %310 = vmatprep.subr.mxu0 0.0
    %311 = vmatpush1.xpose.msra.mxu0 0.0
    %312 = vmatprep.subr.mxu0 0.0
    %313 = vmatpush1.xpose.msra.mxu0 0.0
    %314 = vmatprep.subr.mxu0 0.0
    %315 = vmatpush1.xpose.msra.mxu0 0.0
    %316 = vmatprep.subr.mxu0 0.0
    %317 = vmatpush1.xpose.msra.mxu0 0.0
    %318 = vmatprep.subr.mxu0 0.0
    %319 = vmatpush1.xpose.msra.mxu0 0.0
    %320 = vmatprep.subr.mxu0 0.0
    %321 = vmatpush1.xpose.msra.mxu0 0.0
    %322 = vmatprep.subr.mxu0 0.0
    %323 = vmatpush1.xpose.msra.mxu0 0.0
    %324 = vmatprep.subr.mxu0 0.0
    %325 = vmatpush1.xpose.msra.mxu0 0.0
    %326 = vmatprep.subr.mxu0 0.0
    %327 = vmatpush1.xpose.msra.mxu0 0.0
    %328 = vmatprep.subr.mxu0 0.0
    %329 = vmatpush1.xpose.msra.mxu0 0.0
    %330 = vmatprep.subr.mxu0 0.0
    %331 = vmatpush1.xpose.msra.mxu0 0.0
    %332 = vmatprep.subr.mxu0 0.0
    %333 = vmatpush1.xpose.msra.mxu0 0.0
    %334 = vmatprep.subr.mxu0 0.0
    %335 = vmatpush1.xpose.msra.mxu0 0.0
    %336 = vmatprep.subr.mxu0 0.0
    %337 = vmatpush1.xpose.msra.mxu0 0.0
    %338 = vmatprep.subr.mxu0 0.0
    %339 = vmatpush1.xpose.msra.mxu0 0.0
    %340 = vmatprep.subr.mxu0 0.0
    %341 = vmatpush1.xpose.msra.mxu0 0.0
    %342 = vmatprep.subr.mxu0 0.0
    %343 = vmatpush1.xpose.msra.mxu0 0.0
    %344 = vmatprep.subr.mxu0 0.0
    %345 = vmatpush1.xpose.msra.mxu0 0.0
    %346 = vmatprep.subr.mxu0 0.0
    %347 = vmatpush1.xpose.msra.mxu0 0.0
    %348 = vmatprep.subr.mxu0 0.0
    %349 = vmatpush1.xpose.msra.mxu0 0.0
    %350 = vmatprep.subr.mxu0 0.0
    %351 = vmatpush1.xpose.msra.mxu0 0.0
    %352 = vmatprep.subr.mxu0 0.0
    %353 = vmatpush1.xpose.msra.mxu0 0.0
    %354 = vmatprep.subr.mxu0 0.0
    %355 = vmatpush1.xpose.msra.mxu0 0.0
    %356 = vmatprep.subr.mxu0 0.0
    %357 = vmatpush1.xpose.msra.mxu0 0.0
    %358 = vmatprep.subr.mxu0 0.0
    %359 = vmatpush1.xpose.msra.mxu0 0.0
    %360 = vmatprep.subr.mxu0 0.0
    %361 = vmatpush1.xpose.msra.mxu0 0.0
    %362 = vmatprep.subr.mxu0 0.0
    %363 = vmatpush1.xpose.msra.mxu0 0.0
    %364 = vmatprep.subr.mxu0 0.0
    %365 = vmatpush1.xpose.msra.mxu0 0.0
    %366 = vmatprep.mubr.f32.mxu0 0.0
    %367 = vmatmul.mubr.f32.gmra.mrb[0].mxu0 %v298
    %v368 = vpop.f32.mrb[0].mxu0
    %v369 = vadd.f32 0.0, %v368
    %v370 = vpop.f32.mrb[0].mxu0
    %371 = vdwg.mxu0
    %373 = vrot.lane.b32.xlu0 %v290, 64
    %v374 = vpop.permute.xlu0 %373
    %v375 = vsel %vm297, %v290, 0
    %v377 = vsel %vm297, %v374, 0
    %379 = vmatprep.subr.mxu0 0.0
    %380 = vmatpush1.xpose.msra.mxu0 %v377
    %381 = vmatprep.subr.mxu0 0.0
    %382 = vmatpush1.xpose.msra.mxu0 0.0
    %383 = vmatprep.subr.mxu0 0.0
    %384 = vmatpush1.xpose.msra.mxu0 0.0
    %385 = vmatprep.subr.mxu0 0.0
    %386 = vmatpush1.xpose.msra.mxu0 0.0
    %387 = vmatprep.subr.mxu0 0.0
    %388 = vmatpush1.xpose.msra.mxu0 0.0
    %389 = vmatprep.subr.mxu0 0.0
    %390 = vmatpush1.xpose.msra.mxu0 0.0
    %391 = vmatprep.subr.mxu0 0.0
    %392 = vmatpush1.xpose.msra.mxu0 0.0
    %393 = vmatprep.subr.mxu0 0.0
    %394 = vmatpush1.xpose.msra.mxu0 0.0
    %395 = vmatprep.subr.mxu0 0.0
    %396 = vmatpush1.xpose.msra.mxu0 0.0
    %397 = vmatprep.subr.mxu0 0.0
    %398 = vmatpush1.xpose.msra.mxu0 0.0
    %399 = vmatprep.subr.mxu0 0.0
    %400 = vmatpush1.xpose.msra.mxu0 0.0
    %401 = vmatprep.subr.mxu0 0.0
    %402 = vmatpush1.xpose.msra.mxu0 0.0
    %403 = vmatprep.subr.mxu0 0.0
    %404 = vmatpush1.xpose.msra.mxu0 0.0
    %405 = vmatprep.subr.mxu0 0.0
    %406 = vmatpush1.xpose.msra.mxu0 0.0
    %407 = vmatprep.subr.mxu0 0.0
    %408 = vmatpush1.xpose.msra.mxu0 0.0
    %409 = vmatprep.subr.mxu0 0.0
    %410 = vmatpush1.xpose.msra.mxu0 0.0
    %411 = vmatprep.subr.mxu0 0.0
    %412 = vmatpush1.xpose.msra.mxu0 0.0
    %413 = vmatprep.subr.mxu0 0.0
    %414 = vmatpush1.xpose.msra.mxu0 0.0
    %415 = vmatprep.subr.mxu0 0.0
    %416 = vmatpush1.xpose.msra.mxu0 0.0
    %417 = vmatprep.subr.mxu0 0.0
    %418 = vmatpush1.xpose.msra.mxu0 0.0
    %419 = vmatprep.subr.mxu0 0.0
    %420 = vmatpush1.xpose.msra.mxu0 0.0
    %421 = vmatprep.subr.mxu0 0.0
    %422 = vmatpush1.xpose.msra.mxu0 0.0
    %423 = vmatprep.subr.mxu0 0.0
    %424 = vmatpush1.xpose.msra.mxu0 0.0
    %425 = vmatprep.subr.mxu0 0.0
    %426 = vmatpush1.xpose.msra.mxu0 0.0
    %427 = vmatprep.subr.mxu0 0.0
    %428 = vmatpush1.xpose.msra.mxu0 0.0
    %429 = vmatprep.subr.mxu0 0.0
    %430 = vmatpush1.xpose.msra.mxu0 0.0
    %431 = vmatprep.subr.mxu0 0.0
    %432 = vmatpush1.xpose.msra.mxu0 0.0
    %433 = vmatprep.subr.mxu0 0.0
    %434 = vmatpush1.xpose.msra.mxu0 0.0
    %435 = vmatprep.subr.mxu0 0.0
    %436 = vmatpush1.xpose.msra.mxu0 0.0
    %437 = vmatprep.subr.mxu0 0.0
    %438 = vmatpush1.xpose.msra.mxu0 0.0
    %439 = vmatprep.subr.mxu0 0.0
    %440 = vmatpush1.xpose.msra.mxu0 0.0
    %441 = vmatprep.subr.mxu0 0.0
    %442 = vmatpush1.xpose.msra.mxu0 0.0
    %443 = vmatprep.mubr.f32.mxu0 0.0
    %444 = vmatmul.mubr.f32.gmra.mrb[0].mxu0 %v375
    %v445 = vpop.f32.mrb[0].mxu0
    %v446 = vadd.f32 0.0, %v445
    %v447 = vpop.f32.mrb[0].mxu0
    %448 = vdwg.mxu0
    %vm449 = vcmask 64512
    %v450 = vsel %vm449, %v369, -inf
    %451 = vmax.xlane.f32.xlu0 %v450
    %v452 = vpop.xlane.xlu0 %451
    %v453 = vsel %vm449, %v446, -inf
    %454 = vmax.xlane.f32.xlu0 %v453
    %v455 = vpop.xlane.xlu0 %454
    %v456 = vsub.f32 %v369, %v452
    %v457 = vsub.f32 %v446, %v455
    %v458 = vmul.f32 %v456, 1.442695
    %v459 = vpow.pop %v458
    %v460 = vmul.f32 %v457, 1.442695
    %v461 = vpow.pop %v460
    %v462 = vsel %vm449, %v459, 0.0
    %463 = vadd.xlane.f32.xlu0 %v462
    %v464 = vpop.xlane.xlu0 %463
    %v465 = vsel %vm449, %v461, 0.0
    %466 = vadd.xlane.f32.xlu0 %v465
    %v467 = vpop.xlane.xlu0 %466
    %v468 = vrcp.pop %v464
    %v469 = vrcp.pop %v467
    %v470 = vmul.f32 %v459, %v468
    %v471 = vmul.f32 %v461, %v469
    %v473 = vsel %vm449, %v470, 0
    %475 = vmatprep.subr.mxu0 0.0
    %476 = vmatpush1.msra.mxu0 %v286
    %477 = vmatprep.subr.mxu0 0.0
    %478 = vmatpush1.msra.mxu0 0.0
    %479 = vmatprep.subr.mxu0 0.0
    %480 = vmatpush1.msra.mxu0 0.0
    %481 = vmatprep.subr.mxu0 0.0
    %482 = vmatpush1.msra.mxu0 0.0
    %483 = vmatprep.subr.mxu0 0.0
    %484 = vmatpush1.msra.mxu0 0.0
    %485 = vmatprep.subr.mxu0 0.0
    %486 = vmatpush1.msra.mxu0 0.0
    %487 = vmatprep.subr.mxu0 0.0
    %488 = vmatpush1.msra.mxu0 0.0
    %489 = vmatprep.subr.mxu0 0.0
    %490 = vmatpush1.msra.mxu0 0.0
    %491 = vmatprep.subr.mxu0 0.0
    %492 = vmatpush1.msra.mxu0 0.0
    %493 = vmatprep.subr.mxu0 0.0
    %494 = vmatpush1.msra.mxu0 0.0
    %495 = vmatprep.subr.mxu0 0.0
    %496 = vmatpush1.msra.mxu0 0.0
    %497 = vmatprep.subr.mxu0 0.0
    %498 = vmatpush1.msra.mxu0 0.0
    %499 = vmatprep.subr.mxu0 0.0
    %500 = vmatpush1.msra.mxu0 0.0
    %501 = vmatprep.subr.mxu0 0.0
    %502 = vmatpush1.msra.mxu0 0.0
    %503 = vmatprep.subr.mxu0 0.0
    %504 = vmatpush1.msra.mxu0 0.0
    %505 = vmatprep.subr.mxu0 0.0
    %506 = vmatpush1.msra.mxu0 0.0
    %507 = vmatprep.subr.mxu0 0.0
    %508 = vmatpush1.msra.mxu0 0.0
    %509 = vmatprep.subr.mxu0 0.0
    %510 = vmatpush1.msra.mxu0 0.0
    %511 = vmatprep.subr.mxu0 0.0
    %512 = vmatpush1.msra.mxu0 0.0
    %513 = vmatprep.subr.mxu0 0.0
    %514 = vmatpush1.msra.mxu0 0.0
    %515 = vmatprep.subr.mxu0 0.0
    %516 = vmatpush1.msra.mxu0 0.0
    %517 = vmatprep.subr.mxu0 0.0
    %518 = vmatpush1.msra.mxu0 0.0
    %519 = vmatprep.subr.mxu0 0.0
    %520 = vmatpush1.msra.mxu0 0.0
    %521 = vmatprep.subr.mxu0 0.0
    %522 = vmatpush1.msra.mxu0 0.0
    %523 = vmatprep.subr.mxu0 0.0
    %524 = vmatpush1.msra.mxu0 0.0
    %525 = vmatprep.subr.mxu0 0.0
    %526 = vmatpush1.msra.mxu0 0.0
    %527 = vmatprep.subr.mxu0 0.0
    %528 = vmatpush1.msra.mxu0 0.0
    %529 = vmatprep.subr.mxu0 0.0
    %530 = vmatpush1.msra.mxu0 0.0
    %531 = vmatprep.subr.mxu0 0.0
    %532 = vmatpush1.msra.mxu0 0.0
    %533 = vmatprep.subr.mxu0 0.0
    %534 = vmatpush1.msra.mxu0 0.0
    %535 = vmatprep.subr.mxu0 0.0
    %536 = vmatpush1.msra.mxu0 0.0
    %537 = vmatprep.subr.mxu0 0.0
    %538 = vmatpush1.msra.mxu0 0.0
    %539 = vmatprep.mubr.f32.mxu0 0.0
    %540 = vmatmul.mubr.f32.gmra.mrb[0].mxu0 %v473
    %v541 = vpop.f32.mrb[0].mxu0
    %v542 = vadd.f32 0.0, %v541
    %v543 = vpop.f32.mrb[0].mxu0
    %544 = vdwg.mxu0
    %v546 = vsel %vm449, %v471, 0
    %548 = vmatprep.subr.mxu0 0.0
    %549 = vmatpush1.msra.mxu0 %v292
    %550 = vmatprep.subr.mxu0 0.0
    %551 = vmatpush1.msra.mxu0 0.0
    %552 = vmatprep.subr.mxu0 0.0
    %553 = vmatpush1.msra.mxu0 0.0
    %554 = vmatprep.subr.mxu0 0.0
    %555 = vmatpush1.msra.mxu0 0.0
    %556 = vmatprep.subr.mxu0 0.0
    %557 = vmatpush1.msra.mxu0 0.0
    %558 = vmatprep.subr.mxu0 0.0
    %559 = vmatpush1.msra.mxu0 0.0
    %560 = vmatprep.subr.mxu0 0.0
    %561 = vmatpush1.msra.mxu0 0.0
    %562 = vmatprep.subr.mxu0 0.0
    %563 = vmatpush1.msra.mxu0 0.0
    %564 = vmatprep.subr.mxu0 0.0
    %565 = vmatpush1.msra.mxu0 0.0
    %566 = vmatprep.subr.mxu0 0.0
    %567 = vmatpush1.msra.mxu0 0.0
    %568 = vmatprep.subr.mxu0 0.0
    %569 = vmatpush1.msra.mxu0 0.0
    %570 = vmatprep.subr.mxu0 0.0
    %571 = vmatpush1.msra.mxu0 0.0
    %572 = vmatprep.subr.mxu0 0.0
    %573 = vmatpush1.msra.mxu0 0.0
    %574 = vmatprep.subr.mxu0 0.0
    %575 = vmatpush1.msra.mxu0 0.0
    %576 = vmatprep.subr.mxu0 0.0
    %577 = vmatpush1.msra.mxu0 0.0
    %578 = vmatprep.subr.mxu0 0.0
    %579 = vmatpush1.msra.mxu0 0.0
    %580 = vmatprep.subr.mxu0 0.0
    %581 = vmatpush1.msra.mxu0 0.0
    %582 = vmatprep.subr.mxu0 0.0
    %583 = vmatpush1.msra.mxu0 0.0
    %584 = vmatprep.subr.mxu0 0.0
    %585 = vmatpush1.msra.mxu0 0.0
    %586 = vmatprep.subr.mxu0 0.0
    %587 = vmatpush1.msra.mxu0 0.0
    %588 = vmatprep.subr.mxu0 0.0
    %589 = vmatpush1.msra.mxu0 0.0
    %590 = vmatprep.subr.mxu0 0.0
    %591 = vmatpush1.msra.mxu0 0.0
    %592 = vmatprep.subr.mxu0 0.0
    %593 = vmatpush1.msra.mxu0 0.0
    %594 = vmatprep.subr.mxu0 0.0
    %595 = vmatpush1.msra.mxu0 0.0
    %596 = vmatprep.subr.mxu0 0.0
    %597 = vmatpush1.msra.mxu0 0.0
    %598 = vmatprep.subr.mxu0 0.0
    %599 = vmatpush1.msra.mxu0 0.0
    %600 = vmatprep.subr.mxu0 0.0
    %601 = vmatpush1.msra.mxu0 0.0
    %602 = vmatprep.subr.mxu0 0.0
    %603 = vmatpush1.msra.mxu0 0.0
    %604 = vmatprep.subr.mxu0 0.0
    %605 = vmatpush1.msra.mxu0 0.0
    %606 = vmatprep.subr.mxu0 0.0
    %607 = vmatpush1.msra.mxu0 0.0
    %608 = vmatprep.subr.mxu0 0.0
    %609 = vmatpush1.msra.mxu0 0.0
    %610 = vmatprep.subr.mxu0 0.0
    %611 = vmatpush1.msra.mxu0 0.0
    %612 = vmatprep.mubr.f32.mxu0 0.0
    %613 = vmatmul.mubr.f32.gmra.mrb[0].mxu0 %v546
    %v614 = vpop.f32.mrb[0].mxu0
    %v615 = vadd.f32 0.0, %v614
    %v616 = vpop.f32.mrb[0].mxu0
    %617 = vdwg.mxu0
    %618 = vrot.lane.b32.xlu0 %v284, 96
    %v619 = vpop.permute.xlu0 %618
    %620 = vrot.lane.b32.xlu0 %v284, 32
    %v621 = vpop.permute.xlu0 %620
    %v622 = vsel %vm297, %v619, 0
    %v624 = vsel %vm297, %v621, 0
    %626 = vmatprep.subr.mxu0 0.0
    %627 = vmatpush1.xpose.msra.mxu0 %v624
    %628 = vmatprep.subr.mxu0 0.0
    %629 = vmatpush1.xpose.msra.mxu0 0.0
    %630 = vmatprep.subr.mxu0 0.0
    %631 = vmatpush1.xpose.msra.mxu0 0.0
    %632 = vmatprep.subr.mxu0 0.0
    %633 = vmatpush1.xpose.msra.mxu0 0.0
    %634 = vmatprep.subr.mxu0 0.0
    %635 = vmatpush1.xpose.msra.mxu0 0.0
    %636 = vmatprep.subr.mxu0 0.0
    %637 = vmatpush1.xpose.msra.mxu0 0.0
    %638 = vmatprep.subr.mxu0 0.0
    %639 = vmatpush1.xpose.msra.mxu0 0.0
    %640 = vmatprep.subr.mxu0 0.0
    %641 = vmatpush1.xpose.msra.mxu0 0.0
    %642 = vmatprep.subr.mxu0 0.0
    %643 = vmatpush1.xpose.msra.mxu0 0.0
    %644 = vmatprep.subr.mxu0 0.0
    %645 = vmatpush1.xpose.msra.mxu0 0.0
    %646 = vmatprep.subr.mxu0 0.0
    %647 = vmatpush1.xpose.msra.mxu0 0.0
    %648 = vmatprep.subr.mxu0 0.0
    %649 = vmatpush1.xpose.msra.mxu0 0.0
    %650 = vmatprep.subr.mxu0 0.0
    %651 = vmatpush1.xpose.msra.mxu0 0.0
    %652 = vmatprep.subr.mxu0 0.0
    %653 = vmatpush1.xpose.msra.mxu0 0.0
    %654 = vmatprep.subr.mxu0 0.0
    %655 = vmatpush1.xpose.msra.mxu0 0.0
    %656 = vmatprep.subr.mxu0 0.0
    %657 = vmatpush1.xpose.msra.mxu0 0.0
    %658 = vmatprep.subr.mxu0 0.0
    %659 = vmatpush1.xpose.msra.mxu0 0.0
    %660 = vmatprep.subr.mxu0 0.0
    %661 = vmatpush1.xpose.msra.mxu0 0.0
    %662 = vmatprep.subr.mxu0 0.0
    %663 = vmatpush1.xpose.msra.mxu0 0.0
    %664 = vmatprep.subr.mxu0 0.0
    %665 = vmatpush1.xpose.msra.mxu0 0.0
    %666 = vmatprep.subr.mxu0 0.0
    %667 = vmatpush1.xpose.msra.mxu0 0.0
    %668 = vmatprep.subr.mxu0 0.0
    %669 = vmatpush1.xpose.msra.mxu0 0.0
    %670 = vmatprep.subr.mxu0 0.0
    %671 = vmatpush1.xpose.msra.mxu0 0.0
    %672 = vmatprep.subr.mxu0 0.0
    %673 = vmatpush1.xpose.msra.mxu0 0.0
    %674 = vmatprep.subr.mxu0 0.0
    %675 = vmatpush1.xpose.msra.mxu0 0.0
    %676 = vmatprep.subr.mxu0 0.0
    %677 = vmatpush1.xpose.msra.mxu0 0.0
    %678 = vmatprep.subr.mxu0 0.0
    %679 = vmatpush1.xpose.msra.mxu0 0.0
    %680 = vmatprep.subr.mxu0 0.0
    %681 = vmatpush1.xpose.msra.mxu0 0.0
    %682 = vmatprep.subr.mxu0 0.0
    %683 = vmatpush1.xpose.msra.mxu0 0.0
    %684 = vmatprep.subr.mxu0 0.0
    %685 = vmatpush1.xpose.msra.mxu0 0.0
    %686 = vmatprep.subr.mxu0 0.0
    %687 = vmatpush1.xpose.msra.mxu0 0.0
    %688 = vmatprep.subr.mxu0 0.0
    %689 = vmatpush1.xpose.msra.mxu0 0.0
    %690 = vmatprep.mubr.f32.mxu0 0.0
    %691 = vmatmul.mubr.f32.gmra.mrb[0].mxu0 %v622
    %v692 = vpop.f32.mrb[0].mxu0
    %v693 = vadd.f32 0.0, %v692
    %v694 = vpop.f32.mrb[0].mxu0
    %695 = vdwg.mxu0
    %696 = vrot.lane.b32.xlu0 %v290, 96
    %v697 = vpop.permute.xlu0 %696
    %698 = vrot.lane.b32.xlu0 %v290, 32
    %v699 = vpop.permute.xlu0 %698
    %v700 = vsel %vm297, %v697, 0
    %v702 = vsel %vm297, %v699, 0
    %704 = vmatprep.subr.mxu0 0.0
    %705 = vmatpush1.xpose.msra.mxu0 %v702
    %706 = vmatprep.subr.mxu0 0.0
    %707 = vmatpush1.xpose.msra.mxu0 0.0
    %708 = vmatprep.subr.mxu0 0.0
    %709 = vmatpush1.xpose.msra.mxu0 0.0
    %710 = vmatprep.subr.mxu0 0.0
    %711 = vmatpush1.xpose.msra.mxu0 0.0
    %712 = vmatprep.subr.mxu0 0.0
    %713 = vmatpush1.xpose.msra.mxu0 0.0
    %714 = vmatprep.subr.mxu0 0.0
    %715 = vmatpush1.xpose.msra.mxu0 0.0
    %716 = vmatprep.subr.mxu0 0.0
    %717 = vmatpush1.xpose.msra.mxu0 0.0
    %718 = vmatprep.subr.mxu0 0.0
    %719 = vmatpush1.xpose.msra.mxu0 0.0
    %720 = vmatprep.subr.mxu0 0.0
    %721 = vmatpush1.xpose.msra.mxu0 0.0
    %722 = vmatprep.subr.mxu0 0.0
    %723 = vmatpush1.xpose.msra.mxu0 0.0
    %724 = vmatprep.subr.mxu0 0.0
    %725 = vmatpush1.xpose.msra.mxu0 0.0
    %726 = vmatprep.subr.mxu0 0.0
    %727 = vmatpush1.xpose.msra.mxu0 0.0
    %728 = vmatprep.subr.mxu0 0.0
    %729 = vmatpush1.xpose.msra.mxu0 0.0
    %730 = vmatprep.subr.mxu0 0.0
    %731 = vmatpush1.xpose.msra.mxu0 0.0
    %732 = vmatprep.subr.mxu0 0.0
    %733 = vmatpush1.xpose.msra.mxu0 0.0
    %734 = vmatprep.subr.mxu0 0.0
    %735 = vmatpush1.xpose.msra.mxu0 0.0
    %736 = vmatprep.subr.mxu0 0.0
    %737 = vmatpush1.xpose.msra.mxu0 0.0
    %738 = vmatprep.subr.mxu0 0.0
    %739 = vmatpush1.xpose.msra.mxu0 0.0
    %740 = vmatprep.subr.mxu0 0.0
    %741 = vmatpush1.xpose.msra.mxu0 0.0
    %742 = vmatprep.subr.mxu0 0.0
    %743 = vmatpush1.xpose.msra.mxu0 0.0
    %744 = vmatprep.subr.mxu0 0.0
    %745 = vmatpush1.xpose.msra.mxu0 0.0
    %746 = vmatprep.subr.mxu0 0.0
    %747 = vmatpush1.xpose.msra.mxu0 0.0
    %748 = vmatprep.subr.mxu0 0.0
    %749 = vmatpush1.xpose.msra.mxu0 0.0
    %750 = vmatprep.subr.mxu0 0.0
    %751 = vmatpush1.xpose.msra.mxu0 0.0
    %752 = vmatprep.subr.mxu0 0.0
    %753 = vmatpush1.xpose.msra.mxu0 0.0
    %754 = vmatprep.subr.mxu0 0.0
    %755 = vmatpush1.xpose.msra.mxu0 0.0
    %756 = vmatprep.subr.mxu0 0.0
    %757 = vmatpush1.xpose.msra.mxu0 0.0
    %758 = vmatprep.subr.mxu0 0.0
    %759 = vmatpush1.xpose.msra.mxu0 0.0
    %760 = vmatprep.subr.mxu0 0.0
    %761 = vmatpush1.xpose.msra.mxu0 0.0
    %762 = vmatprep.subr.mxu0 0.0
    %763 = vmatpush1.xpose.msra.mxu0 0.0
    %764 = vmatprep.subr.mxu0 0.0
    %765 = vmatpush1.xpose.msra.mxu0 0.0
    %766 = vmatprep.subr.mxu0 0.0
    %767 = vmatpush1.xpose.msra.mxu0 0.0
    %768 = vmatprep.mubr.f32.mxu0 0.0
    %769 = vmatmul.mubr.f32.gmra.mrb[0].mxu0 %v700
    %v770 = vpop.f32.mrb[0].mxu0
    %v771 = vadd.f32 0.0, %v770
    %v772 = vpop.f32.mrb[0].mxu0
    %773 = vdwg.mxu0
    %v774 = vsel %vm449, %v693, -inf
    %775 = vmax.xlane.f32.xlu0 %v774
    %v776 = vpop.xlane.xlu0 %775
    %v777 = vsel %vm449, %v771, -inf
    %778 = vmax.xlane.f32.xlu0 %v777
    %v779 = vpop.xlane.xlu0 %778
    %v780 = vsub.f32 %v693, %v776
    %v781 = vsub.f32 %v771, %v779
    %v782 = vmul.f32 %v780, 1.442695
    %v783 = vpow.pop %v782
    %v784 = vmul.f32 %v781, 1.442695
    %v785 = vpow.pop %v784
    %v786 = vsel %vm449, %v783, 0.0
    %787 = vadd.xlane.f32.xlu0 %v786
    %v788 = vpop.xlane.xlu0 %787
    %v789 = vsel %vm449, %v785, 0.0
    %790 = vadd.xlane.f32.xlu0 %v789
    %v791 = vpop.xlane.xlu0 %790
    %v792 = vrcp.pop %v788
    %v793 = vrcp.pop %v791
    %v794 = vmul.f32 %v783, %v792
    %v795 = vmul.f32 %v785, %v793
    %797 = vrot.lane.b32.xlu0 %v286, 96
    %v798 = vpop.permute.xlu0 %797
    %v801 = vsel %vm449, %v794, 0
    %803 = vmatprep.subr.mxu0 0.0
    %804 = vmatpush1.msra.mxu0 %v798
    %805 = vmatprep.subr.mxu0 0.0
    %806 = vmatpush1.msra.mxu0 0.0
    %807 = vmatprep.subr.mxu0 0.0
    %808 = vmatpush1.msra.mxu0 0.0
    %809 = vmatprep.subr.mxu0 0.0
    %810 = vmatpush1.msra.mxu0 0.0
    %811 = vmatprep.subr.mxu0 0.0
    %812 = vmatpush1.msra.mxu0 0.0
    %813 = vmatprep.subr.mxu0 0.0
    %814 = vmatpush1.msra.mxu0 0.0
    %815 = vmatprep.subr.mxu0 0.0
    %816 = vmatpush1.msra.mxu0 0.0
    %817 = vmatprep.subr.mxu0 0.0
    %818 = vmatpush1.msra.mxu0 0.0
    %819 = vmatprep.subr.mxu0 0.0
    %820 = vmatpush1.msra.mxu0 0.0
    %821 = vmatprep.subr.mxu0 0.0
    %822 = vmatpush1.msra.mxu0 0.0
    %823 = vmatprep.subr.mxu0 0.0
    %824 = vmatpush1.msra.mxu0 0.0
    %825 = vmatprep.subr.mxu0 0.0
    %826 = vmatpush1.msra.mxu0 0.0
    %827 = vmatprep.subr.mxu0 0.0
    %828 = vmatpush1.msra.mxu0 0.0
    %829 = vmatprep.subr.mxu0 0.0
    %830 = vmatpush1.msra.mxu0 0.0
    %831 = vmatprep.subr.mxu0 0.0
    %832 = vmatpush1.msra.mxu0 0.0
    %833 = vmatprep.subr.mxu0 0.0
    %834 = vmatpush1.msra.mxu0 0.0
    %835 = vmatprep.subr.mxu0 0.0
    %836 = vmatpush1.msra.mxu0 0.0
    %837 = vmatprep.subr.mxu0 0.0
    %838 = vmatpush1.msra.mxu0 0.0
    %839 = vmatprep.subr.mxu0 0.0
    %840 = vmatpush1.msra.mxu0 0.0
    %841 = vmatprep.subr.mxu0 0.0
    %842 = vmatpush1.msra.mxu0 0.0
    %843 = vmatprep.subr.mxu0 0.0
    %844 = vmatpush1.msra.mxu0 0.0
    %845 = vmatprep.subr.mxu0 0.0
    %846 = vmatpush1.msra.mxu0 0.0
    %847 = vmatprep.subr.mxu0 0.0
    %848 = vmatpush1.msra.mxu0 0.0
    %849 = vmatprep.subr.mxu0 0.0
    %850 = vmatpush1.msra.mxu0 0.0
    %851 = vmatprep.subr.mxu0 0.0
    %852 = vmatpush1.msra.mxu0 0.0
    %853 = vmatprep.subr.mxu0 0.0
    %854 = vmatpush1.msra.mxu0 0.0
    %855 = vmatprep.subr.mxu0 0.0
    %856 = vmatpush1.msra.mxu0 0.0
    %857 = vmatprep.subr.mxu0 0.0
    %858 = vmatpush1.msra.mxu0 0.0
    %859 = vmatprep.subr.mxu0 0.0
    %860 = vmatpush1.msra.mxu0 0.0
    %861 = vmatprep.subr.mxu0 0.0
    %862 = vmatpush1.msra.mxu0 0.0
    %863 = vmatprep.subr.mxu0 0.0
    %864 = vmatpush1.msra.mxu0 0.0
    %865 = vmatprep.subr.mxu0 0.0
    %866 = vmatpush1.msra.mxu0 0.0
    %867 = vmatprep.mubr.f32.mxu0 0.0
    %868 = vmatmul.mubr.f32.gmra.mrb[0].mxu0 %v801
    %v869 = vpop.f32.mrb[0].mxu0
    %v870 = vadd.f32 0.0, %v869
    %v871 = vpop.f32.mrb[0].mxu0
    %872 = vdwg.mxu0
    %874 = vrot.lane.b32.xlu0 %v292, 96
    %v875 = vpop.permute.xlu0 %874
    %v878 = vsel %vm449, %v795, 0
    %880 = vmatprep.subr.mxu0 0.0
    %881 = vmatpush1.msra.mxu0 %v875
    %882 = vmatprep.subr.mxu0 0.0
    %883 = vmatpush1.msra.mxu0 0.0
    %884 = vmatprep.subr.mxu0 0.0
    %885 = vmatpush1.msra.mxu0 0.0
    %886 = vmatprep.subr.mxu0 0.0
    %887 = vmatpush1.msra.mxu0 0.0
    %888 = vmatprep.subr.mxu0 0.0
    %889 = vmatpush1.msra.mxu0 0.0
    %890 = vmatprep.subr.mxu0 0.0
    %891 = vmatpush1.msra.mxu0 0.0
    %892 = vmatprep.subr.mxu0 0.0
    %893 = vmatpush1.msra.mxu0 0.0
    %894 = vmatprep.subr.mxu0 0.0
    %895 = vmatpush1.msra.mxu0 0.0
    %896 = vmatprep.subr.mxu0 0.0
    %897 = vmatpush1.msra.mxu0 0.0
    %898 = vmatprep.subr.mxu0 0.0
    %899 = vmatpush1.msra.mxu0 0.0
    %900 = vmatprep.subr.mxu0 0.0
    %901 = vmatpush1.msra.mxu0 0.0
    %902 = vmatprep.subr.mxu0 0.0
    %903 = vmatpush1.msra.mxu0 0.0
    %904 = vmatprep.subr.mxu0 0.0
    %905 = vmatpush1.msra.mxu0 0.0
    %906 = vmatprep.subr.mxu0 0.0
    %907 = vmatpush1.msra.mxu0 0.0
    %908 = vmatprep.subr.mxu0 0.0
    %909 = vmatpush1.msra.mxu0 0.0
    %910 = vmatprep.subr.mxu0 0.0
    %911 = vmatpush1.msra.mxu0 0.0
    %912 = vmatprep.subr.mxu0 0.0
    %913 = vmatpush1.msra.mxu0 0.0
    %914 = vmatprep.subr.mxu0 0.0
    %915 = vmatpush1.msra.mxu0 0.0
    %916 = vmatprep.subr.mxu0 0.0
    %917 = vmatpush1.msra.mxu0 0.0
    %918 = vmatprep.subr.mxu0 0.0
    %919 = vmatpush1.msra.mxu0 0.0
    %920 = vmatprep.subr.mxu0 0.0
    %921 = vmatpush1.msra.mxu0 0.0
    %922 = vmatprep.subr.mxu0 0.0
    %923 = vmatpush1.msra.mxu0 0.0
    %924 = vmatprep.subr.mxu0 0.0
    %925 = vmatpush1.msra.mxu0 0.0
    %926 = vmatprep.subr.mxu0 0.0
    %927 = vmatpush1.msra.mxu0 0.0
    %928 = vmatprep.subr.mxu0 0.0
    %929 = vmatpush1.msra.mxu0 0.0
    %930 = vmatprep.subr.mxu0 0.0
    %931 = vmatpush1.msra.mxu0 0.0
    %932 = vmatprep.subr.mxu0 0.0
    %933 = vmatpush1.msra.mxu0 0.0
    %934 = vmatprep.subr.mxu0 0.0
    %935 = vmatpush1.msra.mxu0 0.0
    %936 = vmatprep.subr.mxu0 0.0
    %937 = vmatpush1.msra.mxu0 0.0
    %938 = vmatprep.subr.mxu0 0.0
    %939 = vmatpush1.msra.mxu0 0.0
    %940 = vmatprep.subr.mxu0 0.0
    %941 = vmatpush1.msra.mxu0 0.0
    %942 = vmatprep.subr.mxu0 0.0
    %943 = vmatpush1.msra.mxu0 0.0
    %944 = vmatprep.mubr.f32.mxu0 0.0
    %945 = vmatmul.mubr.f32.gmra.mrb[0].mxu0 %v878
    %v946 = vpop.f32.mrb[0].mxu0
    %v947 = vadd.f32 0.0, %v946
    %v948 = vpop.f32.mrb[0].mxu0
    %949 = vdwg.mxu0
    %952 = vrot.lane.b32.xlu0 %v870, 32
    %v953 = vpop.permute.xlu0 %952
    %954 = vrot.lane.b32.xlu0 %v947, 32
    %v955 = vpop.permute.xlu0 %954
    %v958 = vsel %vm297, %v542, %v953
    %v959 = vsel %vm297, %v615, %v955
    %v960 = vld [vmem:[#allocation8] sm:$0xff]
    %v961 = vld [vmem:[#allocation8 + $0x8] sm:$0xff]
    %v962 = vld [vmem:[#allocation8 + $0x10] sm:$0xff]
    %v963 = vld [vmem:[#allocation8 + $0x18] sm:$0xff]
    %v964 = vld [vmem:[#allocation8 + $0x20] sm:$0xff]
    %v965 = vld [vmem:[#allocation8 + $0x28] sm:$0xff]
    %v966 = vld [vmem:[#allocation8 + $0x30] sm:$0xff]
    %v967 = vld [vmem:[#allocation8 + $0x38] sm:$0xff]
    %v968 = vld [vmem:[%s6] sm:$0x1]
    %v970 = vlaneseq
    %v971 = vshrl.u32 %v970, 7
    %v972 = vsub.s32 0, %v971
    %v973 = vrot.slane %v968, %v972
    %v976 = vsel %vm210, %v958, 0
    %v979 = vsel %vm210, %v959, 0
    %981 = vmatprep.subr.mxu0 0.0
    %982 = vmatpush1.msra.mxu0 %v960
    %983 = vmatprep.subr.mxu0 0.0
    %984 = vmatpush1.msra.mxu0 %v961
    %985 = vmatprep.subr.mxu0 0.0
    %986 = vmatpush1.msra.mxu0 %v962
    %987 = vmatprep.subr.mxu0 0.0
    %988 = vmatpush1.msra.mxu0 %v963
    %989 = vmatprep.subr.mxu0 0.0
    %990 = vmatpush1.msra.mxu0 %v964
    %991 = vmatprep.subr.mxu0 0.0
    %992 = vmatpush1.msra.mxu0 %v965
    %993 = vmatprep.subr.mxu0 0.0
    %994 = vmatpush1.msra.mxu0 %v966
    %995 = vmatprep.subr.mxu0 0.0
    %996 = vmatpush1.msra.mxu0 %v967
    %997 = vmatprep.subr.mxu0 0.0
    %998 = vmatpush1.msra.mxu0 0.0
    %999 = vmatprep.subr.mxu0 0.0
    %1000 = vmatpush1.msra.mxu0 0.0
    %1001 = vmatprep.subr.mxu0 0.0
    %1002 = vmatpush1.msra.mxu0 0.0
    %1003 = vmatprep.subr.mxu0 0.0
    %1004 = vmatpush1.msra.mxu0 0.0
    %1005 = vmatprep.subr.mxu0 0.0
    %1006 = vmatpush1.msra.mxu0 0.0
    %1007 = vmatprep.subr.mxu0 0.0
    %1008 = vmatpush1.msra.mxu0 0.0
    %1009 = vmatprep.subr.mxu0 0.0
    %1010 = vmatpush1.msra.mxu0 0.0
    %1011 = vmatprep.subr.mxu0 0.0
    %1012 = vmatpush1.msra.mxu0 0.0
    %1013 = vmatprep.subr.mxu0 0.0
    %1014 = vmatpush1.msra.mxu0 0.0
    %1015 = vmatprep.subr.mxu0 0.0
    %1016 = vmatpush1.msra.mxu0 0.0
    %1017 = vmatprep.subr.mxu0 0.0
    %1018 = vmatpush1.msra.mxu0 0.0
    %1019 = vmatprep.subr.mxu0 0.0
    %1020 = vmatpush1.msra.mxu0 0.0
    %1021 = vmatprep.subr.mxu0 0.0
    %1022 = vmatpush1.msra.mxu0 0.0
    %1023 = vmatprep.subr.mxu0 0.0
    %1024 = vmatpush1.msra.mxu0 0.0
    %1025 = vmatprep.subr.mxu0 0.0
    %1026 = vmatpush1.msra.mxu0 0.0
    %1027 = vmatprep.subr.mxu0 0.0
    %1028 = vmatpush1.msra.mxu0 0.0
    %1029 = vmatprep.subr.mxu0 0.0
    %1030 = vmatpush1.msra.mxu0 0.0
    %1031 = vmatprep.subr.mxu0 0.0
    %1032 = vmatpush1.msra.mxu0 0.0
    %1033 = vmatprep.subr.mxu0 0.0
    %1034 = vmatpush1.msra.mxu0 0.0
    %1035 = vmatprep.subr.mxu0 0.0
    %1036 = vmatpush1.msra.mxu0 0.0
    %1037 = vmatprep.subr.mxu0 0.0
    %1038 = vmatpush1.msra.mxu0 0.0
    %1039 = vmatprep.subr.mxu0 0.0
    %1040 = vmatpush1.msra.mxu0 0.0
    %1041 = vmatprep.subr.mxu0 0.0
    %1042 = vmatpush1.msra.mxu0 0.0
    %1043 = vmatprep.subr.mxu0 0.0
    %1044 = vmatpush1.msra.mxu0 0.0
    %1045 = vmatprep.mubr.f32.mxu0 0.0
    %1046 = vmatmul.mubr.f32.gmra.mrb[0].mxu0 %v976
    %v1047 = vpop.f32.mrb[0].mxu0
    %v1048 = vadd.f32 %v973, %v1047
    %v1049 = vpop.f32.mrb[0].mxu0
    %1050 = vmatprep.mubr.f32.mxu0 0.0
    %1051 = vmatmul.mubr.f32.gmra.mrb[0].mxu0 %v979
    %v1052 = vpop.f32.mrb[0].mxu0
    %v1053 = vadd.f32 %v973, %v1052
    %v1054 = vpop.f32.mrb[0].mxu0
    %1055 = vdwg.mxu0
    %s1056 = scalar_lea.vmem [#allocation7], 128
    %v1057 = vld [vmem:[%s1056] sm:$0xff]
    %v1058 = vld [vmem:[%s1056 + $0x8] sm:$0xff]
    %v1059 = vld [vmem:[%s1056 + $0x10] sm:$0xff]
    %v1060 = vld [vmem:[%s1056 + $0x18] sm:$0xff]
    %v1061 = vld [vmem:[%s1056 + $0x20] sm:$0xff]
    %v1062 = vld [vmem:[%s1056 + $0x28] sm:$0xff]
    %v1063 = vld [vmem:[%s1056 + $0x30] sm:$0xff]
    %v1064 = vld [vmem:[%s1056 + $0x38] sm:$0xff]
    %v1065 = vld [vmem:[%s1056 + $0x40] sm:$0xff]
    %v1066 = vld [vmem:[%s1056 + $0x48] sm:$0xff]
    %v1067 = vld [vmem:[%s1056 + $0x50] sm:$0xff]
    %v1068 = vld [vmem:[%s1056 + $0x58] sm:$0xff]
    %v1069 = vld [vmem:[%s1056 + $0x60] sm:$0xff]
    %v1070 = vld [vmem:[%s1056 + $0x68] sm:$0xff]
    %v1071 = vld [vmem:[%s1056 + $0x70] sm:$0xff]
    %v1072 = vld [vmem:[%s1056 + $0x78] sm:$0xff]
    %s1073 = scalar_lea.vmem %s4, 2
    %v1074 = vld [vmem:[%s1073] sm:$0x3]
    %v1076 = vlaneseq
    %v1077 = vshrl.u32 %v1076, 7
    %v1078 = vsub.s32 0, %v1077
    %v1079 = vrot.slane %v1074, %v1078
    %v1080 = vlaneseq
    %v1081 = vshrl.u32 %v1080, 7
    %v1082 = vsub.s32 1, %v1081
    %v1083 = vrot.slane %v1074, %v1082
    %v1087 = vsel %vm210, %v1048, 0
    %v1090 = vsel %vm210, %v1053, 0
    %1092 = vmatprep.subr.mxu0 %v1058
    %1093 = vmatpush1.msra.mxu0 %v1057
    %1094 = vmatprep.subr.mxu0 %v1060
    %1095 = vmatpush1.msra.mxu0 %v1059
    %1096 = vmatprep.subr.mxu0 %v1062
    %1097 = vmatpush1.msra.mxu0 %v1061
    %1098 = vmatprep.subr.mxu0 %v1064
    %1099 = vmatpush1.msra.mxu0 %v1063
    %1100 = vmatprep.subr.mxu0 %v1066
    %1101 = vmatpush1.msra.mxu0 %v1065
    %1102 = vmatprep.subr.mxu0 %v1068
    %1103 = vmatpush1.msra.mxu0 %v1067
    %1104 = vmatprep.subr.mxu0 %v1070
    %1105 = vmatpush1.msra.mxu0 %v1069
    %1106 = vmatprep.subr.mxu0 %v1072
    %1107 = vmatpush1.msra.mxu0 %v1071
    %1108 = vmatprep.subr.mxu0 0.0
    %1109 = vmatpush1.msra.mxu0 0.0
    %1110 = vmatprep.subr.mxu0 0.0
    %1111 = vmatpush1.msra.mxu0 0.0
    %1112 = vmatprep.subr.mxu0 0.0
    %1113 = vmatpush1.msra.mxu0 0.0
    %1114 = vmatprep.subr.mxu0 0.0
    %1115 = vmatpush1.msra.mxu0 0.0
    %1116 = vmatprep.subr.mxu0 0.0
    %1117 = vmatpush1.msra.mxu0 0.0
    %1118 = vmatprep.subr.mxu0 0.0
    %1119 = vmatpush1.msra.mxu0 0.0
    %1120 = vmatprep.subr.mxu0 0.0
    %1121 = vmatpush1.msra.mxu0 0.0
    %1122 = vmatprep.subr.mxu0 0.0
    %1123 = vmatpush1.msra.mxu0 0.0
    %1124 = vmatprep.subr.mxu0 0.0
    %1125 = vmatpush1.msra.mxu0 0.0
    %1126 = vmatprep.subr.mxu0 0.0
    %1127 = vmatpush1.msra.mxu0 0.0
    %1128 = vmatprep.subr.mxu0 0.0
    %1129 = vmatpush1.msra.mxu0 0.0
    %1130 = vmatprep.subr.mxu0 0.0
    %1131 = vmatpush1.msra.mxu0 0.0
    %1132 = vmatprep.subr.mxu0 0.0
    %1133 = vmatpush1.msra.mxu0 0.0
    %1134 = vmatprep.subr.mxu0 0.0
    %1135 = vmatpush1.msra.mxu0 0.0
    %1136 = vmatprep.subr.mxu0 0.0
    %1137 = vmatpush1.msra.mxu0 0.0
    %1138 = vmatprep.subr.mxu0 0.0
    %1139 = vmatpush1.msra.mxu0 0.0
    %1140 = vmatprep.subr.mxu0 0.0
    %1141 = vmatpush1.msra.mxu0 0.0
    %1142 = vmatprep.subr.mxu0 0.0
    %1143 = vmatpush1.msra.mxu0 0.0
    %1144 = vmatprep.subr.mxu0 0.0
    %1145 = vmatpush1.msra.mxu0 0.0
    %1146 = vmatprep.subr.mxu0 0.0
    %1147 = vmatpush1.msra.mxu0 0.0
    %1148 = vmatprep.subr.mxu0 0.0
    %1149 = vmatpush1.msra.mxu0 0.0
    %1150 = vmatprep.subr.mxu0 0.0
    %1151 = vmatpush1.msra.mxu0 0.0
    %1152 = vmatprep.subr.mxu0 0.0
    %1153 = vmatpush1.msra.mxu0 0.0
    %1154 = vmatprep.subr.mxu0 0.0
    %1155 = vmatpush1.msra.mxu0 0.0
    %1156 = vmatprep.mubr.f32.mxu0 0.0
    %1157 = vmatmul.mubr.f32.gmra.mrb[0].mxu0 %v1087
    %v1158 = vpop.f32.mrb[0].mxu0
    %v1159 = vadd.f32 %v1079, %v1158
    %v1160 = vpop.f32.mrb[0].mxu0
    %v1161 = vadd.f32 %v1083, %v1160
    %1162 = vmatprep.mubr.f32.mxu0 0.0
    %1163 = vmatmul.mubr.f32.gmra.mrb[0].mxu0 %v1090
    %v1164 = vpop.f32.mrb[0].mxu0
    %v1165 = vadd.f32 %v1079, %v1164
    %v1166 = vpop.f32.mrb[0].mxu0
    %v1167 = vadd.f32 %v1083, %v1166
    %1168 = vdwg.mxu0
    %1170 = vrot.lane.b32.xlu0 %v1159, 64
    %v1171 = vpop.permute.xlu0 %1170
    %v1172 = vsel %vm297, %v1159, 0
    %v1174 = vsel %vm297, %v1171, 0
    %1176 = vmatprep.subr.mxu0 0.0
    %1177 = vmatpush1.xpose.msra.mxu0 %v1174
    %1178 = vmatprep.subr.mxu0 0.0
    %1179 = vmatpush1.xpose.msra.mxu0 0.0
    %1180 = vmatprep.subr.mxu0 0.0
    %1181 = vmatpush1.xpose.msra.mxu0 0.0
    %1182 = vmatprep.subr.mxu0 0.0
    %1183 = vmatpush1.xpose.msra.mxu0 0.0
    %1184 = vmatprep.subr.mxu0 0.0
    %1185 = vmatpush1.xpose.msra.mxu0 0.0
    %1186 = vmatprep.subr.mxu0 0.0
    %1187 = vmatpush1.xpose.msra.mxu0 0.0
    %1188 = vmatprep.subr.mxu0 0.0
    %1189 = vmatpush1.xpose.msra.mxu0 0.0
    %1190 = vmatprep.subr.mxu0 0.0
    %1191 = vmatpush1.xpose.msra.mxu0 0.0
    %1192 = vmatprep.subr.mxu0 0.0
    %1193 = vmatpush1.xpose.msra.mxu0 0.0
    %1194 = vmatprep.subr.mxu0 0.0
    %1195 = vmatpush1.xpose.msra.mxu0 0.0
    %1196 = vmatprep.subr.mxu0 0.0
    %1197 = vmatpush1.xpose.msra.mxu0 0.0
    %1198 = vmatprep.subr.mxu0 0.0
    %1199 = vmatpush1.xpose.msra.mxu0 0.0
    %1200 = vmatprep.subr.mxu0 0.0
    %1201 = vmatpush1.xpose.msra.mxu0 0.0
    %1202 = vmatprep.subr.mxu0 0.0
    %1203 = vmatpush1.xpose.msra.mxu0 0.0
    %1204 = vmatprep.subr.mxu0 0.0
    %1205 = vmatpush1.xpose.msra.mxu0 0.0
    %1206 = vmatprep.subr.mxu0 0.0
    %1207 = vmatpush1.xpose.msra.mxu0 0.0
    %1208 = vmatprep.subr.mxu0 0.0
    %1209 = vmatpush1.xpose.msra.mxu0 0.0
    %1210 = vmatprep.subr.mxu0 0.0
    %1211 = vmatpush1.xpose.msra.mxu0 0.0
    %1212 = vmatprep.subr.mxu0 0.0
    %1213 = vmatpush1.xpose.msra.mxu0 0.0
    %1214 = vmatprep.subr.mxu0 0.0
    %1215 = vmatpush1.xpose.msra.mxu0 0.0
    %1216 = vmatprep.subr.mxu0 0.0
    %1217 = vmatpush1.xpose.msra.mxu0 0.0
    %1218 = vmatprep.subr.mxu0 0.0
    %1219 = vmatpush1.xpose.msra.mxu0 0.0
    %1220 = vmatprep.subr.mxu0 0.0
    %1221 = vmatpush1.xpose.msra.mxu0 0.0
    %1222 = vmatprep.subr.mxu0 0.0
    %1223 = vmatpush1.xpose.msra.mxu0 0.0
    %1224 = vmatprep.subr.mxu0 0.0
    %1225 = vmatpush1.xpose.msra.mxu0 0.0
    %1226 = vmatprep.subr.mxu0 0.0
    %1227 = vmatpush1.xpose.msra.mxu0 0.0
    %1228 = vmatprep.subr.mxu0 0.0
    %1229 = vmatpush1.xpose.msra.mxu0 0.0
    %1230 = vmatprep.subr.mxu0 0.0
    %1231 = vmatpush1.xpose.msra.mxu0 0.0
    %1232 = vmatprep.subr.mxu0 0.0
    %1233 = vmatpush1.xpose.msra.mxu0 0.0
    %1234 = vmatprep.subr.mxu0 0.0
    %1235 = vmatpush1.xpose.msra.mxu0 0.0
    %1236 = vmatprep.subr.mxu0 0.0
    %1237 = vmatpush1.xpose.msra.mxu0 0.0
    %1238 = vmatprep.subr.mxu0 0.0
    %1239 = vmatpush1.xpose.msra.mxu0 0.0
    %1240 = vmatprep.mubr.f32.mxu0 0.0
    %1241 = vmatmul.mubr.f32.gmra.mrb[0].mxu0 %v1172
    %v1242 = vpop.f32.mrb[0].mxu0
    %v1243 = vadd.f32 0.0, %v1242
    %v1244 = vpop.f32.mrb[0].mxu0
    %1245 = vdwg.mxu0
    %1247 = vrot.lane.b32.xlu0 %v1165, 64
    %v1248 = vpop.permute.xlu0 %1247
    %v1249 = vsel %vm297, %v1165, 0
    %v1251 = vsel %vm297, %v1248, 0
    %1253 = vmatprep.subr.mxu0 0.0
    %1254 = vmatpush1.xpose.msra.mxu0 %v1251
    %1255 = vmatprep.subr.mxu0 0.0
    %1256 = vmatpush1.xpose.msra.mxu0 0.0
    %1257 = vmatprep.subr.mxu0 0.0
    %1258 = vmatpush1.xpose.msra.mxu0 0.0
    %1259 = vmatprep.subr.mxu0 0.0
    %1260 = vmatpush1.xpose.msra.mxu0 0.0
    %1261 = vmatprep.subr.mxu0 0.0
    %1262 = vmatpush1.xpose.msra.mxu0 0.0
    %1263 = vmatprep.subr.mxu0 0.0
    %1264 = vmatpush1.xpose.msra.mxu0 0.0
    %1265 = vmatprep.subr.mxu0 0.0
    %1266 = vmatpush1.xpose.msra.mxu0 0.0
    %1267 = vmatprep.subr.mxu0 0.0
    %1268 = vmatpush1.xpose.msra.mxu0 0.0
    %1269 = vmatprep.subr.mxu0 0.0
    %1270 = vmatpush1.xpose.msra.mxu0 0.0
    %1271 = vmatprep.subr.mxu0 0.0
    %1272 = vmatpush1.xpose.msra.mxu0 0.0
    %1273 = vmatprep.subr.mxu0 0.0
    %1274 = vmatpush1.xpose.msra.mxu0 0.0
    %1275 = vmatprep.subr.mxu0 0.0
    %1276 = vmatpush1.xpose.msra.mxu0 0.0
    %1277 = vmatprep.subr.mxu0 0.0
    %1278 = vmatpush1.xpose.msra.mxu0 0.0
    %1279 = vmatprep.subr.mxu0 0.0
    %1280 = vmatpush1.xpose.msra.mxu0 0.0
    %1281 = vmatprep.subr.mxu0 0.0
    %1282 = vmatpush1.xpose.msra.mxu0 0.0
    %1283 = vmatprep.subr.mxu0 0.0
    %1284 = vmatpush1.xpose.msra.mxu0 0.0
    %1285 = vmatprep.subr.mxu0 0.0
    %1286 = vmatpush1.xpose.msra.mxu0 0.0
    %1287 = vmatprep.subr.mxu0 0.0
    %1288 = vmatpush1.xpose.msra.mxu0 0.0
    %1289 = vmatprep.subr.mxu0 0.0
    %1290 = vmatpush1.xpose.msra.mxu0 0.0
    %1291 = vmatprep.subr.mxu0 0.0
    %1292 = vmatpush1.xpose.msra.mxu0 0.0
    %1293 = vmatprep.subr.mxu0 0.0
    %1294 = vmatpush1.xpose.msra.mxu0 0.0
    %1295 = vmatprep.subr.mxu0 0.0
    %1296 = vmatpush1.xpose.msra.mxu0 0.0
    %1297 = vmatprep.subr.mxu0 0.0
    %1298 = vmatpush1.xpose.msra.mxu0 0.0
    %1299 = vmatprep.subr.mxu0 0.0
    %1300 = vmatpush1.xpose.msra.mxu0 0.0
    %1301 = vmatprep.subr.mxu0 0.0
    %1302 = vmatpush1.xpose.msra.mxu0 0.0
    %1303 = vmatprep.subr.mxu0 0.0
    %1304 = vmatpush1.xpose.msra.mxu0 0.0
    %1305 = vmatprep.subr.mxu0 0.0
    %1306 = vmatpush1.xpose.msra.mxu0 0.0
    %1307 = vmatprep.subr.mxu0 0.0
    %1308 = vmatpush1.xpose.msra.mxu0 0.0
    %1309 = vmatprep.subr.mxu0 0.0
    %1310 = vmatpush1.xpose.msra.mxu0 0.0
    %1311 = vmatprep.subr.mxu0 0.0
    %1312 = vmatpush1.xpose.msra.mxu0 0.0
    %1313 = vmatprep.subr.mxu0 0.0
    %1314 = vmatpush1.xpose.msra.mxu0 0.0
    %1315 = vmatprep.subr.mxu0 0.0
    %1316 = vmatpush1.xpose.msra.mxu0 0.0
    %1317 = vmatprep.mubr.f32.mxu0 0.0
    %1318 = vmatmul.mubr.f32.gmra.mrb[0].mxu0 %v1249
    %v1319 = vpop.f32.mrb[0].mxu0
    %v1320 = vadd.f32 0.0, %v1319
    %v1321 = vpop.f32.mrb[0].mxu0
    %1322 = vdwg.mxu0
    %v1323 = vsel %vm449, %v1243, -inf
    %1324 = vmax.xlane.f32.xlu0 %v1323
    %v1325 = vpop.xlane.xlu0 %1324
    %v1326 = vsel %vm449, %v1320, -inf
    %1327 = vmax.xlane.f32.xlu0 %v1326
    %v1328 = vpop.xlane.xlu0 %1327
    %v1329 = vsub.f32 %v1243, %v1325
    %v1330 = vsub.f32 %v1320, %v1328
    %v1331 = vmul.f32 %v1329, 1.442695
    %v1332 = vpow.pop %v1331
    %v1333 = vmul.f32 %v1330, 1.442695
    %v1334 = vpow.pop %v1333
    %v1335 = vsel %vm449, %v1332, 0.0
    %1336 = vadd.xlane.f32.xlu0 %v1335
    %v1337 = vpop.xlane.xlu0 %1336
    %v1338 = vsel %vm449, %v1334, 0.0
    %1339 = vadd.xlane.f32.xlu0 %v1338
    %v1340 = vpop.xlane.xlu0 %1339
    %v1341 = vrcp.pop %v1337
    %v1342 = vrcp.pop %v1340
    %v1343 = vmul.f32 %v1332, %v1341
    %v1344 = vmul.f32 %v1334, %v1342
    %v1346 = vsel %vm449, %v1343, 0
    %1348 = vmatprep.subr.mxu0 0.0
    %1349 = vmatpush1.msra.mxu0 %v1161
    %1350 = vmatprep.subr.mxu0 0.0
    %1351 = vmatpush1.msra.mxu0 0.0
    %1352 = vmatprep.subr.mxu0 0.0
    %1353 = vmatpush1.msra.mxu0 0.0
    %1354 = vmatprep.subr.mxu0 0.0
    %1355 = vmatpush1.msra.mxu0 0.0
    %1356 = vmatprep.subr.mxu0 0.0
    %1357 = vmatpush1.msra.mxu0 0.0
    %1358 = vmatprep.subr.mxu0 0.0
    %1359 = vmatpush1.msra.mxu0 0.0
    %1360 = vmatprep.subr.mxu0 0.0
    %1361 = vmatpush1.msra.mxu0 0.0
    %1362 = vmatprep.subr.mxu0 0.0
    %1363 = vmatpush1.msra.mxu0 0.0
    %1364 = vmatprep.subr.mxu0 0.0
    %1365 = vmatpush1.msra.mxu0 0.0
    %1366 = vmatprep.subr.mxu0 0.0
    %1367 = vmatpush1.msra.mxu0 0.0
    %1368 = vmatprep.subr.mxu0 0.0
    %1369 = vmatpush1.msra.mxu0 0.0
    %1370 = vmatprep.subr.mxu0 0.0
    %1371 = vmatpush1.msra.mxu0 0.0
    %1372 = vmatprep.subr.mxu0 0.0
    %1373 = vmatpush1.msra.mxu0 0.0
    %1374 = vmatprep.subr.mxu0 0.0
    %1375 = vmatpush1.msra.mxu0 0.0
    %1376 = vmatprep.subr.mxu0 0.0
    %1377 = vmatpush1.msra.mxu0 0.0
    %1378 = vmatprep.subr.mxu0 0.0
    %1379 = vmatpush1.msra.mxu0 0.0
    %1380 = vmatprep.subr.mxu0 0.0
    %1381 = vmatpush1.msra.mxu0 0.0
    %1382 = vmatprep.subr.mxu0 0.0
    %1383 = vmatpush1.msra.mxu0 0.0
    %1384 = vmatprep.subr.mxu0 0.0
    %1385 = vmatpush1.msra.mxu0 0.0
    %1386 = vmatprep.subr.mxu0 0.0
    %1387 = vmatpush1.msra.mxu0 0.0
    %1388 = vmatprep.subr.mxu0 0.0
    %1389 = vmatpush1.msra.mxu0 0.0
    %1390 = vmatprep.subr.mxu0 0.0
    %1391 = vmatpush1.msra.mxu0 0.0
    %1392 = vmatprep.subr.mxu0 0.0
    %1393 = vmatpush1.msra.mxu0 0.0
    %1394 = vmatprep.subr.mxu0 0.0
    %1395 = vmatpush1.msra.mxu0 0.0
    %1396 = vmatprep.subr.mxu0 0.0
    %1397 = vmatpush1.msra.mxu0 0.0
    %1398 = vmatprep.subr.mxu0 0.0
    %1399 = vmatpush1.msra.mxu0 0.0
    %1400 = vmatprep.subr.mxu0 0.0
    %1401 = vmatpush1.msra.mxu0 0.0
    %1402 = vmatprep.subr.mxu0 0.0
    %1403 = vmatpush1.msra.mxu0 0.0
    %1404 = vmatprep.subr.mxu0 0.0
    %1405 = vmatpush1.msra.mxu0 0.0
    %1406 = vmatprep.subr.mxu0 0.0
    %1407 = vmatpush1.msra.mxu0 0.0
    %1408 = vmatprep.subr.mxu0 0.0
    %1409 = vmatpush1.msra.mxu0 0.0
    %1410 = vmatprep.subr.mxu0 0.0
    %1411 = vmatpush1.msra.mxu0 0.0
    %1412 = vmatprep.mubr.f32.mxu0 0.0
    %1413 = vmatmul.mubr.f32.gmra.mrb[0].mxu0 %v1346
    %v1414 = vpop.f32.mrb[0].mxu0
    %v1415 = vadd.f32 0.0, %v1414
    %v1416 = vpop.f32.mrb[0].mxu0
    %1417 = vdwg.mxu0
    %v1419 = vsel %vm449, %v1344, 0
    %1421 = vmatprep.subr.mxu0 0.0
    %1422 = vmatpush1.msra.mxu0 %v1167
    %1423 = vmatprep.subr.mxu0 0.0
    %1424 = vmatpush1.msra.mxu0 0.0
    %1425 = vmatprep.subr.mxu0 0.0
    %1426 = vmatpush1.msra.mxu0 0.0
    %1427 = vmatprep.subr.mxu0 0.0
    %1428 = vmatpush1.msra.mxu0 0.0
    %1429 = vmatprep.subr.mxu0 0.0
    %1430 = vmatpush1.msra.mxu0 0.0
    %1431 = vmatprep.subr.mxu0 0.0
    %1432 = vmatpush1.msra.mxu0 0.0
    %1433 = vmatprep.subr.mxu0 0.0
    %1434 = vmatpush1.msra.mxu0 0.0
    %1435 = vmatprep.subr.mxu0 0.0
    %1436 = vmatpush1.msra.mxu0 0.0
    %1437 = vmatprep.subr.mxu0 0.0
    %1438 = vmatpush1.msra.mxu0 0.0
    %1439 = vmatprep.subr.mxu0 0.0
    %1440 = vmatpush1.msra.mxu0 0.0
    %1441 = vmatprep.subr.mxu0 0.0
    %1442 = vmatpush1.msra.mxu0 0.0
    %1443 = vmatprep.subr.mxu0 0.0
    %1444 = vmatpush1.msra.mxu0 0.0
    %1445 = vmatprep.subr.mxu0 0.0
    %1446 = vmatpush1.msra.mxu0 0.0
    %1447 = vmatprep.subr.mxu0 0.0
    %1448 = vmatpush1.msra.mxu0 0.0
    %1449 = vmatprep.subr.mxu0 0.0
    %1450 = vmatpush1.msra.mxu0 0.0
    %1451 = vmatprep.subr.mxu0 0.0
    %1452 = vmatpush1.msra.mxu0 0.0
    %1453 = vmatprep.subr.mxu0 0.0
    %1454 = vmatpush1.msra.mxu0 0.0
    %1455 = vmatprep.subr.mxu0 0.0
    %1456 = vmatpush1.msra.mxu0 0.0
    %1457 = vmatprep.subr.mxu0 0.0
    %1458 = vmatpush1.msra.mxu0 0.0
    %1459 = vmatprep.subr.mxu0 0.0
    %1460 = vmatpush1.msra.mxu0 0.0
    %1461 = vmatprep.subr.mxu0 0.0
    %1462 = vmatpush1.msra.mxu0 0.0
    %1463 = vmatprep.subr.mxu0 0.0
    %1464 = vmatpush1.msra.mxu0 0.0
    %1465 = vmatprep.subr.mxu0 0.0
    %1466 = vmatpush1.msra.mxu0 0.0
    %1467 = vmatprep.subr.mxu0 0.0
    %1468 = vmatpush1.msra.mxu0 0.0
    %1469 = vmatprep.subr.mxu0 0.0
    %1470 = vmatpush1.msra.mxu0 0.0
    %1471 = vmatprep.subr.mxu0 0.0
    %1472 = vmatpush1.msra.mxu0 0.0
    %1473 = vmatprep.subr.mxu0 0.0
    %1474 = vmatpush1.msra.mxu0 0.0
    %1475 = vmatprep.subr.mxu0 0.0
    %1476 = vmatpush1.msra.mxu0 0.0
    %1477 = vmatprep.subr.mxu0 0.0
    %1478 = vmatpush1.msra.mxu0 0.0
    %1479 = vmatprep.subr.mxu0 0.0
    %1480 = vmatpush1.msra.mxu0 0.0
    %1481 = vmatprep.subr.mxu0 0.0
    %1482 = vmatpush1.msra.mxu0 0.0
    %1483 = vmatprep.subr.mxu0 0.0
    %1484 = vmatpush1.msra.mxu0 0.0
    %1485 = vmatprep.mubr.f32.mxu0 0.0
    %1486 = vmatmul.mubr.f32.gmra.mrb[0].mxu0 %v1419
    %v1487 = vpop.f32.mrb[0].mxu0
    %v1488 = vadd.f32 0.0, %v1487
    %v1489 = vpop.f32.mrb[0].mxu0
    %1490 = vdwg.mxu0
    %1491 = vrot.lane.b32.xlu0 %v1159, 96
    %v1492 = vpop.permute.xlu0 %1491
    %1493 = vrot.lane.b32.xlu0 %v1159, 32
    %v1494 = vpop.permute.xlu0 %1493
    %v1495 = vsel %vm297, %v1492, 0
    %v1497 = vsel %vm297, %v1494, 0
    %1499 = vmatprep.subr.mxu0 0.0
    %1500 = vmatpush1.xpose.msra.mxu0 %v1497
    %1501 = vmatprep.subr.mxu0 0.0
    %1502 = vmatpush1.xpose.msra.mxu0 0.0
    %1503 = vmatprep.subr.mxu0 0.0
    %1504 = vmatpush1.xpose.msra.mxu0 0.0
    %1505 = vmatprep.subr.mxu0 0.0
    %1506 = vmatpush1.xpose.msra.mxu0 0.0
    %1507 = vmatprep.subr.mxu0 0.0
    %1508 = vmatpush1.xpose.msra.mxu0 0.0
    %1509 = vmatprep.subr.mxu0 0.0
    %1510 = vmatpush1.xpose.msra.mxu0 0.0
    %1511 = vmatprep.subr.mxu0 0.0
    %1512 = vmatpush1.xpose.msra.mxu0 0.0
    %1513 = vmatprep.subr.mxu0 0.0
    %1514 = vmatpush1.xpose.msra.mxu0 0.0
    %1515 = vmatprep.subr.mxu0 0.0
    %1516 = vmatpush1.xpose.msra.mxu0 0.0
    %1517 = vmatprep.subr.mxu0 0.0
    %1518 = vmatpush1.xpose.msra.mxu0 0.0
    %1519 = vmatprep.subr.mxu0 0.0
    %1520 = vmatpush1.xpose.msra.mxu0 0.0
    %1521 = vmatprep.subr.mxu0 0.0
    %1522 = vmatpush1.xpose.msra.mxu0 0.0
    %1523 = vmatprep.subr.mxu0 0.0
    %1524 = vmatpush1.xpose.msra.mxu0 0.0
    %1525 = vmatprep.subr.mxu0 0.0
    %1526 = vmatpush1.xpose.msra.mxu0 0.0
    %1527 = vmatprep.subr.mxu0 0.0
    %1528 = vmatpush1.xpose.msra.mxu0 0.0
    %1529 = vmatprep.subr.mxu0 0.0
    %1530 = vmatpush1.xpose.msra.mxu0 0.0
    %1531 = vmatprep.subr.mxu0 0.0
    %1532 = vmatpush1.xpose.msra.mxu0 0.0
    %1533 = vmatprep.subr.mxu0 0.0
    %1534 = vmatpush1.xpose.msra.mxu0 0.0
    %1535 = vmatprep.subr.mxu0 0.0
    %1536 = vmatpush1.xpose.msra.mxu0 0.0
    %1537 = vmatprep.subr.mxu0 0.0
    %1538 = vmatpush1.xpose.msra.mxu0 0.0
    %1539 = vmatprep.subr.mxu0 0.0
    %1540 = vmatpush1.xpose.msra.mxu0 0.0
    %1541 = vmatprep.subr.mxu0 0.0
    %1542 = vmatpush1.xpose.msra.mxu0 0.0
    %1543 = vmatprep.subr.mxu0 0.0
    %1544 = vmatpush1.xpose.msra.mxu0 0.0
    %1545 = vmatprep.subr.mxu0 0.0
    %1546 = vmatpush1.xpose.msra.mxu0 0.0
    %1547 = vmatprep.subr.mxu0 0.0
    %1548 = vmatpush1.xpose.msra.mxu0 0.0
    %1549 = vmatprep.subr.mxu0 0.0
    %1550 = vmatpush1.xpose.msra.mxu0 0.0
    %1551 = vmatprep.subr.mxu0 0.0
    %1552 = vmatpush1.xpose.msra.mxu0 0.0
    %1553 = vmatprep.subr.mxu0 0.0
    %1554 = vmatpush1.xpose.msra.mxu0 0.0
    %1555 = vmatprep.subr.mxu0 0.0
    %1556 = vmatpush1.xpose.msra.mxu0 0.0
    %1557 = vmatprep.subr.mxu0 0.0
    %1558 = vmatpush1.xpose.msra.mxu0 0.0
    %1559 = vmatprep.subr.mxu0 0.0
    %1560 = vmatpush1.xpose.msra.mxu0 0.0
    %1561 = vmatprep.subr.mxu0 0.0
    %1562 = vmatpush1.xpose.msra.mxu0 0.0
    %1563 = vmatprep.mubr.f32.mxu0 0.0
    %1564 = vmatmul.mubr.f32.gmra.mrb[0].mxu0 %v1495
    %v1565 = vpop.f32.mrb[0].mxu0
    %v1566 = vadd.f32 0.0, %v1565
    %v1567 = vpop.f32.mrb[0].mxu0
    %1568 = vdwg.mxu0
    %1569 = vrot.lane.b32.xlu0 %v1165, 96
    %v1570 = vpop.permute.xlu0 %1569
    %1571 = vrot.lane.b32.xlu0 %v1165, 32
    %v1572 = vpop.permute.xlu0 %1571
    %v1573 = vsel %vm297, %v1570, 0
    %v1575 = vsel %vm297, %v1572, 0
    %1577 = vmatprep.subr.mxu0 0.0
    %1578 = vmatpush1.xpose.msra.mxu0 %v1575
    %1579 = vmatprep.subr.mxu0 0.0
    %1580 = vmatpush1.xpose.msra.mxu0 0.0
    %1581 = vmatprep.subr.mxu0 0.0
    %1582 = vmatpush1.xpose.msra.mxu0 0.0
    %1583 = vmatprep.subr.mxu0 0.0
    %1584 = vmatpush1.xpose.msra.mxu0 0.0
    %1585 = vmatprep.subr.mxu0 0.0
    %1586 = vmatpush1.xpose.msra.mxu0 0.0
    %1587 = vmatprep.subr.mxu0 0.0
    %1588 = vmatpush1.xpose.msra.mxu0 0.0
    %1589 = vmatprep.subr.mxu0 0.0
    %1590 = vmatpush1.xpose.msra.mxu0 0.0
    %1591 = vmatprep.subr.mxu0 0.0
    %1592 = vmatpush1.xpose.msra.mxu0 0.0
    %1593 = vmatprep.subr.mxu0 0.0
    %1594 = vmatpush1.xpose.msra.mxu0 0.0
    %1595 = vmatprep.subr.mxu0 0.0
    %1596 = vmatpush1.xpose.msra.mxu0 0.0
    %1597 = vmatprep.subr.mxu0 0.0
    %1598 = vmatpush1.xpose.msra.mxu0 0.0
    %1599 = vmatprep.subr.mxu0 0.0
    %1600 = vmatpush1.xpose.msra.mxu0 0.0
    %1601 = vmatprep.subr.mxu0 0.0
    %1602 = vmatpush1.xpose.msra.mxu0 0.0
    %1603 = vmatprep.subr.mxu0 0.0
    %1604 = vmatpush1.xpose.msra.mxu0 0.0
    %1605 = vmatprep.subr.mxu0 0.0
    %1606 = vmatpush1.xpose.msra.mxu0 0.0
    %1607 = vmatprep.subr.mxu0 0.0
    %1608 = vmatpush1.xpose.msra.mxu0 0.0
    %1609 = vmatprep.subr.mxu0 0.0
    %1610 = vmatpush1.xpose.msra.mxu0 0.0
    %1611 = vmatprep.subr.mxu0 0.0
    %1612 = vmatpush1.xpose.msra.mxu0 0.0
    %1613 = vmatprep.subr.mxu0 0.0
    %1614 = vmatpush1.xpose.msra.mxu0 0.0
    %1615 = vmatprep.subr.mxu0 0.0
    %1616 = vmatpush1.xpose.msra.mxu0 0.0
    %1617 = vmatprep.subr.mxu0 0.0
    %1618 = vmatpush1.xpose.msra.mxu0 0.0
    %1619 = vmatprep.subr.mxu0 0.0
    %1620 = vmatpush1.xpose.msra.mxu0 0.0
    %1621 = vmatprep.subr.mxu0 0.0
    %1622 = vmatpush1.xpose.msra.mxu0 0.0
    %1623 = vmatprep.subr.mxu0 0.0
    %1624 = vmatpush1.xpose.msra.mxu0 0.0
    %1625 = vmatprep.subr.mxu0 0.0
    %1626 = vmatpush1.xpose.msra.mxu0 0.0
    %1627 = vmatprep.subr.mxu0 0.0
    %1628 = vmatpush1.xpose.msra.mxu0 0.0
    %1629 = vmatprep.subr.mxu0 0.0
    %1630 = vmatpush1.xpose.msra.mxu0 0.0
    %1631 = vmatprep.subr.mxu0 0.0
    %1632 = vmatpush1.xpose.msra.mxu0 0.0
    %1633 = vmatprep.subr.mxu0 0.0
    %1634 = vmatpush1.xpose.msra.mxu0 0.0
    %1635 = vmatprep.subr.mxu0 0.0
    %1636 = vmatpush1.xpose.msra.mxu0 0.0
    %1637 = vmatprep.subr.mxu0 0.0
    %1638 = vmatpush1.xpose.msra.mxu0 0.0
    %1639 = vmatprep.subr.mxu0 0.0
    %1640 = vmatpush1.xpose.msra.mxu0 0.0
    %1641 = vmatprep.mubr.f32.mxu0 0.0
    %1642 = vmatmul.mubr.f32.gmra.mrb[0].mxu0 %v1573
    %v1643 = vpop.f32.mrb[0].mxu0
    %v1644 = vadd.f32 0.0, %v1643
    %v1645 = vpop.f32.mrb[0].mxu0
    %1646 = vdwg.mxu0
    %v1647 = vsel %vm449, %v1566, -inf
    %1648 = vmax.xlane.f32.xlu0 %v1647
    %v1649 = vpop.xlane.xlu0 %1648
    %v1650 = vsel %vm449, %v1644, -inf
    %1651 = vmax.xlane.f32.xlu0 %v1650
    %v1652 = vpop.xlane.xlu0 %1651
    %v1653 = vsub.f32 %v1566, %v1649
    %v1654 = vsub.f32 %v1644, %v1652
    %v1655 = vmul.f32 %v1653, 1.442695
    %v1656 = vpow.pop %v1655
    %v1657 = vmul.f32 %v1654, 1.442695
    %v1658 = vpow.pop %v1657
    %v1659 = vsel %vm449, %v1656, 0.0
    %1660 = vadd.xlane.f32.xlu0 %v1659
    %v1661 = vpop.xlane.xlu0 %1660
    %v1662 = vsel %vm449, %v1658, 0.0
    %1663 = vadd.xlane.f32.xlu0 %v1662
    %v1664 = vpop.xlane.xlu0 %1663
    %v1665 = vrcp.pop %v1661
    %v1666 = vrcp.pop %v1664
    %v1667 = vmul.f32 %v1656, %v1665
    %v1668 = vmul.f32 %v1658, %v1666
    %1670 = vrot.lane.b32.xlu0 %v1161, 96
    %v1671 = vpop.permute.xlu0 %1670
    %v1674 = vsel %vm449, %v1667, 0
    %1676 = vmatprep.subr.mxu0 0.0
    %1677 = vmatpush1.msra.mxu0 %v1671
    %1678 = vmatprep.subr.mxu0 0.0
    %1679 = vmatpush1.msra.mxu0 0.0
    %1680 = vmatprep.subr.mxu0 0.0
    %1681 = vmatpush1.msra.mxu0 0.0
    %1682 = vmatprep.subr.mxu0 0.0
    %1683 = vmatpush1.msra.mxu0 0.0
    %1684 = vmatprep.subr.mxu0 0.0
    %1685 = vmatpush1.msra.mxu0 0.0
    %1686 = vmatprep.subr.mxu0 0.0
    %1687 = vmatpush1.msra.mxu0 0.0
    %1688 = vmatprep.subr.mxu0 0.0
    %1689 = vmatpush1.msra.mxu0 0.0
    %1690 = vmatprep.subr.mxu0 0.0
    %1691 = vmatpush1.msra.mxu0 0.0
    %1692 = vmatprep.subr.mxu0 0.0
    %1693 = vmatpush1.msra.mxu0 0.0
    %1694 = vmatprep.subr.mxu0 0.0
    %1695 = vmatpush1.msra.mxu0 0.0
    %1696 = vmatprep.subr.mxu0 0.0
    %1697 = vmatpush1.msra.mxu0 0.0
    %1698 = vmatprep.subr.mxu0 0.0
    %1699 = vmatpush1.msra.mxu0 0.0
    %1700 = vmatprep.subr.mxu0 0.0
    %1701 = vmatpush1.msra.mxu0 0.0
    %1702 = vmatprep.subr.mxu0 0.0
    %1703 = vmatpush1.msra.mxu0 0.0
    %1704 = vmatprep.subr.mxu0 0.0
    %1705 = vmatpush1.msra.mxu0 0.0
    %1706 = vmatprep.subr.mxu0 0.0
    %1707 = vmatpush1.msra.mxu0 0.0
    %1708 = vmatprep.subr.mxu0 0.0
    %1709 = vmatpush1.msra.mxu0 0.0
    %1710 = vmatprep.subr.mxu0 0.0
    %1711 = vmatpush1.msra.mxu0 0.0
    %1712 = vmatprep.subr.mxu0 0.0
    %1713 = vmatpush1.msra.mxu0 0.0
    %1714 = vmatprep.subr.mxu0 0.0
    %1715 = vmatpush1.msra.mxu0 0.0
    %1716 = vmatprep.subr.mxu0 0.0
    %1717 = vmatpush1.msra.mxu0 0.0
    %1718 = vmatprep.subr.mxu0 0.0
    %1719 = vmatpush1.msra.mxu0 0.0
    %1720 = vmatprep.subr.mxu0 0.0
    %1721 = vmatpush1.msra.mxu0 0.0
    %1722 = vmatprep.subr.mxu0 0.0
    %1723 = vmatpush1.msra.mxu0 0.0
    %1724 = vmatprep.subr.mxu0 0.0
    %1725 = vmatpush1.msra.mxu0 0.0
    %1726 = vmatprep.subr.mxu0 0.0
    %1727 = vmatpush1.msra.mxu0 0.0
    %1728 = vmatprep.subr.mxu0 0.0
    %1729 = vmatpush1.msra.mxu0 0.0
    %1730 = vmatprep.subr.mxu0 0.0
    %1731 = vmatpush1.msra.mxu0 0.0
    %1732 = vmatprep.subr.mxu0 0.0
    %1733 = vmatpush1.msra.mxu0 0.0
    %1734 = vmatprep.subr.mxu0 0.0
    %1735 = vmatpush1.msra.mxu0 0.0
    %1736 = vmatprep.subr.mxu0 0.0
    %1737 = vmatpush1.msra.mxu0 0.0
    %1738 = vmatprep.subr.mxu0 0.0
    %1739 = vmatpush1.msra.mxu0 0.0
    %1740 = vmatprep.mubr.f32.mxu0 0.0
    %1741 = vmatmul.mubr.f32.gmra.mrb[0].mxu0 %v1674
    %v1742 = vpop.f32.mrb[0].mxu0
    %v1743 = vadd.f32 0.0, %v1742
    %v1744 = vpop.f32.mrb[0].mxu0
    %1745 = vdwg.mxu0
    %1747 = vrot.lane.b32.xlu0 %v1167, 96
    %v1748 = vpop.permute.xlu0 %1747
    %v1751 = vsel %vm449, %v1668, 0
    %1753 = vmatprep.subr.mxu0 0.0
    %1754 = vmatpush1.msra.mxu0 %v1748
    %1755 = vmatprep.subr.mxu0 0.0
    %1756 = vmatpush1.msra.mxu0 0.0
    %1757 = vmatprep.subr.mxu0 0.0
    %1758 = vmatpush1.msra.mxu0 0.0
    %1759 = vmatprep.subr.mxu0 0.0
    %1760 = vmatpush1.msra.mxu0 0.0
    %1761 = vmatprep.subr.mxu0 0.0
    %1762 = vmatpush1.msra.mxu0 0.0
    %1763 = vmatprep.subr.mxu0 0.0
    %1764 = vmatpush1.msra.mxu0 0.0
    %1765 = vmatprep.subr.mxu0 0.0
    %1766 = vmatpush1.msra.mxu0 0.0
    %1767 = vmatprep.subr.mxu0 0.0
    %1768 = vmatpush1.msra.mxu0 0.0
    %1769 = vmatprep.subr.mxu0 0.0
    %1770 = vmatpush1.msra.mxu0 0.0
    %1771 = vmatprep.subr.mxu0 0.0
    %1772 = vmatpush1.msra.mxu0 0.0
    %1773 = vmatprep.subr.mxu0 0.0
    %1774 = vmatpush1.msra.mxu0 0.0
    %1775 = vmatprep.subr.mxu0 0.0
    %1776 = vmatpush1.msra.mxu0 0.0
    %1777 = vmatprep.subr.mxu0 0.0
    %1778 = vmatpush1.msra.mxu0 0.0
    %1779 = vmatprep.subr.mxu0 0.0
    %1780 = vmatpush1.msra.mxu0 0.0
    %1781 = vmatprep.subr.mxu0 0.0
    %1782 = vmatpush1.msra.mxu0 0.0
    %1783 = vmatprep.subr.mxu0 0.0
    %1784 = vmatpush1.msra.mxu0 0.0
    %1785 = vmatprep.subr.mxu0 0.0
    %1786 = vmatpush1.msra.mxu0 0.0
    %1787 = vmatprep.subr.mxu0 0.0
    %1788 = vmatpush1.msra.mxu0 0.0
    %1789 = vmatprep.subr.mxu0 0.0
    %1790 = vmatpush1.msra.mxu0 0.0
    %1791 = vmatprep.subr.mxu0 0.0
    %1792 = vmatpush1.msra.mxu0 0.0
    %1793 = vmatprep.subr.mxu0 0.0
    %1794 = vmatpush1.msra.mxu0 0.0
    %1795 = vmatprep.subr.mxu0 0.0
    %1796 = vmatpush1.msra.mxu0 0.0
    %1797 = vmatprep.subr.mxu0 0.0
    %1798 = vmatpush1.msra.mxu0 0.0
    %1799 = vmatprep.subr.mxu0 0.0
    %1800 = vmatpush1.msra.mxu0 0.0
    %1801 = vmatprep.subr.mxu0 0.0
    %1802 = vmatpush1.msra.mxu0 0.0
    %1803 = vmatprep.subr.mxu0 0.0
    %1804 = vmatpush1.msra.mxu0 0.0
    %1805 = vmatprep.subr.mxu0 0.0
    %1806 = vmatpush1.msra.mxu0 0.0
    %1807 = vmatprep.subr.mxu0 0.0
    %1808 = vmatpush1.msra.mxu0 0.0
    %1809 = vmatprep.subr.mxu0 0.0
    %1810 = vmatpush1.msra.mxu0 0.0
    %1811 = vmatprep.subr.mxu0 0.0
    %1812 = vmatpush1.msra.mxu0 0.0
    %1813 = vmatprep.subr.mxu0 0.0
    %1814 = vmatpush1.msra.mxu0 0.0
    %1815 = vmatprep.subr.mxu0 0.0
    %1816 = vmatpush1.msra.mxu0 0.0
    %1817 = vmatprep.mubr.f32.mxu0 0.0
    %1818 = vmatmul.mubr.f32.gmra.mrb[0].mxu0 %v1751
    %v1819 = vpop.f32.mrb[0].mxu0
    %v1820 = vadd.f32 0.0, %v1819
    %v1821 = vpop.f32.mrb[0].mxu0
    %1822 = vdwg.mxu0
    %1825 = vrot.lane.b32.xlu0 %v1743, 32
    %v1826 = vpop.permute.xlu0 %1825
    %1827 = vrot.lane.b32.xlu0 %v1820, 32
    %v1828 = vpop.permute.xlu0 %1827
    %v1831 = vsel %vm297, %v1415, %v1826
    %v1832 = vsel %vm297, %v1488, %v1828
    %s1833 = scalar_lea.vmem [#allocation8], 64
    %v1834 = vld [vmem:[%s1833] sm:$0xff]
    %v1835 = vld [vmem:[%s1833 + $0x8] sm:$0xff]
    %v1836 = vld [vmem:[%s1833 + $0x10] sm:$0xff]
    %v1837 = vld [vmem:[%s1833 + $0x18] sm:$0xff]
    %v1838 = vld [vmem:[%s1833 + $0x20] sm:$0xff]
    %v1839 = vld [vmem:[%s1833 + $0x28] sm:$0xff]
    %v1840 = vld [vmem:[%s1833 + $0x30] sm:$0xff]
    %v1841 = vld [vmem:[%s1833 + $0x38] sm:$0xff]
    %s1842 = scalar_lea.vmem %s6, 1
    %v1843 = vld [vmem:[%s1842] sm:$0x1]
    %v1845 = vlaneseq
    %v1846 = vshrl.u32 %v1845, 7
    %v1847 = vsub.s32 0, %v1846
    %v1848 = vrot.slane %v1843, %v1847
    %v1851 = vsel %vm210, %v1831, 0
    %v1854 = vsel %vm210, %v1832, 0
    %1856 = vmatprep.subr.mxu0 0.0
    %1857 = vmatpush1.msra.mxu0 %v1834
    %1858 = vmatprep.subr.mxu0 0.0
    %1859 = vmatpush1.msra.mxu0 %v1835
    %1860 = vmatprep.subr.mxu0 0.0
    %1861 = vmatpush1.msra.mxu0 %v1836
    %1862 = vmatprep.subr.mxu0 0.0
    %1863 = vmatpush1.msra.mxu0 %v1837
    %1864 = vmatprep.subr.mxu0 0.0
    %1865 = vmatpush1.msra.mxu0 %v1838
    %1866 = vmatprep.subr.mxu0 0.0
    %1867 = vmatpush1.msra.mxu0 %v1839
    %1868 = vmatprep.subr.mxu0 0.0
    %1869 = vmatpush1.msra.mxu0 %v1840
    %1870 = vmatprep.subr.mxu0 0.0
    %1871 = vmatpush1.msra.mxu0 %v1841
    %1872 = vmatprep.subr.mxu0 0.0
    %1873 = vmatpush1.msra.mxu0 0.0
    %1874 = vmatprep.subr.mxu0 0.0
    %1875 = vmatpush1.msra.mxu0 0.0
    %1876 = vmatprep.subr.mxu0 0.0
    %1877 = vmatpush1.msra.mxu0 0.0
    %1878 = vmatprep.subr.mxu0 0.0
    %1879 = vmatpush1.msra.mxu0 0.0
    %1880 = vmatprep.subr.mxu0 0.0
    %1881 = vmatpush1.msra.mxu0 0.0
    %1882 = vmatprep.subr.mxu0 0.0
    %1883 = vmatpush1.msra.mxu0 0.0
    %1884 = vmatprep.subr.mxu0 0.0
    %1885 = vmatpush1.msra.mxu0 0.0
    %1886 = vmatprep.subr.mxu0 0.0
    %1887 = vmatpush1.msra.mxu0 0.0
    %1888 = vmatprep.subr.mxu0 0.0
    %1889 = vmatpush1.msra.mxu0 0.0
    %1890 = vmatprep.subr.mxu0 0.0
    %1891 = vmatpush1.msra.mxu0 0.0
    %1892 = vmatprep.subr.mxu0 0.0
    %1893 = vmatpush1.msra.mxu0 0.0
    %1894 = vmatprep.subr.mxu0 0.0
    %1895 = vmatpush1.msra.mxu0 0.0
    %1896 = vmatprep.subr.mxu0 0.0
    %1897 = vmatpush1.msra.mxu0 0.0
    %1898 = vmatprep.subr.mxu0 0.0
    %1899 = vmatpush1.msra.mxu0 0.0
    %1900 = vmatprep.subr.mxu0 0.0
    %1901 = vmatpush1.msra.mxu0 0.0
    %1902 = vmatprep.subr.mxu0 0.0
    %1903 = vmatpush1.msra.mxu0 0.0
    %1904 = vmatprep.subr.mxu0 0.0
    %1905 = vmatpush1.msra.mxu0 0.0
    %1906 = vmatprep.subr.mxu0 0.0
    %1907 = vmatpush1.msra.mxu0 0.0
    %1908 = vmatprep.subr.mxu0 0.0
    %1909 = vmatpush1.msra.mxu0 0.0
    %1910 = vmatprep.subr.mxu0 0.0
    %1911 = vmatpush1.msra.mxu0 0.0
    %1912 = vmatprep.subr.mxu0 0.0
    %1913 = vmatpush1.msra.mxu0 0.0
    %1914 = vmatprep.subr.mxu0 0.0
    %1915 = vmatpush1.msra.mxu0 0.0
    %1916 = vmatprep.subr.mxu0 0.0
    %1917 = vmatpush1.msra.mxu0 0.0
    %1918 = vmatprep.subr.mxu0 0.0
    %1919 = vmatpush1.msra.mxu0 0.0
    %1920 = vmatprep.mubr.f32.mxu0 0.0
    %1921 = vmatmul.mubr.f32.gmra.mrb[0].mxu0 %v1851
    %v1922 = vpop.f32.mrb[0].mxu0
    %v1923 = vadd.f32 %v1848, %v1922
    %v1924 = vpop.f32.mrb[0].mxu0
    %1925 = vmatprep.mubr.f32.mxu0 0.0
    %1926 = vmatmul.mubr.f32.gmra.mrb[0].mxu0 %v1854
    %v1927 = vpop.f32.mrb[0].mxu0
    %v1928 = vadd.f32 %v1848, %v1927
    %v1929 = vpop.f32.mrb[0].mxu0
    %1930 = vdwg.mxu0
    %s1931 = scalar_lea.vmem [#allocation7], 256
    %v1932 = vld [vmem:[%s1931] sm:$0xff]
    %v1933 = vld [vmem:[%s1931 + $0x8] sm:$0xff]
    %v1934 = vld [vmem:[%s1931 + $0x10] sm:$0xff]
    %v1935 = vld [vmem:[%s1931 + $0x18] sm:$0xff]
    %v1936 = vld [vmem:[%s1931 + $0x20] sm:$0xff]
    %v1937 = vld [vmem:[%s1931 + $0x28] sm:$0xff]
    %v1938 = vld [vmem:[%s1931 + $0x30] sm:$0xff]
    %v1939 = vld [vmem:[%s1931 + $0x38] sm:$0xff]
    %v1940 = vld [vmem:[%s1931 + $0x40] sm:$0xff]
    %v1941 = vld [vmem:[%s1931 + $0x48] sm:$0xff]
    %v1942 = vld [vmem:[%s1931 + $0x50] sm:$0xff]
    %v1943 = vld [vmem:[%s1931 + $0x58] sm:$0xff]
    %v1944 = vld [vmem:[%s1931 + $0x60] sm:$0xff]
    %v1945 = vld [vmem:[%s1931 + $0x68] sm:$0xff]
    %v1946 = vld [vmem:[%s1931 + $0x70] sm:$0xff]
    %v1947 = vld [vmem:[%s1931 + $0x78] sm:$0xff]
    %s1948 = scalar_lea.vmem %s4, 4
    %v1949 = vld [vmem:[%s1948] sm:$0x3]
    %v1951 = vlaneseq
    %v1952 = vshrl.u32 %v1951, 7
    %v1953 = vsub.s32 0, %v1952
    %v1954 = vrot.slane %v1949, %v1953
    %v1955 = vlaneseq
    %v1956 = vshrl.u32 %v1955, 7
    %v1957 = vsub.s32 1, %v1956
    %v1958 = vrot.slane %v1949, %v1957
    %v1962 = vsel %vm210, %v1923, 0
    %v1965 = vsel %vm210, %v1928, 0
    %1967 = vmatprep.subr.mxu0 %v1933
    %1968 = vmatpush1.msra.mxu0 %v1932
    %1969 = vmatprep.subr.mxu0 %v1935
    %1970 = vmatpush1.msra.mxu0 %v1934
    %1971 = vmatprep.subr.mxu0 %v1937
    %1972 = vmatpush1.msra.mxu0 %v1936
    %1973 = vmatprep.subr.mxu0 %v1939
    %1974 = vmatpush1.msra.mxu0 %v1938
    %1975 = vmatprep.subr.mxu0 %v1941
    %1976 = vmatpush1.msra.mxu0 %v1940
    %1977 = vmatprep.subr.mxu0 %v1943
    %1978 = vmatpush1.msra.mxu0 %v1942
    %1979 = vmatprep.subr.mxu0 %v1945
    %1980 = vmatpush1.msra.mxu0 %v1944
    %1981 = vmatprep.subr.mxu0 %v1947
    %1982 = vmatpush1.msra.mxu0 %v1946
    %1983 = vmatprep.subr.mxu0 0.0
    %1984 = vmatpush1.msra.mxu0 0.0
    %1985 = vmatprep.subr.mxu0 0.0
    %1986 = vmatpush1.msra.mxu0 0.0
    %1987 = vmatprep.subr.mxu0 0.0
    %1988 = vmatpush1.msra.mxu0 0.0
    %1989 = vmatprep.subr.mxu0 0.0
    %1990 = vmatpush1.msra.mxu0 0.0
    %1991 = vmatprep.subr.mxu0 0.0
    %1992 = vmatpush1.msra.mxu0 0.0
    %1993 = vmatprep.subr.mxu0 0.0
    %1994 = vmatpush1.msra.mxu0 0.0
    %1995 = vmatprep.subr.mxu0 0.0
    %1996 = vmatpush1.msra.mxu0 0.0
    %1997 = vmatprep.subr.mxu0 0.0
    %1998 = vmatpush1.msra.mxu0 0.0
    %1999 = vmatprep.subr.mxu0 0.0
    %2000 = vmatpush1.msra.mxu0 0.0
    %2001 = vmatprep.subr.mxu0 0.0
    %2002 = vmatpush1.msra.mxu0 0.0
    %2003 = vmatprep.subr.mxu0 0.0
    %2004 = vmatpush1.msra.mxu0 0.0
    %2005 = vmatprep.subr.mxu0 0.0
    %2006 = vmatpush1.msra.mxu0 0.0
    %2007 = vmatprep.subr.mxu0 0.0
    %2008 = vmatpush1.msra.mxu0 0.0
    %2009 = vmatprep.subr.mxu0 0.0
    %2010 = vmatpush1.msra.mxu0 0.0
    %2011 = vmatprep.subr.mxu0 0.0
    %2012 = vmatpush1.msra.mxu0 0.0
    %2013 = vmatprep.subr.mxu0 0.0
    %2014 = vmatpush1.msra.mxu0 0.0
    %2015 = vmatprep.subr.mxu0 0.0
    %2016 = vmatpush1.msra.mxu0 0.0
    %2017 = vmatprep.subr.mxu0 0.0
    %2018 = vmatpush1.msra.mxu0 0.0
    %2019 = vmatprep.subr.mxu0 0.0
    %2020 = vmatpush1.msra.mxu0 0.0
    %2021 = vmatprep.subr.mxu0 0.0
    %2022 = vmatpush1.msra.mxu0 0.0
    %2023 = vmatprep.subr.mxu0 0.0
    %2024 = vmatpush1.msra.mxu0 0.0
    %2025 = vmatprep.subr.mxu0 0.0
    %2026 = vmatpush1.msra.mxu0 0.0
    %2027 = vmatprep.subr.mxu0 0.0
    %2028 = vmatpush1.msra.mxu0 0.0
    %2029 = vmatprep.subr.mxu0 0.0
    %2030 = vmatpush1.msra.mxu0 0.0
    %2031 = vmatprep.mubr.f32.mxu0 0.0
    %2032 = vmatmul.mubr.f32.gmra.mrb[0].mxu0 %v1962
    %v2033 = vpop.f32.mrb[0].mxu0
    %v2034 = vadd.f32 %v1954, %v2033
    %v2035 = vpop.f32.mrb[0].mxu0
    %v2036 = vadd.f32 %v1958, %v2035
    %2037 = vmatprep.mubr.f32.mxu0 0.0
    %2038 = vmatmul.mubr.f32.gmra.mrb[0].mxu0 %v1965
    %v2039 = vpop.f32.mrb[0].mxu0
    %v2040 = vadd.f32 %v1954, %v2039
    %v2041 = vpop.f32.mrb[0].mxu0
    %v2042 = vadd.f32 %v1958, %v2041
    %2043 = vdwg.mxu0
    %2045 = vrot.lane.b32.xlu0 %v2034, 64
    %v2046 = vpop.permute.xlu0 %2045
    %v2047 = vsel %vm297, %v2034, 0
    %v2049 = vsel %vm297, %v2046, 0
    %2051 = vmatprep.subr.mxu0 0.0
    %2052 = vmatpush1.xpose.msra.mxu0 %v2049
    %2053 = vmatprep.subr.mxu0 0.0
    %2054 = vmatpush1.xpose.msra.mxu0 0.0
    %2055 = vmatprep.subr.mxu0 0.0
    %2056 = vmatpush1.xpose.msra.mxu0 0.0
    %2057 = vmatprep.subr.mxu0 0.0
    %2058 = vmatpush1.xpose.msra.mxu0 0.0
    %2059 = vmatprep.subr.mxu0 0.0
    %2060 = vmatpush1.xpose.msra.mxu0 0.0
    %2061 = vmatprep.subr.mxu0 0.0
    %2062 = vmatpush1.xpose.msra.mxu0 0.0
    %2063 = vmatprep.subr.mxu0 0.0
    %2064 = vmatpush1.xpose.msra.mxu0 0.0
    %2065 = vmatprep.subr.mxu0 0.0
    %2066 = vmatpush1.xpose.msra.mxu0 0.0
    %2067 = vmatprep.subr.mxu0 0.0
    %2068 = vmatpush1.xpose.msra.mxu0 0.0
    %2069 = vmatprep.subr.mxu0 0.0
    %2070 = vmatpush1.xpose.msra.mxu0 0.0
    %2071 = vmatprep.subr.mxu0 0.0
    %2072 = vmatpush1.xpose.msra.mxu0 0.0
    %2073 = vmatprep.subr.mxu0 0.0
    %2074 = vmatpush1.xpose.msra.mxu0 0.0
    %2075 = vmatprep.subr.mxu0 0.0
    %2076 = vmatpush1.xpose.msra.mxu0 0.0
    %2077 = vmatprep.subr.mxu0 0.0
    %2078 = vmatpush1.xpose.msra.mxu0 0.0
    %2079 = vmatprep.subr.mxu0 0.0
    %2080 = vmatpush1.xpose.msra.mxu0 0.0
    %2081 = vmatprep.subr.mxu0 0.0
    %2082 = vmatpush1.xpose.msra.mxu0 0.0
    %2083 = vmatprep.subr.mxu0 0.0
    %2084 = vmatpush1.xpose.msra.mxu0 0.0
    %2085 = vmatprep.subr.mxu0 0.0
    %2086 = vmatpush1.xpose.msra.mxu0 0.0
    %2087 = vmatprep.subr.mxu0 0.0
    %2088 = vmatpush1.xpose.msra.mxu0 0.0
    %2089 = vmatprep.subr.mxu0 0.0
    %2090 = vmatpush1.xpose.msra.mxu0 0.0
    %2091 = vmatprep.subr.mxu0 0.0
    %2092 = vmatpush1.xpose.msra.mxu0 0.0
    %2093 = vmatprep.subr.mxu0 0.0
    %2094 = vmatpush1.xpose.msra.mxu0 0.0
    %2095 = vmatprep.subr.mxu0 0.0
    %2096 = vmatpush1.xpose.msra.mxu0 0.0
    %2097 = vmatprep.subr.mxu0 0.0
    %2098 = vmatpush1.xpose.msra.mxu0 0.0
    %2099 = vmatprep.subr.mxu0 0.0
    %2100 = vmatpush1.xpose.msra.mxu0 0.0
    %2101 = vmatprep.subr.mxu0 0.0
    %2102 = vmatpush1.xpose.msra.mxu0 0.0
    %2103 = vmatprep.subr.mxu0 0.0
    %2104 = vmatpush1.xpose.msra.mxu0 0.0
    %2105 = vmatprep.subr.mxu0 0.0
    %2106 = vmatpush1.xpose.msra.mxu0 0.0
    %2107 = vmatprep.subr.mxu0 0.0
    %2108 = vmatpush1.xpose.msra.mxu0 0.0
    %2109 = vmatprep.subr.mxu0 0.0
    %2110 = vmatpush1.xpose.msra.mxu0 0.0
    %2111 = vmatprep.subr.mxu0 0.0
    %2112 = vmatpush1.xpose.msra.mxu0 0.0
    %2113 = vmatprep.subr.mxu0 0.0
    %2114 = vmatpush1.xpose.msra.mxu0 0.0
    %2115 = vmatprep.mubr.f32.mxu0 0.0
    %2116 = vmatmul.mubr.f32.gmra.mrb[0].mxu0 %v2047
    %v2117 = vpop.f32.mrb[0].mxu0
    %v2118 = vadd.f32 0.0, %v2117
    %v2119 = vpop.f32.mrb[0].mxu0
    %2120 = vdwg.mxu0
    %2122 = vrot.lane.b32.xlu0 %v2040, 64
    %v2123 = vpop.permute.xlu0 %2122
    %v2124 = vsel %vm297, %v2040, 0
    %v2126 = vsel %vm297, %v2123, 0
    %2128 = vmatprep.subr.mxu0 0.0
    %2129 = vmatpush1.xpose.msra.mxu0 %v2126
    %2130 = vmatprep.subr.mxu0 0.0
    %2131 = vmatpush1.xpose.msra.mxu0 0.0
    %2132 = vmatprep.subr.mxu0 0.0
    %2133 = vmatpush1.xpose.msra.mxu0 0.0
    %2134 = vmatprep.subr.mxu0 0.0
    %2135 = vmatpush1.xpose.msra.mxu0 0.0
    %2136 = vmatprep.subr.mxu0 0.0
    %2137 = vmatpush1.xpose.msra.mxu0 0.0
    %2138 = vmatprep.subr.mxu0 0.0
    %2139 = vmatpush1.xpose.msra.mxu0 0.0
    %2140 = vmatprep.subr.mxu0 0.0
    %2141 = vmatpush1.xpose.msra.mxu0 0.0
    %2142 = vmatprep.subr.mxu0 0.0
    %2143 = vmatpush1.xpose.msra.mxu0 0.0
    %2144 = vmatprep.subr.mxu0 0.0
    %2145 = vmatpush1.xpose.msra.mxu0 0.0
    %2146 = vmatprep.subr.mxu0 0.0
    %2147 = vmatpush1.xpose.msra.mxu0 0.0
    %2148 = vmatprep.subr.mxu0 0.0
    %2149 = vmatpush1.xpose.msra.mxu0 0.0
    %2150 = vmatprep.subr.mxu0 0.0
    %2151 = vmatpush1.xpose.msra.mxu0 0.0
    %2152 = vmatprep.subr.mxu0 0.0
    %2153 = vmatpush1.xpose.msra.mxu0 0.0
    %2154 = vmatprep.subr.mxu0 0.0
    %2155 = vmatpush1.xpose.msra.mxu0 0.0
    %2156 = vmatprep.subr.mxu0 0.0
    %2157 = vmatpush1.xpose.msra.mxu0 0.0
    %2158 = vmatprep.subr.mxu0 0.0
    %2159 = vmatpush1.xpose.msra.mxu0 0.0
    %2160 = vmatprep.subr.mxu0 0.0
    %2161 = vmatpush1.xpose.msra.mxu0 0.0
    %2162 = vmatprep.subr.mxu0 0.0
    %2163 = vmatpush1.xpose.msra.mxu0 0.0
    %2164 = vmatprep.subr.mxu0 0.0
    %2165 = vmatpush1.xpose.msra.mxu0 0.0
    %2166 = vmatprep.subr.mxu0 0.0
    %2167 = vmatpush1.xpose.msra.mxu0 0.0
    %2168 = vmatprep.subr.mxu0 0.0
    %2169 = vmatpush1.xpose.msra.mxu0 0.0
    %2170 = vmatprep.subr.mxu0 0.0
    %2171 = vmatpush1.xpose.msra.mxu0 0.0
    %2172 = vmatprep.subr.mxu0 0.0
    %2173 = vmatpush1.xpose.msra.mxu0 0.0
    %2174 = vmatprep.subr.mxu0 0.0
    %2175 = vmatpush1.xpose.msra.mxu0 0.0
    %2176 = vmatprep.subr.mxu0 0.0
    %2177 = vmatpush1.xpose.msra.mxu0 0.0
    %2178 = vmatprep.subr.mxu0 0.0
    %2179 = vmatpush1.xpose.msra.mxu0 0.0
    %2180 = vmatprep.subr.mxu0 0.0
    %2181 = vmatpush1.xpose.msra.mxu0 0.0
    %2182 = vmatprep.subr.mxu0 0.0
    %2183 = vmatpush1.xpose.msra.mxu0 0.0
    %2184 = vmatprep.subr.mxu0 0.0
    %2185 = vmatpush1.xpose.msra.mxu0 0.0
    %2186 = vmatprep.subr.mxu0 0.0
    %2187 = vmatpush1.xpose.msra.mxu0 0.0
    %2188 = vmatprep.subr.mxu0 0.0
    %2189 = vmatpush1.xpose.msra.mxu0 0.0
    %2190 = vmatprep.subr.mxu0 0.0
    %2191 = vmatpush1.xpose.msra.mxu0 0.0
    %2192 = vmatprep.mubr.f32.mxu0 0.0
    %2193 = vmatmul.mubr.f32.gmra.mrb[0].mxu0 %v2124
    %v2194 = vpop.f32.mrb[0].mxu0
    %v2195 = vadd.f32 0.0, %v2194
    %v2196 = vpop.f32.mrb[0].mxu0
    %2197 = vdwg.mxu0
    %v2198 = vsel %vm449, %v2118, -inf
    %2199 = vmax.xlane.f32.xlu0 %v2198
    %v2200 = vpop.xlane.xlu0 %2199
    %v2201 = vsel %vm449, %v2195, -inf
    %2202 = vmax.xlane.f32.xlu0 %v2201
    %v2203 = vpop.xlane.xlu0 %2202
    %v2204 = vsub.f32 %v2118, %v2200
    %v2205 = vsub.f32 %v2195, %v2203
    %v2206 = vmul.f32 %v2204, 1.442695
    %v2207 = vpow.pop %v2206
    %v2208 = vmul.f32 %v2205, 1.442695
    %v2209 = vpow.pop %v2208
    %v2210 = vsel %vm449, %v2207, 0.0
    %2211 = vadd.xlane.f32.xlu0 %v2210
    %v2212 = vpop.xlane.xlu0 %2211
    %v2213 = vsel %vm449, %v2209, 0.0
    %2214 = vadd.xlane.f32.xlu0 %v2213
    %v2215 = vpop.xlane.xlu0 %2214
    %v2216 = vrcp.pop %v2212
    %v2217 = vrcp.pop %v2215
    %v2218 = vmul.f32 %v2207, %v2216
    %v2219 = vmul.f32 %v2209, %v2217
    %v2221 = vsel %vm449, %v2218, 0
    %2223 = vmatprep.subr.mxu0 0.0
    %2224 = vmatpush1.msra.mxu0 %v2036
    %2225 = vmatprep.subr.mxu0 0.0
    %2226 = vmatpush1.msra.mxu0 0.0
    %2227 = vmatprep.subr.mxu0 0.0
    %2228 = vmatpush1.msra.mxu0 0.0
    %2229 = vmatprep.subr.mxu0 0.0
    %2230 = vmatpush1.msra.mxu0 0.0
    %2231 = vmatprep.subr.mxu0 0.0
    %2232 = vmatpush1.msra.mxu0 0.0
    %2233 = vmatprep.subr.mxu0 0.0
    %2234 = vmatpush1.msra.mxu0 0.0
    %2235 = vmatprep.subr.mxu0 0.0
    %2236 = vmatpush1.msra.mxu0 0.0
    %2237 = vmatprep.subr.mxu0 0.0
    %2238 = vmatpush1.msra.mxu0 0.0
    %2239 = vmatprep.subr.mxu0 0.0
    %2240 = vmatpush1.msra.mxu0 0.0
    %2241 = vmatprep.subr.mxu0 0.0
    %2242 = vmatpush1.msra.mxu0 0.0
    %2243 = vmatprep.subr.mxu0 0.0
    %2244 = vmatpush1.msra.mxu0 0.0
    %2245 = vmatprep.subr.mxu0 0.0
    %2246 = vmatpush1.msra.mxu0 0.0
    %2247 = vmatprep.subr.mxu0 0.0
    %2248 = vmatpush1.msra.mxu0 0.0
    %2249 = vmatprep.subr.mxu0 0.0
    %2250 = vmatpush1.msra.mxu0 0.0
    %2251 = vmatprep.subr.mxu0 0.0
    %2252 = vmatpush1.msra.mxu0 0.0
    %2253 = vmatprep.subr.mxu0 0.0
    %2254 = vmatpush1.msra.mxu0 0.0
    %2255 = vmatprep.subr.mxu0 0.0
    %2256 = vmatpush1.msra.mxu0 0.0
    %2257 = vmatprep.subr.mxu0 0.0
    %2258 = vmatpush1.msra.mxu0 0.0
    %2259 = vmatprep.subr.mxu0 0.0
    %2260 = vmatpush1.msra.mxu0 0.0
    %2261 = vmatprep.subr.mxu0 0.0
    %2262 = vmatpush1.msra.mxu0 0.0
    %2263 = vmatprep.subr.mxu0 0.0
    %2264 = vmatpush1.msra.mxu0 0.0
    %2265 = vmatprep.subr.mxu0 0.0
    %2266 = vmatpush1.msra.mxu0 0.0
    %2267 = vmatprep.subr.mxu0 0.0
    %2268 = vmatpush1.msra.mxu0 0.0
    %2269 = vmatprep.subr.mxu0 0.0
    %2270 = vmatpush1.msra.mxu0 0.0
    %2271 = vmatprep.subr.mxu0 0.0
    %2272 = vmatpush1.msra.mxu0 0.0
    %2273 = vmatprep.subr.mxu0 0.0
    %2274 = vmatpush1.msra.mxu0 0.0
    %2275 = vmatprep.subr.mxu0 0.0
    %2276 = vmatpush1.msra.mxu0 0.0
    %2277 = vmatprep.subr.mxu0 0.0
    %2278 = vmatpush1.msra.mxu0 0.0
    %2279 = vmatprep.subr.mxu0 0.0
    %2280 = vmatpush1.msra.mxu0 0.0
    %2281 = vmatprep.subr.mxu0 0.0
    %2282 = vmatpush1.msra.mxu0 0.0
    %2283 = vmatprep.subr.mxu0 0.0
    %2284 = vmatpush1.msra.mxu0 0.0
    %2285 = vmatprep.subr.mxu0 0.0
    %2286 = vmatpush1.msra.mxu0 0.0
    %2287 = vmatprep.mubr.f32.mxu0 0.0
    %2288 = vmatmul.mubr.f32.gmra.mrb[0].mxu0 %v2221
    %v2289 = vpop.f32.mrb[0].mxu0
    %v2290 = vadd.f32 0.0, %v2289
    %v2291 = vpop.f32.mrb[0].mxu0
    %2292 = vdwg.mxu0
    %v2294 = vsel %vm449, %v2219, 0
    %2296 = vmatprep.subr.mxu0 0.0
    %2297 = vmatpush1.msra.mxu0 %v2042
    %2298 = vmatprep.subr.mxu0 0.0
    %2299 = vmatpush1.msra.mxu0 0.0
    %2300 = vmatprep.subr.mxu0 0.0
    %2301 = vmatpush1.msra.mxu0 0.0
    %2302 = vmatprep.subr.mxu0 0.0
    %2303 = vmatpush1.msra.mxu0 0.0
    %2304 = vmatprep.subr.mxu0 0.0
    %2305 = vmatpush1.msra.mxu0 0.0
    %2306 = vmatprep.subr.mxu0 0.0
    %2307 = vmatpush1.msra.mxu0 0.0
    %2308 = vmatprep.subr.mxu0 0.0
    %2309 = vmatpush1.msra.mxu0 0.0
    %2310 = vmatprep.subr.mxu0 0.0
    %2311 = vmatpush1.msra.mxu0 0.0
    %2312 = vmatprep.subr.mxu0 0.0
    %2313 = vmatpush1.msra.mxu0 0.0
    %2314 = vmatprep.subr.mxu0 0.0
    %2315 = vmatpush1.msra.mxu0 0.0
    %2316 = vmatprep.subr.mxu0 0.0
    %2317 = vmatpush1.msra.mxu0 0.0
    %2318 = vmatprep.subr.mxu0 0.0
    %2319 = vmatpush1.msra.mxu0 0.0
    %2320 = vmatprep.subr.mxu0 0.0
    %2321 = vmatpush1.msra.mxu0 0.0
    %2322 = vmatprep.subr.mxu0 0.0
    %2323 = vmatpush1.msra.mxu0 0.0
    %2324 = vmatprep.subr.mxu0 0.0
    %2325 = vmatpush1.msra.mxu0 0.0
    %2326 = vmatprep.subr.mxu0 0.0
    %2327 = vmatpush1.msra.mxu0 0.0
    %2328 = vmatprep.subr.mxu0 0.0
    %2329 = vmatpush1.msra.mxu0 0.0
    %2330 = vmatprep.subr.mxu0 0.0
    %2331 = vmatpush1.msra.mxu0 0.0
    %2332 = vmatprep.subr.mxu0 0.0
    %2333 = vmatpush1.msra.mxu0 0.0
    %2334 = vmatprep.subr.mxu0 0.0
    %2335 = vmatpush1.msra.mxu0 0.0
    %2336 = vmatprep.subr.mxu0 0.0
    %2337 = vmatpush1.msra.mxu0 0.0
    %2338 = vmatprep.subr.mxu0 0.0
    %2339 = vmatpush1.msra.mxu0 0.0
    %2340 = vmatprep.subr.mxu0 0.0
    %2341 = vmatpush1.msra.mxu0 0.0
    %2342 = vmatprep.subr.mxu0 0.0
    %2343 = vmatpush1.msra.mxu0 0.0
    %2344 = vmatprep.subr.mxu0 0.0
    %2345 = vmatpush1.msra.mxu0 0.0
    %2346 = vmatprep.subr.mxu0 0.0
    %2347 = vmatpush1.msra.mxu0 0.0
    %2348 = vmatprep.subr.mxu0 0.0
    %2349 = vmatpush1.msra.mxu0 0.0
    %2350 = vmatprep.subr.mxu0 0.0
    %2351 = vmatpush1.msra.mxu0 0.0
    %2352 = vmatprep.subr.mxu0 0.0
    %2353 = vmatpush1.msra.mxu0 0.0
    %2354 = vmatprep.subr.mxu0 0.0
    %2355 = vmatpush1.msra.mxu0 0.0
    %2356 = vmatprep.subr.mxu0 0.0
    %2357 = vmatpush1.msra.mxu0 0.0
    %2358 = vmatprep.subr.mxu0 0.0
    %2359 = vmatpush1.msra.mxu0 0.0
    %2360 = vmatprep.mubr.f32.mxu0 0.0
    %2361 = vmatmul.mubr.f32.gmra.mrb[0].mxu0 %v2294
    %v2362 = vpop.f32.mrb[0].mxu0
    %v2363 = vadd.f32 0.0, %v2362
    %v2364 = vpop.f32.mrb[0].mxu0
    %2365 = vdwg.mxu0
    %2366 = vrot.lane.b32.xlu0 %v2034, 96
    %v2367 = vpop.permute.xlu0 %2366
    %2368 = vrot.lane.b32.xlu0 %v2034, 32
    %v2369 = vpop.permute.xlu0 %2368
    %v2370 = vsel %vm297, %v2367, 0
    %v2372 = vsel %vm297, %v2369, 0
    %2374 = vmatprep.subr.mxu0 0.0
    %2375 = vmatpush1.xpose.msra.mxu0 %v2372
    %2376 = vmatprep.subr.mxu0 0.0
    %2377 = vmatpush1.xpose.msra.mxu0 0.0
    %2378 = vmatprep.subr.mxu0 0.0
    %2379 = vmatpush1.xpose.msra.mxu0 0.0
    %2380 = vmatprep.subr.mxu0 0.0
    %2381 = vmatpush1.xpose.msra.mxu0 0.0
    %2382 = vmatprep.subr.mxu0 0.0
    %2383 = vmatpush1.xpose.msra.mxu0 0.0
    %2384 = vmatprep.subr.mxu0 0.0
    %2385 = vmatpush1.xpose.msra.mxu0 0.0
    %2386 = vmatprep.subr.mxu0 0.0
    %2387 = vmatpush1.xpose.msra.mxu0 0.0
    %2388 = vmatprep.subr.mxu0 0.0
    %2389 = vmatpush1.xpose.msra.mxu0 0.0
    %2390 = vmatprep.subr.mxu0 0.0
    %2391 = vmatpush1.xpose.msra.mxu0 0.0
    %2392 = vmatprep.subr.mxu0 0.0
    %2393 = vmatpush1.xpose.msra.mxu0 0.0
    %2394 = vmatprep.subr.mxu0 0.0
    %2395 = vmatpush1.xpose.msra.mxu0 0.0
    %2396 = vmatprep.subr.mxu0 0.0
    %2397 = vmatpush1.xpose.msra.mxu0 0.0
    %2398 = vmatprep.subr.mxu0 0.0
    %2399 = vmatpush1.xpose.msra.mxu0 0.0
    %2400 = vmatprep.subr.mxu0 0.0
    %2401 = vmatpush1.xpose.msra.mxu0 0.0
    %2402 = vmatprep.subr.mxu0 0.0
    %2403 = vmatpush1.xpose.msra.mxu0 0.0
    %2404 = vmatprep.subr.mxu0 0.0
    %2405 = vmatpush1.xpose.msra.mxu0 0.0
    %2406 = vmatprep.subr.mxu0 0.0
    %2407 = vmatpush1.xpose.msra.mxu0 0.0
    %2408 = vmatprep.subr.mxu0 0.0
    %2409 = vmatpush1.xpose.msra.mxu0 0.0
    %2410 = vmatprep.subr.mxu0 0.0
    %2411 = vmatpush1.xpose.msra.mxu0 0.0
    %2412 = vmatprep.subr.mxu0 0.0
    %2413 = vmatpush1.xpose.msra.mxu0 0.0
    %2414 = vmatprep.subr.mxu0 0.0
    %2415 = vmatpush1.xpose.msra.mxu0 0.0
    %2416 = vmatprep.subr.mxu0 0.0
    %2417 = vmatpush1.xpose.msra.mxu0 0.0
    %2418 = vmatprep.subr.mxu0 0.0
    %2419 = vmatpush1.xpose.msra.mxu0 0.0
    %2420 = vmatprep.subr.mxu0 0.0
    %2421 = vmatpush1.xpose.msra.mxu0 0.0
    %2422 = vmatprep.subr.mxu0 0.0
    %2423 = vmatpush1.xpose.msra.mxu0 0.0
    %2424 = vmatprep.subr.mxu0 0.0
    %2425 = vmatpush1.xpose.msra.mxu0 0.0
    %2426 = vmatprep.subr.mxu0 0.0
    %2427 = vmatpush1.xpose.msra.mxu0 0.0
    %2428 = vmatprep.subr.mxu0 0.0
    %2429 = vmatpush1.xpose.msra.mxu0 0.0
    %2430 = vmatprep.subr.mxu0 0.0
    %2431 = vmatpush1.xpose.msra.mxu0 0.0
    %2432 = vmatprep.subr.mxu0 0.0
    %2433 = vmatpush1.xpose.msra.mxu0 0.0
    %2434 = vmatprep.subr.mxu0 0.0
    %2435 = vmatpush1.xpose.msra.mxu0 0.0
    %2436 = vmatprep.subr.mxu0 0.0
    %2437 = vmatpush1.xpose.msra.mxu0 0.0
    %2438 = vmatprep.mubr.f32.mxu0 0.0
    %2439 = vmatmul.mubr.f32.gmra.mrb[0].mxu0 %v2370
    %v2440 = vpop.f32.mrb[0].mxu0
    %v2441 = vadd.f32 0.0, %v2440
    %v2442 = vpop.f32.mrb[0].mxu0
    %2443 = vdwg.mxu0
    %2444 = vrot.lane.b32.xlu0 %v2040, 96
    %v2445 = vpop.permute.xlu0 %2444
    %2446 = vrot.lane.b32.xlu0 %v2040, 32
    %v2447 = vpop.permute.xlu0 %2446
    %v2448 = vsel %vm297, %v2445, 0
    %v2450 = vsel %vm297, %v2447, 0
    %2452 = vmatprep.subr.mxu0 0.0
    %2453 = vmatpush1.xpose.msra.mxu0 %v2450
    %2454 = vmatprep.subr.mxu0 0.0
    %2455 = vmatpush1.xpose.msra.mxu0 0.0
    %2456 = vmatprep.subr.mxu0 0.0
    %2457 = vmatpush1.xpose.msra.mxu0 0.0
    %2458 = vmatprep.subr.mxu0 0.0
    %2459 = vmatpush1.xpose.msra.mxu0 0.0
    %2460 = vmatprep.subr.mxu0 0.0
    %2461 = vmatpush1.xpose.msra.mxu0 0.0
    %2462 = vmatprep.subr.mxu0 0.0
    %2463 = vmatpush1.xpose.msra.mxu0 0.0
    %2464 = vmatprep.subr.mxu0 0.0
    %2465 = vmatpush1.xpose.msra.mxu0 0.0
    %2466 = vmatprep.subr.mxu0 0.0
    %2467 = vmatpush1.xpose.msra.mxu0 0.0
    %2468 = vmatprep.subr.mxu0 0.0
    %2469 = vmatpush1.xpose.msra.mxu0 0.0
    %2470 = vmatprep.subr.mxu0 0.0
    %2471 = vmatpush1.xpose.msra.mxu0 0.0
    %2472 = vmatprep.subr.mxu0 0.0
    %2473 = vmatpush1.xpose.msra.mxu0 0.0
    %2474 = vmatprep.subr.mxu0 0.0
    %2475 = vmatpush1.xpose.msra.mxu0 0.0
    %2476 = vmatprep.subr.mxu0 0.0
    %2477 = vmatpush1.xpose.msra.mxu0 0.0
    %2478 = vmatprep.subr.mxu0 0.0
    %2479 = vmatpush1.xpose.msra.mxu0 0.0
    %2480 = vmatprep.subr.mxu0 0.0
    %2481 = vmatpush1.xpose.msra.mxu0 0.0
    %2482 = vmatprep.subr.mxu0 0.0
    %2483 = vmatpush1.xpose.msra.mxu0 0.0
    %2484 = vmatprep.subr.mxu0 0.0
    %2485 = vmatpush1.xpose.msra.mxu0 0.0
    %2486 = vmatprep.subr.mxu0 0.0
    %2487 = vmatpush1.xpose.msra.mxu0 0.0
    %2488 = vmatprep.subr.mxu0 0.0
    %2489 = vmatpush1.xpose.msra.mxu0 0.0
    %2490 = vmatprep.subr.mxu0 0.0
    %2491 = vmatpush1.xpose.msra.mxu0 0.0
    %2492 = vmatprep.subr.mxu0 0.0
    %2493 = vmatpush1.xpose.msra.mxu0 0.0
    %2494 = vmatprep.subr.mxu0 0.0
    %2495 = vmatpush1.xpose.msra.mxu0 0.0
    %2496 = vmatprep.subr.mxu0 0.0
    %2497 = vmatpush1.xpose.msra.mxu0 0.0
    %2498 = vmatprep.subr.mxu0 0.0
    %2499 = vmatpush1.xpose.msra.mxu0 0.0
    %2500 = vmatprep.subr.mxu0 0.0
    %2501 = vmatpush1.xpose.msra.mxu0 0.0
    %2502 = vmatprep.subr.mxu0 0.0
    %2503 = vmatpush1.xpose.msra.mxu0 0.0
    %2504 = vmatprep.subr.mxu0 0.0
    %2505 = vmatpush1.xpose.msra.mxu0 0.0
    %2506 = vmatprep.subr.mxu0 0.0
    %2507 = vmatpush1.xpose.msra.mxu0 0.0
    %2508 = vmatprep.subr.mxu0 0.0
    %2509 = vmatpush1.xpose.msra.mxu0 0.0
    %2510 = vmatprep.subr.mxu0 0.0
    %2511 = vmatpush1.xpose.msra.mxu0 0.0
    %2512 = vmatprep.subr.mxu0 0.0
    %2513 = vmatpush1.xpose.msra.mxu0 0.0
    %2514 = vmatprep.subr.mxu0 0.0
    %2515 = vmatpush1.xpose.msra.mxu0 0.0
    %2516 = vmatprep.mubr.f32.mxu0 0.0
    %2517 = vmatmul.mubr.f32.gmra.mrb[0].mxu0 %v2448
    %v2518 = vpop.f32.mrb[0].mxu0
    %v2519 = vadd.f32 0.0, %v2518
    %v2520 = vpop.f32.mrb[0].mxu0
    %2521 = vdwg.mxu0
    %v2522 = vsel %vm449, %v2441, -inf
    %2523 = vmax.xlane.f32.xlu0 %v2522
    %v2524 = vpop.xlane.xlu0 %2523
    %v2525 = vsel %vm449, %v2519, -inf
    %2526 = vmax.xlane.f32.xlu0 %v2525
    %v2527 = vpop.xlane.xlu0 %2526
    %v2528 = vsub.f32 %v2441, %v2524
    %v2529 = vsub.f32 %v2519, %v2527
    %v2530 = vmul.f32 %v2528, 1.442695
    %v2531 = vpow.pop %v2530
    %v2532 = vmul.f32 %v2529, 1.442695
    %v2533 = vpow.pop %v2532
    %v2534 = vsel %vm449, %v2531, 0.0
    %2535 = vadd.xlane.f32.xlu0 %v2534
    %v2536 = vpop.xlane.xlu0 %2535
    %v2537 = vsel %vm449, %v2533, 0.0
    %2538 = vadd.xlane.f32.xlu0 %v2537
    %v2539 = vpop.xlane.xlu0 %2538
    %v2540 = vrcp.pop %v2536
    %v2541 = vrcp.pop %v2539
    %v2542 = vmul.f32 %v2531, %v2540
    %v2543 = vmul.f32 %v2533, %v2541
    %2545 = vrot.lane.b32.xlu0 %v2036, 96
    %v2546 = vpop.permute.xlu0 %2545
    %v2549 = vsel %vm449, %v2542, 0
    %2551 = vmatprep.subr.mxu0 0.0
    %2552 = vmatpush1.msra.mxu0 %v2546
    %2553 = vmatprep.subr.mxu0 0.0
    %2554 = vmatpush1.msra.mxu0 0.0
    %2555 = vmatprep.subr.mxu0 0.0
    %2556 = vmatpush1.msra.mxu0 0.0
    %2557 = vmatprep.subr.mxu0 0.0
    %2558 = vmatpush1.msra.mxu0 0.0
    %2559 = vmatprep.subr.mxu0 0.0
    %2560 = vmatpush1.msra.mxu0 0.0
    %2561 = vmatprep.subr.mxu0 0.0
    %2562 = vmatpush1.msra.mxu0 0.0
    %2563 = vmatprep.subr.mxu0 0.0
    %2564 = vmatpush1.msra.mxu0 0.0
    %2565 = vmatprep.subr.mxu0 0.0
    %2566 = vmatpush1.msra.mxu0 0.0
    %2567 = vmatprep.subr.mxu0 0.0
    %2568 = vmatpush1.msra.mxu0 0.0
    %2569 = vmatprep.subr.mxu0 0.0
    %2570 = vmatpush1.msra.mxu0 0.0
    %2571 = vmatprep.subr.mxu0 0.0
    %2572 = vmatpush1.msra.mxu0 0.0
    %2573 = vmatprep.subr.mxu0 0.0
    %2574 = vmatpush1.msra.mxu0 0.0
    %2575 = vmatprep.subr.mxu0 0.0
    %2576 = vmatpush1.msra.mxu0 0.0
    %2577 = vmatprep.subr.mxu0 0.0
    %2578 = vmatpush1.msra.mxu0 0.0
    %2579 = vmatprep.subr.mxu0 0.0
    %2580 = vmatpush1.msra.mxu0 0.0
    %2581 = vmatprep.subr.mxu0 0.0
    %2582 = vmatpush1.msra.mxu0 0.0
    %2583 = vmatprep.subr.mxu0 0.0
    %2584 = vmatpush1.msra.mxu0 0.0
    %2585 = vmatprep.subr.mxu0 0.0
    %2586 = vmatpush1.msra.mxu0 0.0
    %2587 = vmatprep.subr.mxu0 0.0
    %2588 = vmatpush1.msra.mxu0 0.0
    %2589 = vmatprep.subr.mxu0 0.0
    %2590 = vmatpush1.msra.mxu0 0.0
    %2591 = vmatprep.subr.mxu0 0.0
    %2592 = vmatpush1.msra.mxu0 0.0
    %2593 = vmatprep.subr.mxu0 0.0
    %2594 = vmatpush1.msra.mxu0 0.0
    %2595 = vmatprep.subr.mxu0 0.0
    %2596 = vmatpush1.msra.mxu0 0.0
    %2597 = vmatprep.subr.mxu0 0.0
    %2598 = vmatpush1.msra.mxu0 0.0
    %2599 = vmatprep.subr.mxu0 0.0
    %2600 = vmatpush1.msra.mxu0 0.0
    %2601 = vmatprep.subr.mxu0 0.0
    %2602 = vmatpush1.msra.mxu0 0.0
    %2603 = vmatprep.subr.mxu0 0.0
    %2604 = vmatpush1.msra.mxu0 0.0
    %2605 = vmatprep.subr.mxu0 0.0
    %2606 = vmatpush1.msra.mxu0 0.0
    %2607 = vmatprep.subr.mxu0 0.0
    %2608 = vmatpush1.msra.mxu0 0.0
    %2609 = vmatprep.subr.mxu0 0.0
    %2610 = vmatpush1.msra.mxu0 0.0
    %2611 = vmatprep.subr.mxu0 0.0
    %2612 = vmatpush1.msra.mxu0 0.0
    %2613 = vmatprep.subr.mxu0 0.0
    %2614 = vmatpush1.msra.mxu0 0.0
    %2615 = vmatprep.mubr.f32.mxu0 0.0
    %2616 = vmatmul.mubr.f32.gmra.mrb[0].mxu0 %v2549
    %v2617 = vpop.f32.mrb[0].mxu0
    %v2618 = vadd.f32 0.0, %v2617
    %v2619 = vpop.f32.mrb[0].mxu0
    %2620 = vdwg.mxu0
    %2622 = vrot.lane.b32.xlu0 %v2042, 96
    %v2623 = vpop.permute.xlu0 %2622
    %v2626 = vsel %vm449, %v2543, 0
    %2628 = vmatprep.subr.mxu0 0.0
    %2629 = vmatpush1.msra.mxu0 %v2623
    %2630 = vmatprep.subr.mxu0 0.0
    %2631 = vmatpush1.msra.mxu0 0.0
    %2632 = vmatprep.subr.mxu0 0.0
    %2633 = vmatpush1.msra.mxu0 0.0
    %2634 = vmatprep.subr.mxu0 0.0
    %2635 = vmatpush1.msra.mxu0 0.0
    %2636 = vmatprep.subr.mxu0 0.0
    %2637 = vmatpush1.msra.mxu0 0.0
    %2638 = vmatprep.subr.mxu0 0.0
    %2639 = vmatpush1.msra.mxu0 0.0
    %2640 = vmatprep.subr.mxu0 0.0
    %2641 = vmatpush1.msra.mxu0 0.0
    %2642 = vmatprep.subr.mxu0 0.0
    %2643 = vmatpush1.msra.mxu0 0.0
    %2644 = vmatprep.subr.mxu0 0.0
    %2645 = vmatpush1.msra.mxu0 0.0
    %2646 = vmatprep.subr.mxu0 0.0
    %2647 = vmatpush1.msra.mxu0 0.0
    %2648 = vmatprep.subr.mxu0 0.0
    %2649 = vmatpush1.msra.mxu0 0.0
    %2650 = vmatprep.subr.mxu0 0.0
    %2651 = vmatpush1.msra.mxu0 0.0
    %2652 = vmatprep.subr.mxu0 0.0
    %2653 = vmatpush1.msra.mxu0 0.0
    %2654 = vmatprep.subr.mxu0 0.0
    %2655 = vmatpush1.msra.mxu0 0.0
    %2656 = vmatprep.subr.mxu0 0.0
    %2657 = vmatpush1.msra.mxu0 0.0
    %2658 = vmatprep.subr.mxu0 0.0
    %2659 = vmatpush1.msra.mxu0 0.0
    %2660 = vmatprep.subr.mxu0 0.0
    %2661 = vmatpush1.msra.mxu0 0.0
    %2662 = vmatprep.subr.mxu0 0.0
    %2663 = vmatpush1.msra.mxu0 0.0
    %2664 = vmatprep.subr.mxu0 0.0
    %2665 = vmatpush1.msra.mxu0 0.0
    %2666 = vmatprep.subr.mxu0 0.0
    %2667 = vmatpush1.msra.mxu0 0.0
    %2668 = vmatprep.subr.mxu0 0.0
    %2669 = vmatpush1.msra.mxu0 0.0
    %2670 = vmatprep.subr.mxu0 0.0
    %2671 = vmatpush1.msra.mxu0 0.0
    %2672 = vmatprep.subr.mxu0 0.0
    %2673 = vmatpush1.msra.mxu0 0.0
    %2674 = vmatprep.subr.mxu0 0.0
    %2675 = vmatpush1.msra.mxu0 0.0
    %2676 = vmatprep.subr.mxu0 0.0
    %2677 = vmatpush1.msra.mxu0 0.0
    %2678 = vmatprep.subr.mxu0 0.0
    %2679 = vmatpush1.msra.mxu0 0.0
    %2680 = vmatprep.subr.mxu0 0.0
    %2681 = vmatpush1.msra.mxu0 0.0
    %2682 = vmatprep.subr.mxu0 0.0
    %2683 = vmatpush1.msra.mxu0 0.0
    %2684 = vmatprep.subr.mxu0 0.0
    %2685 = vmatpush1.msra.mxu0 0.0
    %2686 = vmatprep.subr.mxu0 0.0
    %2687 = vmatpush1.msra.mxu0 0.0
    %2688 = vmatprep.subr.mxu0 0.0
    %2689 = vmatpush1.msra.mxu0 0.0
    %2690 = vmatprep.subr.mxu0 0.0
    %2691 = vmatpush1.msra.mxu0 0.0
    %2692 = vmatprep.mubr.f32.mxu0 0.0
    %2693 = vmatmul.mubr.f32.gmra.mrb[0].mxu0 %v2626
    %v2694 = vpop.f32.mrb[0].mxu0
    %v2695 = vadd.f32 0.0, %v2694
    %v2696 = vpop.f32.mrb[0].mxu0
    %2697 = vdwg.mxu0
    %2700 = vrot.lane.b32.xlu0 %v2618, 32
    %v2701 = vpop.permute.xlu0 %2700
    %2702 = vrot.lane.b32.xlu0 %v2695, 32
    %v2703 = vpop.permute.xlu0 %2702
    %v2706 = vsel %vm297, %v2290, %v2701
    %v2707 = vsel %vm297, %v2363, %v2703
    %s2708 = scalar_lea.vmem [#allocation8], 128
    %v2709 = vld [vmem:[%s2708] sm:$0xff]
    %v2710 = vld [vmem:[%s2708 + $0x8] sm:$0xff]
    %v2711 = vld [vmem:[%s2708 + $0x10] sm:$0xff]
    %v2712 = vld [vmem:[%s2708 + $0x18] sm:$0xff]
    %v2713 = vld [vmem:[%s2708 + $0x20] sm:$0xff]
    %v2714 = vld [vmem:[%s2708 + $0x28] sm:$0xff]
    %v2715 = vld [vmem:[%s2708 + $0x30] sm:$0xff]
    %v2716 = vld [vmem:[%s2708 + $0x38] sm:$0xff]
    %s2717 = scalar_lea.vmem %s6, 2
    %v2718 = vld [vmem:[%s2717] sm:$0x1]
    %v2720 = vlaneseq
    %v2721 = vshrl.u32 %v2720, 7
    %v2722 = vsub.s32 0, %v2721
    %v2723 = vrot.slane %v2718, %v2722
    %v2726 = vsel %vm210, %v2706, 0
    %v2729 = vsel %vm210, %v2707, 0
    %2731 = vmatprep.subr.mxu0 0.0
    %2732 = vmatpush1.msra.mxu0 %v2709
    %2733 = vmatprep.subr.mxu0 0.0
    %2734 = vmatpush1.msra.mxu0 %v2710
    %2735 = vmatprep.subr.mxu0 0.0
    %2736 = vmatpush1.msra.mxu0 %v2711
    %2737 = vmatprep.subr.mxu0 0.0
    %2738 = vmatpush1.msra.mxu0 %v2712
    %2739 = vmatprep.subr.mxu0 0.0
    %2740 = vmatpush1.msra.mxu0 %v2713
    %2741 = vmatprep.subr.mxu0 0.0
    %2742 = vmatpush1.msra.mxu0 %v2714
    %2743 = vmatprep.subr.mxu0 0.0
    %2744 = vmatpush1.msra.mxu0 %v2715
    %2745 = vmatprep.subr.mxu0 0.0
    %2746 = vmatpush1.msra.mxu0 %v2716
    %2747 = vmatprep.subr.mxu0 0.0
    %2748 = vmatpush1.msra.mxu0 0.0
    %2749 = vmatprep.subr.mxu0 0.0
    %2750 = vmatpush1.msra.mxu0 0.0
    %2751 = vmatprep.subr.mxu0 0.0
    %2752 = vmatpush1.msra.mxu0 0.0
    %2753 = vmatprep.subr.mxu0 0.0
    %2754 = vmatpush1.msra.mxu0 0.0
    %2755 = vmatprep.subr.mxu0 0.0
    %2756 = vmatpush1.msra.mxu0 0.0
    %2757 = vmatprep.subr.mxu0 0.0
    %2758 = vmatpush1.msra.mxu0 0.0
    %2759 = vmatprep.subr.mxu0 0.0
    %2760 = vmatpush1.msra.mxu0 0.0
    %2761 = vmatprep.subr.mxu0 0.0
    %2762 = vmatpush1.msra.mxu0 0.0
    %2763 = vmatprep.subr.mxu0 0.0
    %2764 = vmatpush1.msra.mxu0 0.0
    %2765 = vmatprep.subr.mxu0 0.0
    %2766 = vmatpush1.msra.mxu0 0.0
    %2767 = vmatprep.subr.mxu0 0.0
    %2768 = vmatpush1.msra.mxu0 0.0
    %2769 = vmatprep.subr.mxu0 0.0
    %2770 = vmatpush1.msra.mxu0 0.0
    %2771 = vmatprep.subr.mxu0 0.0
    %2772 = vmatpush1.msra.mxu0 0.0
    %2773 = vmatprep.subr.mxu0 0.0
    %2774 = vmatpush1.msra.mxu0 0.0
    %2775 = vmatprep.subr.mxu0 0.0
    %2776 = vmatpush1.msra.mxu0 0.0
    %2777 = vmatprep.subr.mxu0 0.0
    %2778 = vmatpush1.msra.mxu0 0.0
    %2779 = vmatprep.subr.mxu0 0.0
    %2780 = vmatpush1.msra.mxu0 0.0
    %2781 = vmatprep.subr.mxu0 0.0
    %2782 = vmatpush1.msra.mxu0 0.0
    %2783 = vmatprep.subr.mxu0 0.0
    %2784 = vmatpush1.msra.mxu0 0.0
    %2785 = vmatprep.subr.mxu0 0.0
    %2786 = vmatpush1.msra.mxu0 0.0
    %2787 = vmatprep.subr.mxu0 0.0
    %2788 = vmatpush1.msra.mxu0 0.0
    %2789 = vmatprep.subr.mxu0 0.0
    %2790 = vmatpush1.msra.mxu0 0.0
    %2791 = vmatprep.subr.mxu0 0.0
    %2792 = vmatpush1.msra.mxu0 0.0
    %2793 = vmatprep.subr.mxu0 0.0
    %2794 = vmatpush1.msra.mxu0 0.0
    %2795 = vmatprep.mubr.f32.mxu0 0.0
    %2796 = vmatmul.mubr.f32.gmra.mrb[0].mxu0 %v2726
    %v2797 = vpop.f32.mrb[0].mxu0
    %v2798 = vadd.f32 %v2723, %v2797
    %v2799 = vpop.f32.mrb[0].mxu0
    %2800 = vmatprep.mubr.f32.mxu0 0.0
    %2801 = vmatmul.mubr.f32.gmra.mrb[0].mxu0 %v2729
    %v2802 = vpop.f32.mrb[0].mxu0
    %v2803 = vadd.f32 %v2723, %v2802
    %v2804 = vpop.f32.mrb[0].mxu0
    %2805 = vdwg.mxu0
    %2806 = vrot.lane.b32.xlu0 %v174, 64
    %v2807 = vpop.permute.xlu0 %2806
    %2808 = vrot.lane.b32.xlu0 %v179, 64
    %v2809 = vpop.permute.xlu0 %2808
    %v2812 = vadd.f32 %v2798, %v2807
    %v2813 = vadd.f32 %v2803, %v2809
    %v2814 = vmax.f32 %v2812, 0.0
    %v2815 = vmax.f32 %v2813, 0.0
    %v2816 = vld [vmem:[%s7] sm:$0xff]
    %v2817 = vmul.f32 %v2814, %v2816
    %v2818 = vmul.f32 %v2815, %v2816
    %v2819 = vsel %vm210, %v2817, 0.0
    %2820 = vadd.xlane.f32.xlu0 %v2819
    %v2821 = vpop.xlane.xlu0 %2820
    %v2822 = vsel %vm210, %v2818, 0.0
    %2823 = vadd.xlane.f32.xlu0 %v2822
    %v2824 = vpop.xlane.xlu0 %2823
    %v2827 = vlaneseq
    %v2828 = vand.u32 %v2827, 127
    %v2829 = vlaneseq
    %v2830 = vshrl.u32 %v2829, 7
    %v2831 = vsub.s32 %v2828, %v2830
    %v2832 = vrot.slane %v2821, %v2831
    %v2833 = vlaneseq
    %v2834 = vshrl.u32 %v2833, 7
    %v2835 = vsub.s32 %v2828, %v2834
    %v2836 = vrot.slane %v2824, %v2835
    %vm2837 = vcmask 1041409
    %v2838 = vsel %vm2837, %v2836, %v2832
    %vm2840 = vcmask 58368
    %v2841 = vsel %vm2840, %v2838, 0.0
    %2842 = vadd.xlane.f32.xlu0 %v2841
    %v2843 = vpop.xlane.xlu0 %2842
    %v2844 = vld [vmem:[#allocation2] sm:$0x1]
    %v2846 = vlaneseq
    %v2847 = vshrl.u32 %v2846, 7
    %v2848 = vsub.s32 0, %v2847
    %v2849 = vrot.slane %v2844, %v2848
    %v2851 = vadd.f32 %v2843, %v2849
    %vm2852 = vcmask 1024
    %2853 = vst.msk [vmem:[%s9] sm:$0x3] %vm2852, %v2851
    // Predicated region
    $region54: #{tpu_custom_call.1} parent=1 // pred_check
      _
    $region55: #{tpu_custom_call.1} parent=1 // pred_check_branch
      %2855 = sbr.rel (0) target = $region57
    $region56: #{tpu_custom_call.1} parent=1 // pred_region
      _
    $region57: #{tpu_custom_call.1} parent=1 // pred_fallthru
      _
    // Predicated region
    $region58: #{tpu_custom_call.1} parent=1 // pred_check
      _
    $region59: #{tpu_custom_call.1} parent=1 // pred_check_branch
      %2857 = sbr.rel (0) target = $region61
    $region60: #{tpu_custom_call.1} parent=1 // pred_region
      _
    $region61: #{tpu_custom_call.1} parent=1 // pred_fallthru
      _
    %2858 = vsyncpa [#allocation4], 1
    %2859 = vsyncpa [#allocation6], 1
    %2860 = vsyncpa [#allocation9], 1

</llo_original>
